<compile_context>
chip_gen: v7x
topology: tpu7x:2x2x1
jax: 0.10.0
libtpu: 0.0.40
codegen_flags: <defaults>
</compile_context>

<pallas_src>
import functools

import jax
import jax.numpy as jnp
import numpy as np
from jax.experimental import pallas as pl
from jax.experimental.pallas import tpu as pltpu

# ----------------------------- hyper-parameters ------------------------------
B, C, N = 2, 4, 8            # batch, channels, patches
D_MODEL = 16                 # GPT hidden size (small synthetic value)
D_MID = 32                   # head hidden dim (module default 256; small here)
NUM_CLASSES = 5
MAX_CHANNELS = 17
NHEAD = 4                    # nn.TransformerEncoderLayer(nhead=4)
HEAD_DIM = D_MID // NHEAD
D_FF = 2048                  # nn.TransformerEncoderLayer default dim_feedforward
LN_EPS = 1e-5
_LANE = 128


def _layer_norm(x, gamma, beta, eps=LN_EPS):
    mu = jnp.mean(x, axis=-1, keepdims=True)
    var = jnp.mean((x - mu) ** 2, axis=-1, keepdims=True)
    return (x - mu) * jax.lax.rsqrt(var + eps) * gamma + beta


def _dot(a, b):
    # default MXU precision (single bf16 pass), f32 accumulation
    return jnp.dot(a, b, preferred_element_type=jnp.float32)


def _pack_consts(pieces):
    """Pack small f32 constants into one lane-padded (R, 128) slab.

    Every piece starts on an 8-row (sublane-tile) boundary so the in-kernel
    static window reads are aligned.  Returns (packed, {name: (row_off, (r, c))}).
    """
    meta, rows, off = {}, [], 0
    for name, arr in pieces:
        a = jnp.asarray(arr, jnp.float32)
        if a.ndim == 1:
            a = a.reshape(1, -1)
        r, c = a.shape
        assert c <= _LANE, name
        pad_r = (-r) % 8
        rows.append(jnp.pad(a, ((0, pad_r), (0, _LANE - c))))
        meta[name] = (off, (r, c))
        off += r + pad_r
    return jnp.concatenate(rows, axis=0), meta


def _grid_steps(batch):
    """v7x has 2 TensorCores -> split the batch across them ('parallel' grid).
    v5e/v6e have a single TensorCore, so a >1 grid is just a serial loop with
    per-step overhead: fold the whole batch into M of one grid step."""
    try:
        kind = jax.devices()[0].device_kind.lower()
    except Exception:  # pragma: no cover - defensive
        kind = ""
    return 2 if ("v7" in kind and batch % 2 == 0) else 1


def hier_aggregation_head(h, params):
    return _forward(h, params, _grid_steps(h.shape[0]))


@functools.partial(jax.jit, static_argnums=(2,))
def _forward(h, params, g_steps):
    Bq, Cq, Nq, d_model = h.shape
    d_mid = params["cls"].shape[-1]
    num_classes = params["fc_w"].shape[-1]
    head_dim = d_mid // NHEAD
    bg = Bq // g_steps              # batches per grid step
    bgc = bg * Cq                   # channel rows per grid step
    m_rows = bgc * Nq               # patch rows per grid step
    scale = 1.0 / (head_dim ** 0.5)

    hi = jax.lax.Precision.HIGHEST
    dot_hi = lambda a, b: jnp.dot(a, b, precision=hi)

    # ---- fold proj into K/V and fuse K|V into one projection (wrapper-side) ----
    in_w, in_b = params["in_w"], params["in_b"]
    w_q, w_k, w_v = in_w[:, :d_mid], in_w[:, d_mid:2 * d_mid], in_w[:, 2 * d_mid:]
    b_q, b_k, b_v = in_b[:, :d_mid], in_b[:, d_mid:2 * d_mid], in_b[:, 2 * d_mid:]
    w_kv = dot_hi(params["proj_w"], jnp.concatenate([w_k, w_v], axis=1))  # (d_model, 2*d_mid)
    b_kv = jnp.concatenate([b_k, b_v], axis=1)                            # (1, 2*d_mid)

    # ---- grid-invariant CLS-token quantities (computed once, exactly) ----------
    cls = params["cls"]
    cls_q = dot_hi(cls, w_q) + b_q
    cls_k = dot_hi(cls, w_k) + b_k
    cls_v = dot_hi(cls, w_v) + b_v
    head_id = jnp.arange(d_mid) // head_dim
    hsum = (head_id[:, None] == jnp.arange(NHEAD)[None, :]).astype(jnp.float32)  # (d_mid, H)
    hexp = hsum.T                                                                # (H, d_mid)
    cls_sc = dot_hi(cls_q * cls_k, hsum) / (head_dim ** 0.5)                     # (1, H)

    # ---- segment / mask indicator matrices -------------------------------------
    chan_of_patch = jnp.arange(m_rows) // Nq
    cind = (jnp.arange(bgc)[:, None] == chan_of_patch[None, :]).astype(jnp.float32)
    bat_of_chan = jnp.arange(bgc) // Cq
    bmask = (bat_of_chan[:, None] == bat_of_chan[None, :]).astype(jnp.float32)
    bmean = (jnp.arange(bg)[:, None] == bat_of_chan[None, :]).astype(jnp.float32) / Cq
    var_t = jnp.tile(params["var_emb"][:Cq], (bg, 1))                             # (bgc, d_mid)

    # ---- lane-dense classifier (unmasked final store) --------------------------
    fc_w_pad = jnp.pad(params["fc_w"], ((0, 0), (0, _LANE - num_classes)))
    fc_b_pad = jnp.pad(params["fc_b"], ((0, 0), (0, _LANE - num_classes)))

    consts, meta = _pack_consts([
        ("w_kv", w_kv), ("b_kv", b_kv),
        ("cls", cls), ("cls_q", cls_q), ("cls_v", cls_v), ("cls_sc", cls_sc),
        ("hsum", hsum), ("hexp", hexp), ("cind", cind),
        ("out_w", params["out_w"]), ("out_b", params["out_b"]),
        ("n1g", params["n1g"]), ("n1b", params["n1b"]),
        ("l2b", params["l2b"]), ("n2g", params["n2g"]), ("n2b", params["n2b"]),
        ("var_emb", var_t), ("qk_w", params["qk_w"]),
        ("bmask", bmask), ("bmean", bmean),
        ("ng", params["ng"]), ("nb", params["nb"]),
        ("fc_w", fc_w_pad), ("fc_b", fc_b_pad),
    ])

    l1w = params["l1w"].astype(jnp.bfloat16)     # (d_mid, d_ff)  dominant FLOPs
    l2w = params["l2w"].astype(jnp.bfloat16)     # (d_ff, d_mid)
    l1b = params["l1b"]                          # (1, d_ff) f32

    h_grp = h.reshape(g_steps, m_rows, d_model)

    def kernel(h_ref, c_ref, l1b_ref, l1w_ref, l2w_ref, o_ref):
        def cget(name):
            off, (r, c) = meta[name]
            return c_ref[off:off + r, 0:c]

        # ---------- patch pipeline: all bg*C channels of this grid step ----------
        x = h_ref[0]                                            # (m_rows, d_model)
        kv = _dot(x, cget("w_kv")) + cget("b_kv")               # (m_rows, 2*d_mid)
        k_p = kv[:, :d_mid]
        v_p = kv[:, d_mid:]

        s_p = _dot(k_p * cget("cls_q"), cget("hsum")) * scale   # (m_rows, H)
        s_c = cget("cls_sc")                                    # (1, H)

        # per-(channel, head) max -> safe softmax (no cross-channel underflow)
        s3 = s_p.reshape(bgc, Nq, NHEAD)
        m_ch = jnp.maximum(jnp.max(s3, axis=1), s_c)            # (bgc, H)
        e_p = jnp.exp(s3 - m_ch[:, None, :]).reshape(m_rows, NHEAD)
        e_c = jnp.exp(s_c - m_ch)                               # (bgc, H)

        denom = _dot(cget("cind"), e_p) + e_c                   # (bgc, H)
        w_full = _dot(e_p, cget("hexp"))                        # (m_rows, d_mid)
        ctx = _dot(cget("cind"), w_full * v_p)                  # (bgc, d_mid)
        ctx = ctx + _dot(e_c, cget("hexp")) * cget("cls_v")     # CLS key/value term
        sa = ctx / _dot(denom, cget("hexp"))                    # (bgc, d_mid)

        attn = _dot(sa, cget("out_w")) + cget("out_b")          # MHA out_proj
        x0 = _layer_norm(cget("cls") + attn, cget("n1g"), cget("n1b"))

        # FFN (dominant FLOPs): bf16 operands, f32 accumulation; post-norm
        ff = jnp.dot(x0.astype(jnp.bfloat16), l1w_ref[...],
                     preferred_element_type=jnp.float32) + l1b_ref[...]
        ff = jnp.maximum(ff, 0.0)
        ff = jnp.dot(ff.astype(jnp.bfloat16), l2w_ref[...],
                     preferred_element_type=jnp.float32) + cget("l2b")
        y = _layer_norm(x0 + ff, cget("n2g"), cget("n2b"))      # (bgc, d_mid) CLS slab

        # ---------- channel aggregation epilogue (block-diag over batches) -------
        hc = y + cget("var_emb")                                # (bgc, d_mid)
        qk = _dot(hc, cget("qk_w"))                             # fused Q|K projection
        q2 = qk[:, :d_mid]
        k2 = qk[:, d_mid:]
        s2 = jax.lax.dot_general(q2, k2, (((1,), (1,)), ((), ())),
                                 preferred_element_type=jnp.float32) / (d_mid ** 0.5)
        s2 = jnp.where(cget("bmask") > 0.5, s2, -1e30)          # keep in-batch entries
        s2 = s2 - jnp.max(s2, axis=-1, keepdims=True)
        p2 = jnp.exp(s2)
        p2 = p2 / jnp.sum(p2, axis=-1, keepdims=True)           # (bgc, bgc)
        agg = _dot(p2, hc)                                      # (bgc, d_mid)
        g = _dot(cget("bmean"), agg)                            # (bg, d_mid) per-batch mean
        gn = _layer_norm(g, cget("ng"), cget("nb"))
        # self.drop (p=0.2) is identity in eval mode
        o_ref[0] = _dot(gn, cget("fc_w")) + cget("fc_b")        # (bg, 128) lane-dense

    # NOTE: constant operands keep the default pipeline mode; with a 1-2 step grid
    # and constant index_maps they are fetched once, and the double-buffer VMEM
    # cost (<0.5 MiB total here) is negligible, so pl.Buffered(1) is not needed.
    out = pl.pallas_call(
        kernel,
        out_shape=jax.ShapeDtypeStruct((g_steps, bg, _LANE), jnp.float32),
        grid=(g_steps,),
        in_specs=[
            pl.BlockSpec((1, m_rows, d_model), lambda i: (i, 0, 0)),
            pl.BlockSpec(consts.shape, lambda i: (0, 0)),
            pl.BlockSpec(l1b.shape, lambda i: (0, 0)),
            pl.BlockSpec(l1w.shape, lambda i: (0, 0)),
            pl.BlockSpec(l2w.shape, lambda i: (0, 0)),
        ],
        out_specs=pl.BlockSpec((1, bg, _LANE), lambda i: (i, 0, 0)),
        compiler_params=pltpu.CompilerParams(dimension_semantics=("parallel",)),
    )(h_grp, consts, l1b, l1w, l2w)

    return out.reshape(Bq, _LANE)[:, :num_classes]


# ---------------------------- pure-JAX reference ------------------------------
def reference_forward(h, p):
    Bq, Cq, Nq, _ = h.shape
    d_mid = p["cls"].shape[-1]
    x = (h @ p["proj_w"]).reshape(Bq * Cq, Nq, d_mid)
    cls = jnp.broadcast_to(p["cls"][None], (Bq * Cq, 1, d_mid))
    seq = jnp.concatenate([cls, x], axis=1)
    qkv = seq @ p["in_w"] + p["in_b"]
    q, k, v = jnp.split(qkv, 3, axis=-1)
    sh = lambda t: t.reshape(Bq * Cq, -1, NHEAD, HEAD_DIM).transpose(0, 2, 1, 3)
    qh, kh, vh = sh(q), sh(k), sh(v)
    s = jnp.einsum("bhqd,bhkd->bhqk", qh, kh) / (HEAD_DIM ** 0.5)
    a = jax.nn.softmax(s, axis=-1)
    o = jnp.einsum("bhqk,bhkd->bhqd", a, vh).transpose(0, 2, 1, 3)
    o = o.reshape(Bq * Cq, -1, d_mid) @ p["out_w"] + p["out_b"]
    x1 = _layer_norm(seq + o, p["n1g"], p["n1b"])
    ff = jax.nn.relu(x1 @ p["l1w"] + p["l1b"]) @ p["l2w"] + p["l2b"]
    x2 = _layer_norm(x1 + ff, p["n2g"], p["n2b"])
    h_chan = x2[:, 0, :].reshape(Bq, Cq, d_mid) + p["var_emb"][:Cq]
    qk = h_chan @ p["qk_w"]
    q2, k2 = jnp.split(qk, 2, axis=-1)
    attn = jax.nn.softmax(q2 @ jnp.swapaxes(k2, -1, -2) / (d_mid ** 0.5), axis=-1)
    g = (attn @ h_chan).mean(axis=1)
    gn = _layer_norm(g, p["ng"], p["nb"])
    return gn @ p["fc_w"] + p["fc_b"]


# ----------------------------- parameter init ---------------------------------
def init_params(key):
    ks = jax.random.split(key, 20)

    def lin_w(k, fan_in, fan_out):       # stored transposed: (in, out)
        bound = 1.0 / (fan_in ** 0.5)
        return jax.random.uniform(k, (fan_in, fan_out), jnp.float32, -bound, bound)

    def lin_b(k, fan_in, fan_out):
        bound = 1.0 / (fan_in ** 0.5)
        return jax.random.uniform(k, (1, fan_out), jnp.float32, -bound, bound)

    return {
        "proj_w": lin_w(ks[0], D_MODEL, D_MID),
        "cls": jax.random.normal(ks[1], (1, D_MID), jnp.float32),
        "in_w": lin_w(ks[2], D_MID, 3 * D_MID),
        "in_b": lin_b(ks[3], D_MID, 3 * D_MID),
        "out_w": lin_w(ks[4], D_MID, D_MID),
        "out_b": lin_b(ks[5], D_MID, D_MID),
        "n1g": jnp.ones((1, D_MID), jnp.float32),
        "n1b": jnp.zeros((1, D_MID), jnp.float32),
        "l1w": lin_w(ks[6], D_MID, D_FF),
        "l1b": lin_b(ks[7], D_MID, D_FF),
        "l2w": lin_w(ks[8], D_FF, D_MID),
        "l2b": lin_b(ks[9], D_FF, D_MID),
        "n2g": jnp.ones((1, D_MID), jnp.float32),
        "n2b": jnp.zeros((1, D_MID), jnp.float32),
        "var_emb": jax.random.normal(ks[10], (MAX_CHANNELS, D_MID), jnp.float32),
        "qk_w": lin_w(ks[11], D_MID, 2 * D_MID),
        "ng": jnp.ones((1, D_MID), jnp.float32),
        "nb": jnp.zeros((1, D_MID), jnp.float32),
        "fc_w": lin_w(ks[12], D_MID, NUM_CLASSES),
        "fc_b": lin_b(ks[13], D_MID, NUM_CLASSES),
    }


if __name__ == "__main__":
    key = jax.random.PRNGKey(0)
    k_param, k_in = jax.random.split(key)
    params = init_params(k_param)
    h = jax.random.normal(k_in, (B, C, N, D_MODEL), jnp.float32)

    logits = hier_aggregation_head(h, params)
    jax.block_until_ready(logits)

    with jax.default_matmul_precision("highest"):
        ref = reference_forward(h, params)
    np.testing.assert_allclose(np.asarray(logits), np.asarray(ref),
                               rtol=2e-2, atol=2e-2)

    print("KERNEL_OK")
</pallas_src>

<mosaic_0001>
module attributes {stable_mosaic.version = 11 : i64} {
  func.func @kernel(%arg0: i32, %arg1: memref<1x64x16xf32, #tpu.memory_space<vmem>>, %arg2: memref<296x128xf32, #tpu.memory_space<vmem>>, %arg3: memref<1x2048xf32, #tpu.memory_space<vmem>>, %arg4: memref<32x2048xbf16, #tpu.memory_space<vmem>>, %arg5: memref<2048x32xbf16, #tpu.memory_space<vmem>>, %arg6: memref<1x2x128xf32, #tpu.memory_space<vmem>>) attributes {dimension_semantics = [#tpu.dimension_semantics<parallel>], iteration_bounds = array<i64: 1>, scalar_prefetch = 0 : i64, scratch_operands = 0 : i64, tpu.core_type = #tpu.core_type<tc>, window_params = [{transform_indices = @transform_0, window_bounds = array<i64: 1, 64, 16>}, {pipeline_mode = #tpu.pipeline_mode<synchronous>, transform_indices = @transform_1, window_bounds = array<i64: 296, 128>}, {pipeline_mode = #tpu.pipeline_mode<synchronous>, transform_indices = @transform_2, window_bounds = array<i64: 1, 2048>}, {pipeline_mode = #tpu.pipeline_mode<synchronous>, transform_indices = @transform_3, window_bounds = array<i64: 32, 2048>}, {pipeline_mode = #tpu.pipeline_mode<synchronous>, transform_indices = @transform_4, window_bounds = array<i64: 2048, 32>}, {transform_indices = @transform_5, window_bounds = array<i64: 1, 2, 128>}]} {
    %c0 = arith.constant 0 : index
    %c0_0 = arith.constant 0 : index
    %c0_1 = arith.constant 0 : index
    %0 = vector.load %arg1[%c0, %c0_0, %c0_1] : memref<1x64x16xf32, #tpu.memory_space<vmem>>, vector<1x64x16xf32>
    %1 = vector.shape_cast %0 : vector<1x64x16xf32> to vector<64x16xf32>
    %c0_2 = arith.constant 0 : index
    %c0_3 = arith.constant 0 : index
    %2 = vector.load %arg2[%c0_2, %c0_3] : memref<296x128xf32, #tpu.memory_space<vmem>>, vector<16x64xf32>
    %cst = arith.constant dense<0.000000e+00> : vector<64x64xf32>
    %3 = tpu.matmul %1, %2, %cst {dimension_numbers = #tpu.dot_dimension_numbers<[1], [0], [0], [1], [0, 0, 1, 1], [], []>} : vector<64x16xf32>, vector<16x64xf32>, vector<64x64xf32> -> vector<64x64xf32>
    %c16 = arith.constant 16 : index
    %c0_4 = arith.constant 0 : index
    %4 = vector.load %arg2[%c16, %c0_4] : memref<296x128xf32, #tpu.memory_space<vmem>>, vector<1x64xf32>
    %5 = vector.broadcast %4 : vector<1x64xf32> to vector<64x64xf32>
    %6 = arith.addf %3, %5 : vector<64x64xf32>
    %7 = vector.extract_strided_slice %6 {offsets = [0, 0], sizes = [64, 32], strides = [1, 1]} : vector<64x64xf32> to vector<64x32xf32>
    %8 = vector.extract_strided_slice %6 {offsets = [0, 32], sizes = [64, 32], strides = [1, 1]} : vector<64x64xf32> to vector<64x32xf32>
    %c32 = arith.constant 32 : index
    %c0_5 = arith.constant 0 : index
    %9 = vector.load %arg2[%c32, %c0_5] : memref<296x128xf32, #tpu.memory_space<vmem>>, vector<1x32xf32>
    %10 = vector.broadcast %9 : vector<1x32xf32> to vector<64x32xf32>
    %11 = arith.mulf %7, %10 : vector<64x32xf32>
    %c56 = arith.constant 56 : index
    %c0_6 = arith.constant 0 : index
    %12 = vector.load %arg2[%c56, %c0_6] : memref<296x128xf32, #tpu.memory_space<vmem>>, vector<32x4xf32>
    %cst_7 = arith.constant dense<0.000000e+00> : vector<64x4xf32>
    %13 = tpu.matmul %11, %12, %cst_7 {dimension_numbers = #tpu.dot_dimension_numbers<[1], [0], [0], [1], [0, 0, 1, 1], [], []>} : vector<64x32xf32>, vector<32x4xf32>, vector<64x4xf32> -> vector<64x4xf32>
    %cst_8 = arith.constant 0.353553385 : f32
    %14 = vector.broadcast %cst_8 : f32 to vector<64x4xf32>
    %15 = arith.mulf %13, %14 : vector<64x4xf32>
    %c48 = arith.constant 48 : index
    %c0_9 = arith.constant 0 : index
    %16 = vector.load %arg2[%c48, %c0_9] : memref<296x128xf32, #tpu.memory_space<vmem>>, vector<1x4xf32>
    %17 = vector.shape_cast %15 : vector<64x4xf32> to vector<8x8x4xf32>
    %cst_10 = arith.constant dense<0xFF800000> : vector<8x4xf32>
    %18 = vector.multi_reduction <maximumf>, %17, %cst_10 [1] : vector<8x8x4xf32> to vector<8x4xf32>
    %19 = vector.broadcast %16 : vector<1x4xf32> to vector<8x4xf32>
    %20 = arith.maximumf %18, %19 : vector<8x4xf32>
    %21 = vector.shape_cast %20 : vector<8x4xf32> to vector<8x1x4xf32>
    %22 = vector.broadcast %21 : vector<8x1x4xf32> to vector<8x8x4xf32>
    %23 = arith.subf %17, %22 : vector<8x8x4xf32>
    %24 = math.exp %23 : vector<8x8x4xf32>
    %25 = vector.shape_cast %24 : vector<8x8x4xf32> to vector<64x4xf32>
    %26 = vector.broadcast %16 : vector<1x4xf32> to vector<8x4xf32>
    %27 = arith.subf %26, %20 : vector<8x4xf32>
    %28 = math.exp %27 : vector<8x4xf32>
    %c96 = arith.constant 96 : index
    %c0_11 = arith.constant 0 : index
    %29 = vector.load %arg2[%c96, %c0_11] : memref<296x128xf32, #tpu.memory_space<vmem>>, vector<8x64xf32>
    %cst_12 = arith.constant dense<0.000000e+00> : vector<8x4xf32>
    %30 = tpu.matmul %29, %25, %cst_12 {dimension_numbers = #tpu.dot_dimension_numbers<[1], [0], [0], [1], [0, 0, 1, 1], [], []>} : vector<8x64xf32>, vector<64x4xf32>, vector<8x4xf32> -> vector<8x4xf32>
    %31 = arith.addf %30, %28 : vector<8x4xf32>
    %c88 = arith.constant 88 : index
    %c0_13 = arith.constant 0 : index
    %32 = vector.load %arg2[%c88, %c0_13] : memref<296x128xf32, #tpu.memory_space<vmem>>, vector<4x32xf32>
    %cst_14 = arith.constant dense<0.000000e+00> : vector<64x32xf32>
    %33 = tpu.matmul %25, %32, %cst_14 {dimension_numbers = #tpu.dot_dimension_numbers<[1], [0], [0], [1], [0, 0, 1, 1], [], []>} : vector<64x4xf32>, vector<4x32xf32>, vector<64x32xf32> -> vector<64x32xf32>
    %c96_15 = arith.constant 96 : index
    %c0_16 = arith.constant 0 : index
    %34 = vector.load %arg2[%c96_15, %c0_16] : memref<296x128xf32, #tpu.memory_space<vmem>>, vector<8x64xf32>
    %35 = arith.mulf %33, %8 : vector<64x32xf32>
    %cst_17 = arith.constant dense<0.000000e+00> : vector<8x32xf32>
    %36 = tpu.matmul %34, %35, %cst_17 {dimension_numbers = #tpu.dot_dimension_numbers<[1], [0], [0], [1], [0, 0, 1, 1], [], []>} : vector<8x64xf32>, vector<64x32xf32>, vector<8x32xf32> -> vector<8x32xf32>
    %c88_18 = arith.constant 88 : index
    %c0_19 = arith.constant 0 : index
    %37 = vector.load %arg2[%c88_18, %c0_19] : memref<296x128xf32, #tpu.memory_space<vmem>>, vector<4x32xf32>
    %cst_20 = arith.constant dense<0.000000e+00> : vector<8x32xf32>
    %38 = tpu.matmul %28, %37, %cst_20 {dimension_numbers = #tpu.dot_dimension_numbers<[1], [0], [0], [1], [0, 0, 1, 1], [], []>} : vector<8x4xf32>, vector<4x32xf32>, vector<8x32xf32> -> vector<8x32xf32>
    %c40 = arith.constant 40 : index
    %c0_21 = arith.constant 0 : index
    %39 = vector.load %arg2[%c40, %c0_21] : memref<296x128xf32, #tpu.memory_space<vmem>>, vector<1x32xf32>
    %40 = vector.broadcast %39 : vector<1x32xf32> to vector<8x32xf32>
    %41 = arith.mulf %38, %40 : vector<8x32xf32>
    %42 = arith.addf %36, %41 : vector<8x32xf32>
    %c88_22 = arith.constant 88 : index
    %c0_23 = arith.constant 0 : index
    %43 = vector.load %arg2[%c88_22, %c0_23] : memref<296x128xf32, #tpu.memory_space<vmem>>, vector<4x32xf32>
    %cst_24 = arith.constant dense<0.000000e+00> : vector<8x32xf32>
    %44 = tpu.matmul %31, %43, %cst_24 {dimension_numbers = #tpu.dot_dimension_numbers<[1], [0], [0], [1], [0, 0, 1, 1], [], []>} : vector<8x4xf32>, vector<4x32xf32>, vector<8x32xf32> -> vector<8x32xf32>
    %45 = arith.divf %42, %44 : vector<8x32xf32>
    %c104 = arith.constant 104 : index
    %c0_25 = arith.constant 0 : index
    %46 = vector.load %arg2[%c104, %c0_25] : memref<296x128xf32, #tpu.memory_space<vmem>>, vector<32x32xf32>
    %cst_26 = arith.constant dense<0.000000e+00> : vector<8x32xf32>
    %47 = tpu.matmul %45, %46, %cst_26 {dimension_numbers = #tpu.dot_dimension_numbers<[1], [0], [0], [1], [0, 0, 1, 1], [], []>} : vector<8x32xf32>, vector<32x32xf32>, vector<8x32xf32> -> vector<8x32xf32>
    %c136 = arith.constant 136 : index
    %c0_27 = arith.constant 0 : index
    %48 = vector.load %arg2[%c136, %c0_27] : memref<296x128xf32, #tpu.memory_space<vmem>>, vector<1x32xf32>
    %49 = vector.broadcast %48 : vector<1x32xf32> to vector<8x32xf32>
    %50 = arith.addf %47, %49 : vector<8x32xf32>
    %c24 = arith.constant 24 : index
    %c0_28 = arith.constant 0 : index
    %51 = vector.load %arg2[%c24, %c0_28] : memref<296x128xf32, #tpu.memory_space<vmem>>, vector<1x32xf32>
    %52 = vector.broadcast %51 : vector<1x32xf32> to vector<8x32xf32>
    %53 = arith.addf %52, %50 : vector<8x32xf32>
    %c144 = arith.constant 144 : index
    %c0_29 = arith.constant 0 : index
    %54 = vector.load %arg2[%c144, %c0_29] : memref<296x128xf32, #tpu.memory_space<vmem>>, vector<1x32xf32>
    %c152 = arith.constant 152 : index
    %c0_30 = arith.constant 0 : index
    %55 = vector.load %arg2[%c152, %c0_30] : memref<296x128xf32, #tpu.memory_space<vmem>>, vector<1x32xf32>
    %cst_31 = arith.constant dense<0.000000e+00> : vector<8xf32>
    %56 = vector.multi_reduction <add>, %53, %cst_31 [1] : vector<8x32xf32> to vector<8xf32>
    %57 = vector.shape_cast %56 : vector<8xf32> to vector<8x1xf32>
    %cst_32 = arith.constant 3.200000e+01 : f32
    %58 = vector.broadcast %cst_32 : f32 to vector<8x1xf32>
    %59 = arith.divf %57, %58 : vector<8x1xf32>
    %60 = vector.broadcast %59 : vector<8x1xf32> to vector<8x32xf32>
    %61 = arith.subf %53, %60 : vector<8x32xf32>
    %62 = arith.mulf %61, %61 : vector<8x32xf32>
    %cst_33 = arith.constant dense<0.000000e+00> : vector<8xf32>
    %63 = vector.multi_reduction <add>, %62, %cst_33 [1] : vector<8x32xf32> to vector<8xf32>
    %64 = vector.shape_cast %63 : vector<8xf32> to vector<8x1xf32>
    %cst_34 = arith.constant 3.200000e+01 : f32
    %65 = vector.broadcast %cst_34 : f32 to vector<8x1xf32>
    %66 = arith.divf %64, %65 : vector<8x1xf32>
    %67 = vector.broadcast %59 : vector<8x1xf32> to vector<8x32xf32>
    %68 = arith.subf %53, %67 : vector<8x32xf32>
    %cst_35 = arith.constant 9.99999974E-6 : f32
    %69 = vector.broadcast %cst_35 : f32 to vector<8x1xf32>
    %70 = arith.addf %66, %69 : vector<8x1xf32>
    %71 = math.rsqrt %70 : vector<8x1xf32>
    %72 = vector.broadcast %71 : vector<8x1xf32> to vector<8x32xf32>
    %73 = arith.mulf %68, %72 : vector<8x32xf32>
    %74 = vector.broadcast %54 : vector<1x32xf32> to vector<8x32xf32>
    %75 = arith.mulf %73, %74 : vector<8x32xf32>
    %76 = vector.broadcast %55 : vector<1x32xf32> to vector<8x32xf32>
    %77 = arith.addf %75, %76 : vector<8x32xf32>
    %78 = arith.truncf %77 : vector<8x32xf32> to vector<8x32xbf16>
    %c0_36 = arith.constant 0 : index
    %c0_37 = arith.constant 0 : index
    %79 = vector.load %arg4[%c0_36, %c0_37] : memref<32x2048xbf16, #tpu.memory_space<vmem>>, vector<32x2048xbf16>
    %cst_38 = arith.constant dense<0.000000e+00> : vector<8x2048xf32>
    %80 = tpu.matmul %78, %79, %cst_38 {dimension_numbers = #tpu.dot_dimension_numbers<[1], [0], [0], [1], [0, 0, 1, 1], [], []>} : vector<8x32xbf16>, vector<32x2048xbf16>, vector<8x2048xf32> -> vector<8x2048xf32>
    %c0_39 = arith.constant 0 : index
    %c0_40 = arith.constant 0 : index
    %81 = vector.load %arg3[%c0_39, %c0_40] : memref<1x2048xf32, #tpu.memory_space<vmem>>, vector<1x2048xf32>
    %82 = vector.broadcast %81 : vector<1x2048xf32> to vector<8x2048xf32>
    %83 = arith.addf %80, %82 : vector<8x2048xf32>
    %cst_41 = arith.constant 0.000000e+00 : f32
    %84 = vector.broadcast %cst_41 : f32 to vector<8x2048xf32>
    %85 = arith.maximumf %83, %84 : vector<8x2048xf32>
    %86 = arith.truncf %85 : vector<8x2048xf32> to vector<8x2048xbf16>
    %c0_42 = arith.constant 0 : index
    %c0_43 = arith.constant 0 : index
    %87 = vector.load %arg5[%c0_42, %c0_43] : memref<2048x32xbf16, #tpu.memory_space<vmem>>, vector<2048x32xbf16>
    %cst_44 = arith.constant dense<0.000000e+00> : vector<8x32xf32>
    %88 = tpu.matmul %86, %87, %cst_44 {dimension_numbers = #tpu.dot_dimension_numbers<[1], [0], [0], [1], [0, 0, 1, 1], [], []>} : vector<8x2048xbf16>, vector<2048x32xbf16>, vector<8x32xf32> -> vector<8x32xf32>
    %c160 = arith.constant 160 : index
    %c0_45 = arith.constant 0 : index
    %89 = vector.load %arg2[%c160, %c0_45] : memref<296x128xf32, #tpu.memory_space<vmem>>, vector<1x32xf32>
    %90 = vector.broadcast %89 : vector<1x32xf32> to vector<8x32xf32>
    %91 = arith.addf %88, %90 : vector<8x32xf32>
    %92 = arith.addf %77, %91 : vector<8x32xf32>
    %c168 = arith.constant 168 : index
    %c0_46 = arith.constant 0 : index
    %93 = vector.load %arg2[%c168, %c0_46] : memref<296x128xf32, #tpu.memory_space<vmem>>, vector<1x32xf32>
    %c176 = arith.constant 176 : index
    %c0_47 = arith.constant 0 : index
    %94 = vector.load %arg2[%c176, %c0_47] : memref<296x128xf32, #tpu.memory_space<vmem>>, vector<1x32xf32>
    %cst_48 = arith.constant dense<0.000000e+00> : vector<8xf32>
    %95 = vector.multi_reduction <add>, %92, %cst_48 [1] : vector<8x32xf32> to vector<8xf32>
    %96 = vector.shape_cast %95 : vector<8xf32> to vector<8x1xf32>
    %cst_49 = arith.constant 3.200000e+01 : f32
    %97 = vector.broadcast %cst_49 : f32 to vector<8x1xf32>
    %98 = arith.divf %96, %97 : vector<8x1xf32>
    %99 = vector.broadcast %98 : vector<8x1xf32> to vector<8x32xf32>
    %100 = arith.subf %92, %99 : vector<8x32xf32>
    %101 = arith.mulf %100, %100 : vector<8x32xf32>
    %cst_50 = arith.constant dense<0.000000e+00> : vector<8xf32>
    %102 = vector.multi_reduction <add>, %101, %cst_50 [1] : vector<8x32xf32> to vector<8xf32>
    %103 = vector.shape_cast %102 : vector<8xf32> to vector<8x1xf32>
    %cst_51 = arith.constant 3.200000e+01 : f32
    %104 = vector.broadcast %cst_51 : f32 to vector<8x1xf32>
    %105 = arith.divf %103, %104 : vector<8x1xf32>
    %106 = vector.broadcast %98 : vector<8x1xf32> to vector<8x32xf32>
    %107 = arith.subf %92, %106 : vector<8x32xf32>
    %cst_52 = arith.constant 9.99999974E-6 : f32
    %108 = vector.broadcast %cst_52 : f32 to vector<8x1xf32>
    %109 = arith.addf %105, %108 : vector<8x1xf32>
    %110 = math.rsqrt %109 : vector<8x1xf32>
    %111 = vector.broadcast %110 : vector<8x1xf32> to vector<8x32xf32>
    %112 = arith.mulf %107, %111 : vector<8x32xf32>
    %113 = vector.broadcast %93 : vector<1x32xf32> to vector<8x32xf32>
    %114 = arith.mulf %112, %113 : vector<8x32xf32>
    %115 = vector.broadcast %94 : vector<1x32xf32> to vector<8x32xf32>
    %116 = arith.addf %114, %115 : vector<8x32xf32>
    %c184 = arith.constant 184 : index
    %c0_53 = arith.constant 0 : index
    %117 = vector.load %arg2[%c184, %c0_53] : memref<296x128xf32, #tpu.memory_space<vmem>>, vector<8x32xf32>
    %118 = arith.addf %116, %117 : vector<8x32xf32>
    %c192 = arith.constant 192 : index
    %c0_54 = arith.constant 0 : index
    %119 = vector.load %arg2[%c192, %c0_54] : memref<296x128xf32, #tpu.memory_space<vmem>>, vector<32x64xf32>
    %cst_55 = arith.constant dense<0.000000e+00> : vector<8x64xf32>
    %120 = tpu.matmul %118, %119, %cst_55 {dimension_numbers = #tpu.dot_dimension_numbers<[1], [0], [0], [1], [0, 0, 1, 1], [], []>} : vector<8x32xf32>, vector<32x64xf32>, vector<8x64xf32> -> vector<8x64xf32>
    %121 = vector.extract_strided_slice %120 {offsets = [0, 0], sizes = [8, 32], strides = [1, 1]} : vector<8x64xf32> to vector<8x32xf32>
    %122 = vector.extract_strided_slice %120 {offsets = [0, 32], sizes = [8, 32], strides = [1, 1]} : vector<8x64xf32> to vector<8x32xf32>
    %cst_56 = arith.constant dense<0.000000e+00> : vector<8x8xf32>
    %123 = tpu.matmul %121, %122, %cst_56 {dimension_numbers = #tpu.dot_dimension_numbers<[1], [1], [0], [0], [0, 0, 1, 0], [], []>} : vector<8x32xf32>, vector<8x32xf32>, vector<8x8xf32> -> vector<8x8xf32>
    %cst_57 = arith.constant 5.65685415 : f32
    %124 = vector.broadcast %cst_57 : f32 to vector<8x8xf32>
    %125 = arith.divf %123, %124 : vector<8x8xf32>
    %c224 = arith.constant 224 : index
    %c0_58 = arith.constant 0 : index
    %126 = vector.load %arg2[%c224, %c0_58] : memref<296x128xf32, #tpu.memory_space<vmem>>, vector<8x8xf32>
    %cst_59 = arith.constant 5.000000e-01 : f32
    %127 = vector.broadcast %cst_59 : f32 to vector<8x8xf32>
    %128 = arith.cmpf ogt, %126, %127 : vector<8x8xf32>
    %cst_60 = arith.constant -1.000000e+30 : f32
    %129 = vector.broadcast %cst_60 : f32 to vector<8x8xf32>
    %130 = arith.select %128, %125, %129 : vector<8x8xi1>, vector<8x8xf32>
    %cst_61 = arith.constant dense<0xFF800000> : vector<8xf32>
    %131 = vector.multi_reduction <maximumf>, %130, %cst_61 [1] : vector<8x8xf32> to vector<8xf32>
    %132 = vector.shape_cast %131 : vector<8xf32> to vector<8x1xf32>
    %133 = vector.broadcast %132 : vector<8x1xf32> to vector<8x8xf32>
    %134 = arith.subf %130, %133 : vector<8x8xf32>
    %135 = math.exp %134 : vector<8x8xf32>
    %cst_62 = arith.constant dense<0.000000e+00> : vector<8xf32>
    %136 = vector.multi_reduction <add>, %135, %cst_62 [1] : vector<8x8xf32> to vector<8xf32>
    %137 = vector.shape_cast %136 : vector<8xf32> to vector<8x1xf32>
    %138 = vector.broadcast %137 : vector<8x1xf32> to vector<8x8xf32>
    %139 = arith.divf %135, %138 : vector<8x8xf32>
    %cst_63 = arith.constant dense<0.000000e+00> : vector<8x32xf32>
    %140 = tpu.matmul %139, %118, %cst_63 {dimension_numbers = #tpu.dot_dimension_numbers<[1], [0], [0], [1], [0, 0, 1, 1], [], []>} : vector<8x8xf32>, vector<8x32xf32>, vector<8x32xf32> -> vector<8x32xf32>
    %c232 = arith.constant 232 : index
    %c0_64 = arith.constant 0 : index
    %141 = vector.load %arg2[%c232, %c0_64] : memref<296x128xf32, #tpu.memory_space<vmem>>, vector<2x8xf32>
    %cst_65 = arith.constant dense<0.000000e+00> : vector<2x32xf32>
    %142 = tpu.matmul %141, %140, %cst_65 {dimension_numbers = #tpu.dot_dimension_numbers<[1], [0], [0], [1], [0, 0, 1, 1], [], []>} : vector<2x8xf32>, vector<8x32xf32>, vector<2x32xf32> -> vector<2x32xf32>
    %c240 = arith.constant 240 : index
    %c0_66 = arith.constant 0 : index
    %143 = vector.load %arg2[%c240, %c0_66] : memref<296x128xf32, #tpu.memory_space<vmem>>, vector<1x32xf32>
    %c248 = arith.constant 248 : index
    %c0_67 = arith.constant 0 : index
    %144 = vector.load %arg2[%c248, %c0_67] : memref<296x128xf32, #tpu.memory_space<vmem>>, vector<1x32xf32>
    %cst_68 = arith.constant dense<0.000000e+00> : vector<2xf32>
    %145 = vector.multi_reduction <add>, %142, %cst_68 [1] : vector<2x32xf32> to vector<2xf32>
    %146 = vector.shape_cast %145 : vector<2xf32> to vector<2x1xf32>
    %cst_69 = arith.constant 3.200000e+01 : f32
    %147 = vector.broadcast %cst_69 : f32 to vector<2x1xf32>
    %148 = arith.divf %146, %147 : vector<2x1xf32>
    %149 = vector.broadcast %148 : vector<2x1xf32> to vector<2x32xf32>
    %150 = arith.subf %142, %149 : vector<2x32xf32>
    %151 = arith.mulf %150, %150 : vector<2x32xf32>
    %cst_70 = arith.constant dense<0.000000e+00> : vector<2xf32>
    %152 = vector.multi_reduction <add>, %151, %cst_70 [1] : vector<2x32xf32> to vector<2xf32>
    %153 = vector.shape_cast %152 : vector<2xf32> to vector<2x1xf32>
    %cst_71 = arith.constant 3.200000e+01 : f32
    %154 = vector.broadcast %cst_71 : f32 to vector<2x1xf32>
    %155 = arith.divf %153, %154 : vector<2x1xf32>
    %156 = vector.broadcast %148 : vector<2x1xf32> to vector<2x32xf32>
    %157 = arith.subf %142, %156 : vector<2x32xf32>
    %cst_72 = arith.constant 9.99999974E-6 : f32
    %158 = vector.broadcast %cst_72 : f32 to vector<2x1xf32>
    %159 = arith.addf %155, %158 : vector<2x1xf32>
    %160 = math.rsqrt %159 : vector<2x1xf32>
    %161 = vector.broadcast %160 : vector<2x1xf32> to vector<2x32xf32>
    %162 = arith.mulf %157, %161 : vector<2x32xf32>
    %163 = vector.broadcast %143 : vector<1x32xf32> to vector<2x32xf32>
    %164 = arith.mulf %162, %163 : vector<2x32xf32>
    %165 = vector.broadcast %144 : vector<1x32xf32> to vector<2x32xf32>
    %166 = arith.addf %164, %165 : vector<2x32xf32>
    %c256 = arith.constant 256 : index
    %c0_73 = arith.constant 0 : index
    %167 = vector.load %arg2[%c256, %c0_73] : memref<296x128xf32, #tpu.memory_space<vmem>>, vector<32x128xf32>
    %cst_74 = arith.constant dense<0.000000e+00> : vector<2x128xf32>
    %168 = tpu.matmul %166, %167, %cst_74 {dimension_numbers = #tpu.dot_dimension_numbers<[1], [0], [0], [1], [0, 0, 1, 1], [], []>} : vector<2x32xf32>, vector<32x128xf32>, vector<2x128xf32> -> vector<2x128xf32>
    %c288 = arith.constant 288 : index
    %c0_75 = arith.constant 0 : index
    %169 = vector.load %arg2[%c288, %c0_75] : memref<296x128xf32, #tpu.memory_space<vmem>>, vector<1x128xf32>
    %170 = vector.broadcast %169 : vector<1x128xf32> to vector<2x128xf32>
    %171 = arith.addf %168, %170 : vector<2x128xf32>
    %c0_76 = arith.constant 0 : index
    %c0_77 = arith.constant 0 : index
    %c0_78 = arith.constant 0 : index
    %172 = vector.load %arg6[%c0_76, %c0_77, %c0_78] : memref<1x2x128xf32, #tpu.memory_space<vmem>>, vector<1x2x128xf32>
    %173 = vector.shape_cast %172 : vector<1x2x128xf32> to vector<2x128xf32>
    %174 = vector.shape_cast %171 : vector<2x128xf32> to vector<1x2x128xf32>
    tpu.vector_store %arg6[%c0_76, %c0_77, %c0_78], %174 {strides = array<i32>} : memref<1x2x128xf32, #tpu.memory_space<vmem>>, vector<1x2x128xf32>,
    return
  }
  func.func @transform_0(%arg0: i32) -> (i32, i32, i32) {
    %c0_i32 = arith.constant 0 : i32
    %c0_i32_0 = arith.constant 0 : i32
    %c0_i32_1 = arith.constant 0 : i32
    return %arg0, %c0_i32, %c0_i32_0 : i32, i32, i32
  }
  func.func @transform_1(%arg0: i32) -> (i32, i32) {
    %c0_i32 = arith.constant 0 : i32
    %c0_i32_0 = arith.constant 0 : i32
    %c0_i32_1 = arith.constant 0 : i32
    return %c0_i32, %c0_i32_0 : i32, i32
  }
  func.func @transform_2(%arg0: i32) -> (i32, i32) {
    %c0_i32 = arith.constant 0 : i32
    %c0_i32_0 = arith.constant 0 : i32
    %c0_i32_1 = arith.constant 0 : i32
    return %c0_i32, %c0_i32_0 : i32, i32
  }
  func.func @transform_3(%arg0: i32) -> (i32, i32) {
    %c0_i32 = arith.constant 0 : i32
    %c0_i32_0 = arith.constant 0 : i32
    %c0_i32_1 = arith.constant 0 : i32
    return %c0_i32, %c0_i32_0 : i32, i32
  }
  func.func @transform_4(%arg0: i32) -> (i32, i32) {
    %c0_i32 = arith.constant 0 : i32
    %c0_i32_0 = arith.constant 0 : i32
    %c0_i32_1 = arith.constant 0 : i32
    return %c0_i32, %c0_i32_0 : i32, i32
  }
  func.func @transform_5(%arg0: i32) -> (i32, i32, i32) {
    %c0_i32 = arith.constant 0 : i32
    %c0_i32_0 = arith.constant 0 : i32
    %c0_i32_1 = arith.constant 0 : i32
    return %arg0, %c0_i32, %c0_i32_0 : i32, i32, i32
  }
}

</mosaic_0001>

<llo_original>
// kernel: _forward.1
$region0: #{_forward.1}
  #allocation0 [shape = 'u32[]', space=smem, size = 0x4, offset = 0x4, fixed_abs, tag = 'smem constant byte address 0x4 - core index']
  #allocation1 [shape = 'u32[144,128]{1,0:T(1,128)}', space=vmem, size = 0x12000, scoped, tag = 'internal scratch']
  %s0 = inlined_call_operand.vmem [shape: f32[1,64,16], index: 0, kind: input, shape index: {}]
  %s1 = inlined_call_operand.vmem [shape: f32[296,128], index: 1, kind: input, shape index: {}]
  %s2 = inlined_call_operand.vmem [shape: f32[1,2048], index: 2, kind: input, shape index: {}]
  %s3 = inlined_call_operand.vmem [shape: bf16[32,2048], index: 3, kind: input, shape index: {}]
  %s4 = inlined_call_operand.vmem [shape: bf16[2048,32], index: 4, kind: input, shape index: {}]
  %s5 = inlined_call_operand.hbm [shape: f32[1,2,128], index: 5, kind: output, shape index: {}]
  %s6 = sld [smem:[#allocation0]]
  $region30: #{_forward.1} parent=0
    _
  %s8 = ssub.s32 1, %s6
  %s9 = scalar_select 0, %s8, %s6
  $region1: #{_forward.1} parent=0
    #allocation2 [shape = 'u8[1024]{0}', space=vmem, size = 0x400, scoped, tag = 'output window, operand 0, single buffered']
    #allocation3 [shape = 's32[1]{0}', space=sflag, size = 0x4, scoped, tag = 'scoped memory for _forward.1']
    %10 = vsyncpa [#allocation3], 0
    // Predicated region
    $region2: #{_forward.1} parent=1 // pred_check
      _
    $region3: #{_forward.1} parent=1 // pred_check_branch
      %12 = sbr.rel (0) target = $region5
    $region4: #{_forward.1} parent=1 // pred_region
      _
    $region5: #{_forward.1} parent=1 // pred_fallthru
      _
    // Predicated region
    $region6: #{_forward.1} parent=1 // pred_check
      _
    $region7: #{_forward.1} parent=1 // pred_check_branch
      %14 = sbr.rel (0) target = $region9
    $region8: #{_forward.1} parent=1 // pred_region
      _
    $region9: #{_forward.1} parent=1 // pred_fallthru
      _
    // Predicated region
    $region10: #{_forward.1} parent=1 // pred_check
      _
    $region11: #{_forward.1} parent=1 // pred_check_branch
      %16 = sbr.rel (0) target = $region13
    $region12: #{_forward.1} parent=1 // pred_region
      _
    $region13: #{_forward.1} parent=1 // pred_fallthru
      _
    // Predicated region
    $region14: #{_forward.1} parent=1 // pred_check
      _
    $region15: #{_forward.1} parent=1 // pred_check_branch
      %18 = sbr.rel (0) target = $region17
    $region16: #{_forward.1} parent=1 // pred_region
      _
    $region17: #{_forward.1} parent=1 // pred_fallthru
      _
    // Predicated region
    $region18: #{_forward.1} parent=1 // pred_check
      _
    $region19: #{_forward.1} parent=1 // pred_check_branch
      %20 = sbr.rel (0) target = $region21
    $region20: #{_forward.1} parent=1 // pred_region
      _
    $region21: #{_forward.1} parent=1 // pred_fallthru
      _
    %v22 = vld [vmem:[%s0] sm:$0xff]
    %v23 = vld [vmem:[%s0 + $0x8] sm:$0xff]
    %v24 = vld [vmem:[%s0 + $0x10] sm:$0xff]
    %v25 = vld [vmem:[%s0 + $0x18] sm:$0xff]
    %v26 = vld [vmem:[%s0 + $0x20] sm:$0xff]
    %v27 = vld [vmem:[%s0 + $0x28] sm:$0xff]
    %v28 = vld [vmem:[%s0 + $0x30] sm:$0xff]
    %v29 = vld [vmem:[%s0 + $0x38] sm:$0xff]
    %v30 = vld [vmem:[%s1] sm:$0xff]
    %v31 = vld [vmem:[%s1 + $0x8] sm:$0xff]
    %v32 = vld [vmem:[%s1 + $0x10] sm:$0x1]
    %v33 = vlaneseq
    %v34 = vshrl.u32 %v33, 7
    %v35 = vsub.s32 0, %v34
    %v36 = vrot.slane %v32, %v35
    %vm37 = vcmask 130048
    %v39 = vsel %vm37, %v22, 0
    %v42 = vsel %vm37, %v23, 0
    %v45 = vsel %vm37, %v24, 0
    %v48 = vsel %vm37, %v25, 0
    %v51 = vsel %vm37, %v26, 0
    %v54 = vsel %vm37, %v27, 0
    %v57 = vsel %vm37, %v28, 0
    %v60 = vsel %vm37, %v29, 0
    %62 = vmatprep.subr.mxu0 0.0
    %63 = vmatpush1.msra.mxu0 %v30
    %64 = vmatprep.subr.mxu0 0.0
    %65 = vmatpush1.msra.mxu0 %v31
    %66 = vmatprep.subr.mxu0 0.0
    %67 = vmatpush1.msra.mxu0 0.0
    %68 = vmatprep.subr.mxu0 0.0
    %69 = vmatpush1.msra.mxu0 0.0
    %70 = vmatprep.subr.mxu0 0.0
    %71 = vmatpush1.msra.mxu0 0.0
    %72 = vmatprep.subr.mxu0 0.0
    %73 = vmatpush1.msra.mxu0 0.0
    %74 = vmatprep.subr.mxu0 0.0
    %75 = vmatpush1.msra.mxu0 0.0
    %76 = vmatprep.subr.mxu0 0.0
    %77 = vmatpush1.msra.mxu0 0.0
    %78 = vmatprep.subr.mxu0 0.0
    %79 = vmatpush1.msra.mxu0 0.0
    %80 = vmatprep.subr.mxu0 0.0
    %81 = vmatpush1.msra.mxu0 0.0
    %82 = vmatprep.subr.mxu0 0.0
    %83 = vmatpush1.msra.mxu0 0.0
    %84 = vmatprep.subr.mxu0 0.0
    %85 = vmatpush1.msra.mxu0 0.0
    %86 = vmatprep.subr.mxu0 0.0
    %87 = vmatpush1.msra.mxu0 0.0
    %88 = vmatprep.subr.mxu0 0.0
    %89 = vmatpush1.msra.mxu0 0.0
    %90 = vmatprep.subr.mxu0 0.0
    %91 = vmatpush1.msra.mxu0 0.0
    %92 = vmatprep.subr.mxu0 0.0
    %93 = vmatpush1.msra.mxu0 0.0
    %94 = vmatprep.subr.mxu0 0.0
    %95 = vmatpush1.msra.mxu0 0.0
    %96 = vmatprep.subr.mxu0 0.0
    %97 = vmatpush1.msra.mxu0 0.0
    %98 = vmatprep.subr.mxu0 0.0
    %99 = vmatpush1.msra.mxu0 0.0
    %100 = vmatprep.subr.mxu0 0.0
    %101 = vmatpush1.msra.mxu0 0.0
    %102 = vmatprep.subr.mxu0 0.0
    %103 = vmatpush1.msra.mxu0 0.0
    %104 = vmatprep.subr.mxu0 0.0
    %105 = vmatpush1.msra.mxu0 0.0
    %106 = vmatprep.subr.mxu0 0.0
    %107 = vmatpush1.msra.mxu0 0.0
    %108 = vmatprep.subr.mxu0 0.0
    %109 = vmatpush1.msra.mxu0 0.0
    %110 = vmatprep.subr.mxu0 0.0
    %111 = vmatpush1.msra.mxu0 0.0
    %112 = vmatprep.subr.mxu0 0.0
    %113 = vmatpush1.msra.mxu0 0.0
    %114 = vmatprep.subr.mxu0 0.0
    %115 = vmatpush1.msra.mxu0 0.0
    %116 = vmatprep.subr.mxu0 0.0
    %117 = vmatpush1.msra.mxu0 0.0
    %118 = vmatprep.subr.mxu0 0.0
    %119 = vmatpush1.msra.mxu0 0.0
    %120 = vmatprep.subr.mxu0 0.0
    %121 = vmatpush1.msra.mxu0 0.0
    %122 = vmatprep.subr.mxu0 0.0
    %123 = vmatpush1.msra.mxu0 0.0
    %124 = vmatprep.subr.mxu0 0.0
    %125 = vmatpush1.msra.mxu0 0.0
    %126 = vmatprep.mubr.f32.mxu0 0.0
    %127 = vmatmul.mubr.f32.gmra.mrb[0].mxu0 %v39
    %v128 = vpop.f32.mrb[0].mxu0
    %v129 = vadd.f32 %v36, %v128
    %v130 = vpop.f32.mrb[0].mxu0
    %131 = vmatprep.mubr.f32.mxu0 0.0
    %132 = vmatmul.mubr.f32.gmra.mrb[0].mxu0 %v42
    %v133 = vpop.f32.mrb[0].mxu0
    %v134 = vadd.f32 %v36, %v133
    %v135 = vpop.f32.mrb[0].mxu0
    %136 = vmatprep.mubr.f32.mxu0 0.0
    %137 = vmatmul.mubr.f32.gmra.mrb[0].mxu0 %v45
    %v138 = vpop.f32.mrb[0].mxu0
    %v139 = vadd.f32 %v36, %v138
    %v140 = vpop.f32.mrb[0].mxu0
    %141 = vmatprep.mubr.f32.mxu0 0.0
    %142 = vmatmul.mubr.f32.gmra.mrb[0].mxu0 %v48
    %v143 = vpop.f32.mrb[0].mxu0
    %v144 = vadd.f32 %v36, %v143
    %v145 = vpop.f32.mrb[0].mxu0
    %146 = vmatprep.mubr.f32.mxu0 0.0
    %147 = vmatmul.mubr.f32.gmra.mrb[0].mxu0 %v51
    %v148 = vpop.f32.mrb[0].mxu0
    %v149 = vadd.f32 %v36, %v148
    %v150 = vpop.f32.mrb[0].mxu0
    %151 = vmatprep.mubr.f32.mxu0 0.0
    %152 = vmatmul.mubr.f32.gmra.mrb[0].mxu0 %v54
    %v153 = vpop.f32.mrb[0].mxu0
    %v154 = vadd.f32 %v36, %v153
    %v155 = vpop.f32.mrb[0].mxu0
    %156 = vmatprep.mubr.f32.mxu0 0.0
    %157 = vmatmul.mubr.f32.gmra.mrb[0].mxu0 %v57
    %v158 = vpop.f32.mrb[0].mxu0
    %v159 = vadd.f32 %v36, %v158
    %v160 = vpop.f32.mrb[0].mxu0
    %161 = vmatprep.mubr.f32.mxu0 0.0
    %162 = vmatmul.mubr.f32.gmra.mrb[0].mxu0 %v60
    %v163 = vpop.f32.mrb[0].mxu0
    %v164 = vadd.f32 %v36, %v163
    %v165 = vpop.f32.mrb[0].mxu0
    %166 = vdwg.mxu0
    %v167 = vld [vmem:[%s1 + $0x20] sm:$0x1]
    %v168 = vlaneseq
    %v169 = vshrl.u32 %v168, 7
    %v170 = vsub.s32 0, %v169
    %v171 = vrot.slane %v167, %v170
    %v172 = vmul.f32 %v129, %v171
    %v173 = vmul.f32 %v134, %v171
    %v174 = vmul.f32 %v139, %v171
    %v175 = vmul.f32 %v144, %v171
    %v176 = vmul.f32 %v149, %v171
    %v177 = vmul.f32 %v154, %v171
    %v178 = vmul.f32 %v159, %v171
    %v179 = vmul.f32 %v164, %v171
    %v180 = vld [vmem:[%s1 + $0x38] sm:$0xff]
    %v181 = vld [vmem:[%s1 + $0x40] sm:$0xff]
    %v182 = vld [vmem:[%s1 + $0x48] sm:$0xff]
    %v183 = vld [vmem:[%s1 + $0x50] sm:$0xff]
    %vm184 = vcmask 261120
    %v186 = vsel %vm184, %v172, 0
    %v189 = vsel %vm184, %v173, 0
    %v192 = vsel %vm184, %v174, 0
    %v195 = vsel %vm184, %v175, 0
    %v198 = vsel %vm184, %v176, 0
    %v201 = vsel %vm184, %v177, 0
    %v204 = vsel %vm184, %v178, 0
    %v207 = vsel %vm184, %v179, 0
    %209 = vmatprep.subr.mxu0 0.0
    %210 = vmatpush1.msra.mxu0 %v180
    %211 = vmatprep.subr.mxu0 0.0
    %212 = vmatpush1.msra.mxu0 %v181
    %213 = vmatprep.subr.mxu0 0.0
    %214 = vmatpush1.msra.mxu0 %v182
    %215 = vmatprep.subr.mxu0 0.0
    %216 = vmatpush1.msra.mxu0 %v183
    %217 = vmatprep.subr.mxu0 0.0
    %218 = vmatpush1.msra.mxu0 0.0
    %219 = vmatprep.subr.mxu0 0.0
    %220 = vmatpush1.msra.mxu0 0.0
    %221 = vmatprep.subr.mxu0 0.0
    %222 = vmatpush1.msra.mxu0 0.0
    %223 = vmatprep.subr.mxu0 0.0
    %224 = vmatpush1.msra.mxu0 0.0
    %225 = vmatprep.subr.mxu0 0.0
    %226 = vmatpush1.msra.mxu0 0.0
    %227 = vmatprep.subr.mxu0 0.0
    %228 = vmatpush1.msra.mxu0 0.0
    %229 = vmatprep.subr.mxu0 0.0
    %230 = vmatpush1.msra.mxu0 0.0
    %231 = vmatprep.subr.mxu0 0.0
    %232 = vmatpush1.msra.mxu0 0.0
    %233 = vmatprep.subr.mxu0 0.0
    %234 = vmatpush1.msra.mxu0 0.0
    %235 = vmatprep.subr.mxu0 0.0
    %236 = vmatpush1.msra.mxu0 0.0
    %237 = vmatprep.subr.mxu0 0.0
    %238 = vmatpush1.msra.mxu0 0.0
    %239 = vmatprep.subr.mxu0 0.0
    %240 = vmatpush1.msra.mxu0 0.0
    %241 = vmatprep.subr.mxu0 0.0
    %242 = vmatpush1.msra.mxu0 0.0
    %243 = vmatprep.subr.mxu0 0.0
    %244 = vmatpush1.msra.mxu0 0.0
    %245 = vmatprep.subr.mxu0 0.0
    %246 = vmatpush1.msra.mxu0 0.0
    %247 = vmatprep.subr.mxu0 0.0
    %248 = vmatpush1.msra.mxu0 0.0
    %249 = vmatprep.subr.mxu0 0.0
    %250 = vmatpush1.msra.mxu0 0.0
    %251 = vmatprep.subr.mxu0 0.0
    %252 = vmatpush1.msra.mxu0 0.0
    %253 = vmatprep.subr.mxu0 0.0
    %254 = vmatpush1.msra.mxu0 0.0
    %255 = vmatprep.subr.mxu0 0.0
    %256 = vmatpush1.msra.mxu0 0.0
    %257 = vmatprep.subr.mxu0 0.0
    %258 = vmatpush1.msra.mxu0 0.0
    %259 = vmatprep.subr.mxu0 0.0
    %260 = vmatpush1.msra.mxu0 0.0
    %261 = vmatprep.subr.mxu0 0.0
    %262 = vmatpush1.msra.mxu0 0.0
    %263 = vmatprep.subr.mxu0 0.0
    %264 = vmatpush1.msra.mxu0 0.0
    %265 = vmatprep.subr.mxu0 0.0
    %266 = vmatpush1.msra.mxu0 0.0
    %267 = vmatprep.subr.mxu0 0.0
    %268 = vmatpush1.msra.mxu0 0.0
    %269 = vmatprep.subr.mxu0 0.0
    %270 = vmatpush1.msra.mxu0 0.0
    %271 = vmatprep.subr.mxu0 0.0
    %272 = vmatpush1.msra.mxu0 0.0
    %273 = vmatprep.mubr.f32.mxu0 0.0
    %274 = vmatmul.mubr.f32.gmra.mrb[0].mxu0 %v186
    %v275 = vpop.f32.mrb[0].mxu0
    %v276 = vadd.f32 0.0, %v275
    %v277 = vpop.f32.mrb[0].mxu0
    %278 = vmatprep.mubr.f32.mxu0 0.0
    %279 = vmatmul.mubr.f32.gmra.mrb[0].mxu0 %v189
    %v280 = vpop.f32.mrb[0].mxu0
    %v281 = vadd.f32 0.0, %v280
    %v282 = vpop.f32.mrb[0].mxu0
    %283 = vmatprep.mubr.f32.mxu0 0.0
    %284 = vmatmul.mubr.f32.gmra.mrb[0].mxu0 %v192
    %v285 = vpop.f32.mrb[0].mxu0
    %v286 = vadd.f32 0.0, %v285
    %v287 = vpop.f32.mrb[0].mxu0
    %288 = vmatprep.mubr.f32.mxu0 0.0
    %289 = vmatmul.mubr.f32.gmra.mrb[0].mxu0 %v195
    %v290 = vpop.f32.mrb[0].mxu0
    %v291 = vadd.f32 0.0, %v290
    %v292 = vpop.f32.mrb[0].mxu0
    %293 = vmatprep.mubr.f32.mxu0 0.0
    %294 = vmatmul.mubr.f32.gmra.mrb[0].mxu0 %v198
    %v295 = vpop.f32.mrb[0].mxu0
    %v296 = vadd.f32 0.0, %v295
    %v297 = vpop.f32.mrb[0].mxu0
    %298 = vmatprep.mubr.f32.mxu0 0.0
    %299 = vmatmul.mubr.f32.gmra.mrb[0].mxu0 %v201
    %v300 = vpop.f32.mrb[0].mxu0
    %v301 = vadd.f32 0.0, %v300
    %v302 = vpop.f32.mrb[0].mxu0
    %303 = vmatprep.mubr.f32.mxu0 0.0
    %304 = vmatmul.mubr.f32.gmra.mrb[0].mxu0 %v204
    %v305 = vpop.f32.mrb[0].mxu0
    %v306 = vadd.f32 0.0, %v305
    %v307 = vpop.f32.mrb[0].mxu0
    %308 = vmatprep.mubr.f32.mxu0 0.0
    %309 = vmatmul.mubr.f32.gmra.mrb[0].mxu0 %v207
    %v310 = vpop.f32.mrb[0].mxu0
    %v311 = vadd.f32 0.0, %v310
    %v312 = vpop.f32.mrb[0].mxu0
    %313 = vdwg.mxu0
    %v314 = vmul.f32 %v276, 0.35355338
    %v315 = vmul.f32 %v281, 0.35355338
    %v316 = vmul.f32 %v286, 0.35355338
    %v317 = vmul.f32 %v291, 0.35355338
    %v318 = vmul.f32 %v296, 0.35355338
    %v319 = vmul.f32 %v301, 0.35355338
    %v320 = vmul.f32 %v306, 0.35355338
    %v321 = vmul.f32 %v311, 0.35355338
    %v322 = vld [vmem:[%s1 + $0x30] sm:$0x1]
    %vm323 = vcmask 31744
    %v324 = vsel %vm323, %v314, -inf
    %v325 = vrot.slane %v324, 4
    %v326 = vmax.f32 %v324, %v325
    %v327 = vrot.slane %v326, 2
    %v328 = vmax.f32 %v326, %v327
    %v329 = vrot.slane %v328, 1
    %v330 = vmax.f32 %v328, %v329
    %v331 = vsel %vm323, %v315, -inf
    %v332 = vrot.slane %v331, 4
    %v333 = vmax.f32 %v331, %v332
    %v334 = vrot.slane %v333, 2
    %v335 = vmax.f32 %v333, %v334
    %v336 = vrot.slane %v335, 1
    %v337 = vmax.f32 %v335, %v336
    %v338 = vsel %vm323, %v316, -inf
    %v339 = vrot.slane %v338, 4
    %v340 = vmax.f32 %v338, %v339
    %v341 = vrot.slane %v340, 2
    %v342 = vmax.f32 %v340, %v341
    %v343 = vrot.slane %v342, 1
    %v344 = vmax.f32 %v342, %v343
    %v345 = vsel %vm323, %v317, -inf
    %v346 = vrot.slane %v345, 4
    %v347 = vmax.f32 %v345, %v346
    %v348 = vrot.slane %v347, 2
    %v349 = vmax.f32 %v347, %v348
    %v350 = vrot.slane %v349, 1
    %v351 = vmax.f32 %v349, %v350
    %v352 = vsel %vm323, %v318, -inf
    %v353 = vrot.slane %v352, 4
    %v354 = vmax.f32 %v352, %v353
    %v355 = vrot.slane %v354, 2
    %v356 = vmax.f32 %v354, %v355
    %v357 = vrot.slane %v356, 1
    %v358 = vmax.f32 %v356, %v357
    %v359 = vsel %vm323, %v319, -inf
    %v360 = vrot.slane %v359, 4
    %v361 = vmax.f32 %v359, %v360
    %v362 = vrot.slane %v361, 2
    %v363 = vmax.f32 %v361, %v362
    %v364 = vrot.slane %v363, 1
    %v365 = vmax.f32 %v363, %v364
    %v366 = vsel %vm323, %v320, -inf
    %v367 = vrot.slane %v366, 4
    %v368 = vmax.f32 %v366, %v367
    %v369 = vrot.slane %v368, 2
    %v370 = vmax.f32 %v368, %v369
    %v371 = vrot.slane %v370, 1
    %v372 = vmax.f32 %v370, %v371
    %v373 = vsel %vm323, %v321, -inf
    %v374 = vrot.slane %v373, 4
    %v375 = vmax.f32 %v373, %v374
    %v376 = vrot.slane %v375, 2
    %v377 = vmax.f32 %v375, %v376
    %v378 = vrot.slane %v377, 1
    %v379 = vmax.f32 %v377, %v378
    %v380 = vlaneseq
    %v381 = vshrl.u32 %v380, 7
    %v382 = vsub.s32 0, %v381
    %v383 = vrot.slane %v322, %v382
    %v384 = vmax.f32 %v330, %v383
    %v385 = vmax.f32 %v337, %v383
    %v386 = vmax.f32 %v344, %v383
    %v387 = vmax.f32 %v351, %v383
    %v388 = vmax.f32 %v358, %v383
    %v389 = vmax.f32 %v365, %v383
    %v390 = vmax.f32 %v372, %v383
    %v391 = vmax.f32 %v379, %v383
    %v392 = vlaneseq
    %v393 = vshrl.u32 %v392, 7
    %v394 = vsub.s32 0, %v393
    %v395 = vrot.slane %v384, %v394
    %v396 = vlaneseq
    %v397 = vshrl.u32 %v396, 7
    %v398 = vsub.s32 0, %v397
    %v399 = vrot.slane %v385, %v398
    %v400 = vlaneseq
    %v401 = vshrl.u32 %v400, 7
    %v402 = vsub.s32 0, %v401
    %v403 = vrot.slane %v386, %v402
    %v404 = vlaneseq
    %v405 = vshrl.u32 %v404, 7
    %v406 = vsub.s32 0, %v405
    %v407 = vrot.slane %v387, %v406
    %v408 = vlaneseq
    %v409 = vshrl.u32 %v408, 7
    %v410 = vsub.s32 0, %v409
    %v411 = vrot.slane %v388, %v410
    %v412 = vlaneseq
    %v413 = vshrl.u32 %v412, 7
    %v414 = vsub.s32 0, %v413
    %v415 = vrot.slane %v389, %v414
    %v416 = vlaneseq
    %v417 = vshrl.u32 %v416, 7
    %v418 = vsub.s32 0, %v417
    %v419 = vrot.slane %v390, %v418
    %v420 = vlaneseq
    %v421 = vshrl.u32 %v420, 7
    %v422 = vsub.s32 0, %v421
    %v423 = vrot.slane %v391, %v422
    %v424 = vsub.f32 %v314, %v395
    %v425 = vsub.f32 %v315, %v399
    %v426 = vsub.f32 %v316, %v403
    %v427 = vsub.f32 %v317, %v407
    %v428 = vsub.f32 %v318, %v411
    %v429 = vsub.f32 %v319, %v415
    %v430 = vsub.f32 %v320, %v419
    %v431 = vsub.f32 %v321, %v423
    %v432 = vmul.f32 %v424, 1.442695
    %v433 = vpow.pop %v432
    %v434 = vmul.f32 %v425, 1.442695
    %v435 = vpow.pop %v434
    %v436 = vmul.f32 %v426, 1.442695
    %v437 = vpow.pop %v436
    %v438 = vmul.f32 %v427, 1.442695
    %v439 = vpow.pop %v438
    %v440 = vmul.f32 %v428, 1.442695
    %v441 = vpow.pop %v440
    %v442 = vmul.f32 %v429, 1.442695
    %v443 = vpow.pop %v442
    %v444 = vmul.f32 %v430, 1.442695
    %v445 = vpow.pop %v444
    %v446 = vmul.f32 %v431, 1.442695
    %v447 = vpow.pop %v446
    %v456 = vrot.slane %v385, 7
    %vm457 = vcmask 1041409
    %v458 = vsel %vm457, %v456, %v384
    %v459 = vrot.slane %v386, 6
    %vm460 = vcmask 1042434
    %v461 = vsel %vm460, %v459, %v458
    %v462 = vrot.slane %v387, 5
    %vm463 = vcmask 1043459
    %v464 = vsel %vm463, %v462, %v461
    %v465 = vrot.slane %v388, 4
    %vm466 = vcmask 1044484
    %v467 = vsel %vm466, %v465, %v464
    %v468 = vrot.slane %v389, 3
    %vm469 = vcmask 1045509
    %v470 = vsel %vm469, %v468, %v467
    %v471 = vrot.slane %v390, 2
    %vm472 = vcmask 1046534
    %v473 = vsel %vm472, %v471, %v470
    %v474 = vrot.slane %v391, 1
    %vm475 = vcmask 1047559
    %v476 = vsel %vm475, %v474, %v473
    %v478 = vsub.f32 %v383, %v476
    %v479 = vmul.f32 %v478, 1.442695
    %v480 = vpow.pop %v479
    %v481 = vld [vmem:[%s1 + $0x60] sm:$0xff]
    %vm482 = vcmask 523264
    %v484 = vsel %vm482, %v481, 0
    %486 = vmatprep.subr.mxu0 0.0
    %487 = vmatpush1.msra.mxu0 %v433
    %488 = vmatprep.subr.mxu0 0.0
    %489 = vmatpush1.msra.mxu0 %v435
    %490 = vmatprep.subr.mxu0 0.0
    %491 = vmatpush1.msra.mxu0 %v437
    %492 = vmatprep.subr.mxu0 0.0
    %493 = vmatpush1.msra.mxu0 %v439
    %494 = vmatprep.subr.mxu0 0.0
    %495 = vmatpush1.msra.mxu0 %v441
    %496 = vmatprep.subr.mxu0 0.0
    %497 = vmatpush1.msra.mxu0 %v443
    %498 = vmatprep.subr.mxu0 0.0
    %499 = vmatpush1.msra.mxu0 %v445
    %500 = vmatprep.subr.mxu0 0.0
    %501 = vmatpush1.msra.mxu0 %v447
    %502 = vmatprep.subr.mxu0 0.0
    %503 = vmatpush1.msra.mxu0 0.0
    %504 = vmatprep.subr.mxu0 0.0
    %505 = vmatpush1.msra.mxu0 0.0
    %506 = vmatprep.subr.mxu0 0.0
    %507 = vmatpush1.msra.mxu0 0.0
    %508 = vmatprep.subr.mxu0 0.0
    %509 = vmatpush1.msra.mxu0 0.0
    %510 = vmatprep.subr.mxu0 0.0
    %511 = vmatpush1.msra.mxu0 0.0
    %512 = vmatprep.subr.mxu0 0.0
    %513 = vmatpush1.msra.mxu0 0.0
    %514 = vmatprep.subr.mxu0 0.0
    %515 = vmatpush1.msra.mxu0 0.0
    %516 = vmatprep.subr.mxu0 0.0
    %517 = vmatpush1.msra.mxu0 0.0
    %518 = vmatprep.subr.mxu0 0.0
    %519 = vmatpush1.msra.mxu0 0.0
    %520 = vmatprep.subr.mxu0 0.0
    %521 = vmatpush1.msra.mxu0 0.0
    %522 = vmatprep.subr.mxu0 0.0
    %523 = vmatpush1.msra.mxu0 0.0
    %524 = vmatprep.subr.mxu0 0.0
    %525 = vmatpush1.msra.mxu0 0.0
    %526 = vmatprep.subr.mxu0 0.0
    %527 = vmatpush1.msra.mxu0 0.0
    %528 = vmatprep.subr.mxu0 0.0
    %529 = vmatpush1.msra.mxu0 0.0
    %530 = vmatprep.subr.mxu0 0.0
    %531 = vmatpush1.msra.mxu0 0.0
    %532 = vmatprep.subr.mxu0 0.0
    %533 = vmatpush1.msra.mxu0 0.0
    %534 = vmatprep.subr.mxu0 0.0
    %535 = vmatpush1.msra.mxu0 0.0
    %536 = vmatprep.subr.mxu0 0.0
    %537 = vmatpush1.msra.mxu0 0.0
    %538 = vmatprep.subr.mxu0 0.0
    %539 = vmatpush1.msra.mxu0 0.0
    %540 = vmatprep.subr.mxu0 0.0
    %541 = vmatpush1.msra.mxu0 0.0
    %542 = vmatprep.subr.mxu0 0.0
    %543 = vmatpush1.msra.mxu0 0.0
    %544 = vmatprep.subr.mxu0 0.0
    %545 = vmatpush1.msra.mxu0 0.0
    %546 = vmatprep.subr.mxu0 0.0
    %547 = vmatpush1.msra.mxu0 0.0
    %548 = vmatprep.subr.mxu0 0.0
    %549 = vmatpush1.msra.mxu0 0.0
    %550 = vmatprep.mubr.f32.mxu0 0.0
    %551 = vmatmul.mubr.f32.gmra.mrb[0].mxu0 %v484
    %v552 = vpop.f32.mrb[0].mxu0
    %v553 = vadd.f32 %v480, %v552
    %v554 = vpop.f32.mrb[0].mxu0
    %555 = vdwg.mxu0
    %v556 = vld [vmem:[%s1 + $0x58] sm:$0xf]
    %v558 = vsel %vm323, %v433, 0
    %v561 = vsel %vm323, %v435, 0
    %v564 = vsel %vm323, %v437, 0
    %v567 = vsel %vm323, %v439, 0
    %v570 = vsel %vm323, %v441, 0
    %v573 = vsel %vm323, %v443, 0
    %v576 = vsel %vm323, %v445, 0
    %v579 = vsel %vm323, %v447, 0
    %vm581 = vcmask 1043456
    %v583 = vsel %vm581, %v556, 0
    %585 = vmatprep.subr.mxu0 0.0
    %586 = vmatpush1.msra.mxu0 %v583
    %587 = vmatprep.subr.mxu0 0.0
    %588 = vmatpush1.msra.mxu0 0.0
    %589 = vmatprep.subr.mxu0 0.0
    %590 = vmatpush1.msra.mxu0 0.0
    %591 = vmatprep.subr.mxu0 0.0
    %592 = vmatpush1.msra.mxu0 0.0
    %593 = vmatprep.subr.mxu0 0.0
    %594 = vmatpush1.msra.mxu0 0.0
    %595 = vmatprep.subr.mxu0 0.0
    %596 = vmatpush1.msra.mxu0 0.0
    %597 = vmatprep.subr.mxu0 0.0
    %598 = vmatpush1.msra.mxu0 0.0
    %599 = vmatprep.subr.mxu0 0.0
    %600 = vmatpush1.msra.mxu0 0.0
    %601 = vmatprep.subr.mxu0 0.0
    %602 = vmatpush1.msra.mxu0 0.0
    %603 = vmatprep.subr.mxu0 0.0
    %604 = vmatpush1.msra.mxu0 0.0
    %605 = vmatprep.subr.mxu0 0.0
    %606 = vmatpush1.msra.mxu0 0.0
    %607 = vmatprep.subr.mxu0 0.0
    %608 = vmatpush1.msra.mxu0 0.0
    %609 = vmatprep.subr.mxu0 0.0
    %610 = vmatpush1.msra.mxu0 0.0
    %611 = vmatprep.subr.mxu0 0.0
    %612 = vmatpush1.msra.mxu0 0.0
    %613 = vmatprep.subr.mxu0 0.0
    %614 = vmatpush1.msra.mxu0 0.0
    %615 = vmatprep.subr.mxu0 0.0
    %616 = vmatpush1.msra.mxu0 0.0
    %617 = vmatprep.subr.mxu0 0.0
    %618 = vmatpush1.msra.mxu0 0.0
    %619 = vmatprep.subr.mxu0 0.0
    %620 = vmatpush1.msra.mxu0 0.0
    %621 = vmatprep.subr.mxu0 0.0
    %622 = vmatpush1.msra.mxu0 0.0
    %623 = vmatprep.subr.mxu0 0.0
    %624 = vmatpush1.msra.mxu0 0.0
    %625 = vmatprep.subr.mxu0 0.0
    %626 = vmatpush1.msra.mxu0 0.0
    %627 = vmatprep.subr.mxu0 0.0
    %628 = vmatpush1.msra.mxu0 0.0
    %629 = vmatprep.subr.mxu0 0.0
    %630 = vmatpush1.msra.mxu0 0.0
    %631 = vmatprep.subr.mxu0 0.0
    %632 = vmatpush1.msra.mxu0 0.0
    %633 = vmatprep.subr.mxu0 0.0
    %634 = vmatpush1.msra.mxu0 0.0
    %635 = vmatprep.subr.mxu0 0.0
    %636 = vmatpush1.msra.mxu0 0.0
    %637 = vmatprep.subr.mxu0 0.0
    %638 = vmatpush1.msra.mxu0 0.0
    %639 = vmatprep.subr.mxu0 0.0
    %640 = vmatpush1.msra.mxu0 0.0
    %641 = vmatprep.subr.mxu0 0.0
    %642 = vmatpush1.msra.mxu0 0.0
    %643 = vmatprep.subr.mxu0 0.0
    %644 = vmatpush1.msra.mxu0 0.0
    %645 = vmatprep.subr.mxu0 0.0
    %646 = vmatpush1.msra.mxu0 0.0
    %647 = vmatprep.subr.mxu0 0.0
    %648 = vmatpush1.msra.mxu0 0.0
    %649 = vmatprep.mubr.f32.mxu0 0.0
    %650 = vmatmul.mubr.f32.gmra.mrb[0].mxu0 %v558
    %v651 = vpop.f32.mrb[0].mxu0
    %v652 = vadd.f32 0.0, %v651
    %v653 = vpop.f32.mrb[0].mxu0
    %654 = vmatprep.mubr.f32.mxu0 0.0
    %655 = vmatmul.mubr.f32.gmra.mrb[0].mxu0 %v561
    %v656 = vpop.f32.mrb[0].mxu0
    %v657 = vadd.f32 0.0, %v656
    %v658 = vpop.f32.mrb[0].mxu0
    %659 = vmatprep.mubr.f32.mxu0 0.0
    %660 = vmatmul.mubr.f32.gmra.mrb[0].mxu0 %v564
    %v661 = vpop.f32.mrb[0].mxu0
    %v662 = vadd.f32 0.0, %v661
    %v663 = vpop.f32.mrb[0].mxu0
    %664 = vmatprep.mubr.f32.mxu0 0.0
    %665 = vmatmul.mubr.f32.gmra.mrb[0].mxu0 %v567
    %v666 = vpop.f32.mrb[0].mxu0
    %v667 = vadd.f32 0.0, %v666
    %v668 = vpop.f32.mrb[0].mxu0
    %669 = vmatprep.mubr.f32.mxu0 0.0
    %670 = vmatmul.mubr.f32.gmra.mrb[0].mxu0 %v570
    %v671 = vpop.f32.mrb[0].mxu0
    %v672 = vadd.f32 0.0, %v671
    %v673 = vpop.f32.mrb[0].mxu0
    %674 = vmatprep.mubr.f32.mxu0 0.0
    %675 = vmatmul.mubr.f32.gmra.mrb[0].mxu0 %v573
    %v676 = vpop.f32.mrb[0].mxu0
    %v677 = vadd.f32 0.0, %v676
    %v678 = vpop.f32.mrb[0].mxu0
    %679 = vmatprep.mubr.f32.mxu0 0.0
    %680 = vmatmul.mubr.f32.gmra.mrb[0].mxu0 %v576
    %v681 = vpop.f32.mrb[0].mxu0
    %v682 = vadd.f32 0.0, %v681
    %v683 = vpop.f32.mrb[0].mxu0
    %684 = vmatprep.mubr.f32.mxu0 0.0
    %685 = vmatmul.mubr.f32.gmra.mrb[0].mxu0 %v579
    %v686 = vpop.f32.mrb[0].mxu0
    %v687 = vadd.f32 0.0, %v686
    %v688 = vpop.f32.mrb[0].mxu0
    %689 = vdwg.mxu0
    %698 = vrot.lane.b32.xlu0 %v129, 96
    %v699 = vpop.permute.xlu0 %698
    %700 = vrot.lane.b32.xlu0 %v134, 96
    %v701 = vpop.permute.xlu0 %700
    %702 = vrot.lane.b32.xlu0 %v139, 96
    %v703 = vpop.permute.xlu0 %702
    %704 = vrot.lane.b32.xlu0 %v144, 96
    %v705 = vpop.permute.xlu0 %704
    %706 = vrot.lane.b32.xlu0 %v149, 96
    %v707 = vpop.permute.xlu0 %706
    %708 = vrot.lane.b32.xlu0 %v154, 96
    %v709 = vpop.permute.xlu0 %708
    %710 = vrot.lane.b32.xlu0 %v159, 96
    %v711 = vpop.permute.xlu0 %710
    %712 = vrot.lane.b32.xlu0 %v164, 96
    %v713 = vpop.permute.xlu0 %712
    %v722 = vmul.f32 %v652, %v699
    %v723 = vmul.f32 %v657, %v701
    %v724 = vmul.f32 %v662, %v703
    %v725 = vmul.f32 %v667, %v705
    %v726 = vmul.f32 %v672, %v707
    %v727 = vmul.f32 %v677, %v709
    %v728 = vmul.f32 %v682, %v711
    %v729 = vmul.f32 %v687, %v713
    %v731 = vsel %vm323, %v480, 0
    %733 = vmatprep.subr.mxu0 0.0
    %734 = vmatpush1.msra.mxu0 %v583
    %735 = vmatprep.subr.mxu0 0.0
    %736 = vmatpush1.msra.mxu0 0.0
    %737 = vmatprep.subr.mxu0 0.0
    %738 = vmatpush1.msra.mxu0 0.0
    %739 = vmatprep.subr.mxu0 0.0
    %740 = vmatpush1.msra.mxu0 0.0
    %741 = vmatprep.subr.mxu0 0.0
    %742 = vmatpush1.msra.mxu0 0.0
    %743 = vmatprep.subr.mxu0 0.0
    %744 = vmatpush1.msra.mxu0 0.0
    %745 = vmatprep.subr.mxu0 0.0
    %746 = vmatpush1.msra.mxu0 0.0
    %747 = vmatprep.subr.mxu0 0.0
    %748 = vmatpush1.msra.mxu0 0.0
    %749 = vmatprep.subr.mxu0 0.0
    %750 = vmatpush1.msra.mxu0 0.0
    %751 = vmatprep.subr.mxu0 0.0
    %752 = vmatpush1.msra.mxu0 0.0
    %753 = vmatprep.subr.mxu0 0.0
    %754 = vmatpush1.msra.mxu0 0.0
    %755 = vmatprep.subr.mxu0 0.0
    %756 = vmatpush1.msra.mxu0 0.0
    %757 = vmatprep.subr.mxu0 0.0
    %758 = vmatpush1.msra.mxu0 0.0
    %759 = vmatprep.subr.mxu0 0.0
    %760 = vmatpush1.msra.mxu0 0.0
    %761 = vmatprep.subr.mxu0 0.0
    %762 = vmatpush1.msra.mxu0 0.0
    %763 = vmatprep.subr.mxu0 0.0
    %764 = vmatpush1.msra.mxu0 0.0
    %765 = vmatprep.subr.mxu0 0.0
    %766 = vmatpush1.msra.mxu0 0.0
    %767 = vmatprep.subr.mxu0 0.0
    %768 = vmatpush1.msra.mxu0 0.0
    %769 = vmatprep.subr.mxu0 0.0
    %770 = vmatpush1.msra.mxu0 0.0
    %771 = vmatprep.subr.mxu0 0.0
    %772 = vmatpush1.msra.mxu0 0.0
    %773 = vmatprep.subr.mxu0 0.0
    %774 = vmatpush1.msra.mxu0 0.0
    %775 = vmatprep.subr.mxu0 0.0
    %776 = vmatpush1.msra.mxu0 0.0
    %777 = vmatprep.subr.mxu0 0.0
    %778 = vmatpush1.msra.mxu0 0.0
    %779 = vmatprep.subr.mxu0 0.0
    %780 = vmatpush1.msra.mxu0 0.0
    %781 = vmatprep.subr.mxu0 0.0
    %782 = vmatpush1.msra.mxu0 0.0
    %783 = vmatprep.subr.mxu0 0.0
    %784 = vmatpush1.msra.mxu0 0.0
    %785 = vmatprep.subr.mxu0 0.0
    %786 = vmatpush1.msra.mxu0 0.0
    %787 = vmatprep.subr.mxu0 0.0
    %788 = vmatpush1.msra.mxu0 0.0
    %789 = vmatprep.subr.mxu0 0.0
    %790 = vmatpush1.msra.mxu0 0.0
    %791 = vmatprep.subr.mxu0 0.0
    %792 = vmatpush1.msra.mxu0 0.0
    %793 = vmatprep.subr.mxu0 0.0
    %794 = vmatpush1.msra.mxu0 0.0
    %795 = vmatprep.subr.mxu0 0.0
    %796 = vmatpush1.msra.mxu0 0.0
    %797 = vmatprep.mubr.f32.mxu0 0.0
    %798 = vmatmul.mubr.f32.gmra.mrb[0].mxu0 %v731
    %v799 = vpop.f32.mrb[0].mxu0
    %v800 = vadd.f32 0.0, %v799
    %v801 = vpop.f32.mrb[0].mxu0
    %802 = vdwg.mxu0
    %v803 = vld [vmem:[%s1 + $0x28] sm:$0x1]
    %v804 = vlaneseq
    %v805 = vshrl.u32 %v804, 7
    %v806 = vsub.s32 0, %v805
    %v807 = vrot.slane %v803, %v806
    %v808 = vmul.f32 %v800, %v807
    %809 = vmatprep.subr.mxu0 0.0
    %810 = vmatpush1.msra.mxu0 %v722
    %811 = vmatprep.subr.mxu0 0.0
    %812 = vmatpush1.msra.mxu0 %v723
    %813 = vmatprep.subr.mxu0 0.0
    %814 = vmatpush1.msra.mxu0 %v724
    %815 = vmatprep.subr.mxu0 0.0
    %816 = vmatpush1.msra.mxu0 %v725
    %817 = vmatprep.subr.mxu0 0.0
    %818 = vmatpush1.msra.mxu0 %v726
    %819 = vmatprep.subr.mxu0 0.0
    %820 = vmatpush1.msra.mxu0 %v727
    %821 = vmatprep.subr.mxu0 0.0
    %822 = vmatpush1.msra.mxu0 %v728
    %823 = vmatprep.subr.mxu0 0.0
    %824 = vmatpush1.msra.mxu0 %v729
    %825 = vmatprep.subr.mxu0 0.0
    %826 = vmatpush1.msra.mxu0 0.0
    %827 = vmatprep.subr.mxu0 0.0
    %828 = vmatpush1.msra.mxu0 0.0
    %829 = vmatprep.subr.mxu0 0.0
    %830 = vmatpush1.msra.mxu0 0.0
    %831 = vmatprep.subr.mxu0 0.0
    %832 = vmatpush1.msra.mxu0 0.0
    %833 = vmatprep.subr.mxu0 0.0
    %834 = vmatpush1.msra.mxu0 0.0
    %835 = vmatprep.subr.mxu0 0.0
    %836 = vmatpush1.msra.mxu0 0.0
    %837 = vmatprep.subr.mxu0 0.0
    %838 = vmatpush1.msra.mxu0 0.0
    %839 = vmatprep.subr.mxu0 0.0
    %840 = vmatpush1.msra.mxu0 0.0
    %841 = vmatprep.subr.mxu0 0.0
    %842 = vmatpush1.msra.mxu0 0.0
    %843 = vmatprep.subr.mxu0 0.0
    %844 = vmatpush1.msra.mxu0 0.0
    %845 = vmatprep.subr.mxu0 0.0
    %846 = vmatpush1.msra.mxu0 0.0
    %847 = vmatprep.subr.mxu0 0.0
    %848 = vmatpush1.msra.mxu0 0.0
    %849 = vmatprep.subr.mxu0 0.0
    %850 = vmatpush1.msra.mxu0 0.0
    %851 = vmatprep.subr.mxu0 0.0
    %852 = vmatpush1.msra.mxu0 0.0
    %853 = vmatprep.subr.mxu0 0.0
    %854 = vmatpush1.msra.mxu0 0.0
    %855 = vmatprep.subr.mxu0 0.0
    %856 = vmatpush1.msra.mxu0 0.0
    %857 = vmatprep.subr.mxu0 0.0
    %858 = vmatpush1.msra.mxu0 0.0
    %859 = vmatprep.subr.mxu0 0.0
    %860 = vmatpush1.msra.mxu0 0.0
    %861 = vmatprep.subr.mxu0 0.0
    %862 = vmatpush1.msra.mxu0 0.0
    %863 = vmatprep.subr.mxu0 0.0
    %864 = vmatpush1.msra.mxu0 0.0
    %865 = vmatprep.subr.mxu0 0.0
    %866 = vmatpush1.msra.mxu0 0.0
    %867 = vmatprep.subr.mxu0 0.0
    %868 = vmatpush1.msra.mxu0 0.0
    %869 = vmatprep.subr.mxu0 0.0
    %870 = vmatpush1.msra.mxu0 0.0
    %871 = vmatprep.subr.mxu0 0.0
    %872 = vmatpush1.msra.mxu0 0.0
    %873 = vmatprep.mubr.f32.mxu0 0.0
    %874 = vmatmul.mubr.f32.gmra.mrb[0].mxu0 %v484
    %v875 = vpop.f32.mrb[0].mxu0
    %v876 = vadd.f32 %v808, %v875
    %v877 = vpop.f32.mrb[0].mxu0
    %878 = vdwg.mxu0
    %v880 = vsel %vm323, %v553, 0
    %882 = vmatprep.subr.mxu0 0.0
    %883 = vmatpush1.msra.mxu0 %v583
    %884 = vmatprep.subr.mxu0 0.0
    %885 = vmatpush1.msra.mxu0 0.0
    %886 = vmatprep.subr.mxu0 0.0
    %887 = vmatpush1.msra.mxu0 0.0
    %888 = vmatprep.subr.mxu0 0.0
    %889 = vmatpush1.msra.mxu0 0.0
    %890 = vmatprep.subr.mxu0 0.0
    %891 = vmatpush1.msra.mxu0 0.0
    %892 = vmatprep.subr.mxu0 0.0
    %893 = vmatpush1.msra.mxu0 0.0
    %894 = vmatprep.subr.mxu0 0.0
    %895 = vmatpush1.msra.mxu0 0.0
    %896 = vmatprep.subr.mxu0 0.0
    %897 = vmatpush1.msra.mxu0 0.0
    %898 = vmatprep.subr.mxu0 0.0
    %899 = vmatpush1.msra.mxu0 0.0
    %900 = vmatprep.subr.mxu0 0.0
    %901 = vmatpush1.msra.mxu0 0.0
    %902 = vmatprep.subr.mxu0 0.0
    %903 = vmatpush1.msra.mxu0 0.0
    %904 = vmatprep.subr.mxu0 0.0
    %905 = vmatpush1.msra.mxu0 0.0
    %906 = vmatprep.subr.mxu0 0.0
    %907 = vmatpush1.msra.mxu0 0.0
    %908 = vmatprep.subr.mxu0 0.0
    %909 = vmatpush1.msra.mxu0 0.0
    %910 = vmatprep.subr.mxu0 0.0
    %911 = vmatpush1.msra.mxu0 0.0
    %912 = vmatprep.subr.mxu0 0.0
    %913 = vmatpush1.msra.mxu0 0.0
    %914 = vmatprep.subr.mxu0 0.0
    %915 = vmatpush1.msra.mxu0 0.0
    %916 = vmatprep.subr.mxu0 0.0
    %917 = vmatpush1.msra.mxu0 0.0
    %918 = vmatprep.subr.mxu0 0.0
    %919 = vmatpush1.msra.mxu0 0.0
    %920 = vmatprep.subr.mxu0 0.0
    %921 = vmatpush1.msra.mxu0 0.0
    %922 = vmatprep.subr.mxu0 0.0
    %923 = vmatpush1.msra.mxu0 0.0
    %924 = vmatprep.subr.mxu0 0.0
    %925 = vmatpush1.msra.mxu0 0.0
    %926 = vmatprep.subr.mxu0 0.0
    %927 = vmatpush1.msra.mxu0 0.0
    %928 = vmatprep.subr.mxu0 0.0
    %929 = vmatpush1.msra.mxu0 0.0
    %930 = vmatprep.subr.mxu0 0.0
    %931 = vmatpush1.msra.mxu0 0.0
    %932 = vmatprep.subr.mxu0 0.0
    %933 = vmatpush1.msra.mxu0 0.0
    %934 = vmatprep.subr.mxu0 0.0
    %935 = vmatpush1.msra.mxu0 0.0
    %936 = vmatprep.subr.mxu0 0.0
    %937 = vmatpush1.msra.mxu0 0.0
    %938 = vmatprep.subr.mxu0 0.0
    %939 = vmatpush1.msra.mxu0 0.0
    %940 = vmatprep.subr.mxu0 0.0
    %941 = vmatpush1.msra.mxu0 0.0
    %942 = vmatprep.subr.mxu0 0.0
    %943 = vmatpush1.msra.mxu0 0.0
    %944 = vmatprep.subr.mxu0 0.0
    %945 = vmatpush1.msra.mxu0 0.0
    %946 = vmatprep.mubr.f32.mxu0 0.0
    %947 = vmatmul.mubr.f32.gmra.mrb[0].mxu0 %v880
    %v948 = vpop.f32.mrb[0].mxu0
    %v949 = vadd.f32 0.0, %v948
    %v950 = vpop.f32.mrb[0].mxu0
    %951 = vdwg.mxu0
    %v952 = vrcp.pop %v949
    %v953 = vmul.f32 %v876, %v952
    %v954 = vld [vmem:[%s1 + $0x68] sm:$0xff]
    %v955 = vld [vmem:[%s1 + $0x70] sm:$0xff]
    %v956 = vld [vmem:[%s1 + $0x78] sm:$0xff]
    %v957 = vld [vmem:[%s1 + $0x80] sm:$0xff]
    %v958 = vld [vmem:[%s1 + $0x88] sm:$0x1]
    %v959 = vlaneseq
    %v960 = vshrl.u32 %v959, 7
    %v961 = vsub.s32 0, %v960
    %v962 = vrot.slane %v958, %v961
    %v964 = vsel %vm184, %v953, 0
    %966 = vmatprep.subr.mxu0 0.0
    %967 = vmatpush1.msra.mxu0 %v954
    %968 = vmatprep.subr.mxu0 0.0
    %969 = vmatpush1.msra.mxu0 %v955
    %970 = vmatprep.subr.mxu0 0.0
    %971 = vmatpush1.msra.mxu0 %v956
    %972 = vmatprep.subr.mxu0 0.0
    %973 = vmatpush1.msra.mxu0 %v957
    %974 = vmatprep.subr.mxu0 0.0
    %975 = vmatpush1.msra.mxu0 0.0
    %976 = vmatprep.subr.mxu0 0.0
    %977 = vmatpush1.msra.mxu0 0.0
    %978 = vmatprep.subr.mxu0 0.0
    %979 = vmatpush1.msra.mxu0 0.0
    %980 = vmatprep.subr.mxu0 0.0
    %981 = vmatpush1.msra.mxu0 0.0
    %982 = vmatprep.subr.mxu0 0.0
    %983 = vmatpush1.msra.mxu0 0.0
    %984 = vmatprep.subr.mxu0 0.0
    %985 = vmatpush1.msra.mxu0 0.0
    %986 = vmatprep.subr.mxu0 0.0
    %987 = vmatpush1.msra.mxu0 0.0
    %988 = vmatprep.subr.mxu0 0.0
    %989 = vmatpush1.msra.mxu0 0.0
    %990 = vmatprep.subr.mxu0 0.0
    %991 = vmatpush1.msra.mxu0 0.0
    %992 = vmatprep.subr.mxu0 0.0
    %993 = vmatpush1.msra.mxu0 0.0
    %994 = vmatprep.subr.mxu0 0.0
    %995 = vmatpush1.msra.mxu0 0.0
    %996 = vmatprep.subr.mxu0 0.0
    %997 = vmatpush1.msra.mxu0 0.0
    %998 = vmatprep.subr.mxu0 0.0
    %999 = vmatpush1.msra.mxu0 0.0
    %1000 = vmatprep.subr.mxu0 0.0
    %1001 = vmatpush1.msra.mxu0 0.0
    %1002 = vmatprep.subr.mxu0 0.0
    %1003 = vmatpush1.msra.mxu0 0.0
    %1004 = vmatprep.subr.mxu0 0.0
    %1005 = vmatpush1.msra.mxu0 0.0
    %1006 = vmatprep.subr.mxu0 0.0
    %1007 = vmatpush1.msra.mxu0 0.0
    %1008 = vmatprep.subr.mxu0 0.0
    %1009 = vmatpush1.msra.mxu0 0.0
    %1010 = vmatprep.subr.mxu0 0.0
    %1011 = vmatpush1.msra.mxu0 0.0
    %1012 = vmatprep.subr.mxu0 0.0
    %1013 = vmatpush1.msra.mxu0 0.0
    %1014 = vmatprep.subr.mxu0 0.0
    %1015 = vmatpush1.msra.mxu0 0.0
    %1016 = vmatprep.subr.mxu0 0.0
    %1017 = vmatpush1.msra.mxu0 0.0
    %1018 = vmatprep.subr.mxu0 0.0
    %1019 = vmatpush1.msra.mxu0 0.0
    %1020 = vmatprep.subr.mxu0 0.0
    %1021 = vmatpush1.msra.mxu0 0.0
    %1022 = vmatprep.subr.mxu0 0.0
    %1023 = vmatpush1.msra.mxu0 0.0
    %1024 = vmatprep.subr.mxu0 0.0
    %1025 = vmatpush1.msra.mxu0 0.0
    %1026 = vmatprep.subr.mxu0 0.0
    %1027 = vmatpush1.msra.mxu0 0.0
    %1028 = vmatprep.subr.mxu0 0.0
    %1029 = vmatpush1.msra.mxu0 0.0
    %1030 = vmatprep.mubr.f32.mxu0 0.0
    %1031 = vmatmul.mubr.f32.gmra.mrb[0].mxu0 %v964
    %v1032 = vpop.f32.mrb[0].mxu0
    %v1033 = vadd.f32 %v962, %v1032
    %v1034 = vpop.f32.mrb[0].mxu0
    %1035 = vdwg.mxu0
    %v1036 = vld [vmem:[%s1 + $0x18] sm:$0x1]
    %v1037 = vlaneseq
    %v1038 = vshrl.u32 %v1037, 7
    %v1039 = vsub.s32 0, %v1038
    %v1040 = vrot.slane %v1036, %v1039
    %v1041 = vadd.f32 %v1040, %v1033
    %v1042 = vld [vmem:[%s1 + $0x90] sm:$0x1]
    %v1043 = vld [vmem:[%s1 + $0x98] sm:$0x1]
    %v1044 = vsel %vm184, %v1041, 0.0
    %1045 = vadd.xlane.f32.xlu0 %v1044
    %v1046 = vpop.xlane.xlu0 %1045
    %v1047 = vrcp.pop 32.0
    %v1048 = vmul.f32 %v1046, %v1047
    %v1049 = vsub.f32 %v1041, %v1048
    %v1050 = vmul.f32 %v1049, %v1049
    %v1051 = vsel %vm184, %v1050, 0.0
    %1052 = vadd.xlane.f32.xlu0 %v1051
    %v1053 = vpop.xlane.xlu0 %1052
    %v1054 = vmul.f32 %v1053, %v1047
    %v1055 = vadd.f32 %v1054, 1e-05
    %v1056 = vrsqrt.pop %v1055
    %v1057 = vmul.f32 %v1049, %v1056
    %v1058 = vlaneseq
    %v1059 = vshrl.u32 %v1058, 7
    %v1060 = vsub.s32 0, %v1059
    %v1061 = vrot.slane %v1042, %v1060
    %v1062 = vmul.f32 %v1057, %v1061
    %v1063 = vlaneseq
    %v1064 = vshrl.u32 %v1063, 7
    %v1065 = vsub.s32 0, %v1064
    %v1066 = vrot.slane %v1043, %v1065
    %v1067 = vadd.f32 %v1062, %v1066
    %v1068 = vpack.c.bf16 %v1067, %v1067
    %v1069 = vld [vmem:[%s3] sm:$0xff]
    %v1070 = vld [vmem:[%s3 + $0x8] sm:$0xff]
    %v1071 = vld [vmem:[%s3 + $0x10] sm:$0xff]
    %v1072 = vld [vmem:[%s3 + $0x18] sm:$0xff]
    %v1073 = vld [vmem:[%s3 + $0x20] sm:$0xff]
    %v1074 = vld [vmem:[%s3 + $0x28] sm:$0xff]
    %v1075 = vld [vmem:[%s3 + $0x30] sm:$0xff]
    %v1076 = vld [vmem:[%s3 + $0x38] sm:$0xff]
    %v1077 = vld [vmem:[%s3 + $0x40] sm:$0xff]
    %v1078 = vld [vmem:[%s3 + $0x48] sm:$0xff]
    %v1079 = vld [vmem:[%s3 + $0x50] sm:$0xff]
    %v1080 = vld [vmem:[%s3 + $0x58] sm:$0xff]
    %v1081 = vld [vmem:[%s3 + $0x60] sm:$0xff]
    %v1082 = vld [vmem:[%s3 + $0x68] sm:$0xff]
    %v1083 = vld [vmem:[%s3 + $0x70] sm:$0xff]
    %v1084 = vld [vmem:[%s3 + $0x78] sm:$0xff]
    %v1085 = vld [vmem:[%s3 + $0x80] sm:$0xff]
    %v1086 = vld [vmem:[%s3 + $0x88] sm:$0xff]
    %v1087 = vld [vmem:[%s3 + $0x90] sm:$0xff]
    %v1088 = vld [vmem:[%s3 + $0x98] sm:$0xff]
    %v1089 = vld [vmem:[%s3 + $0xa0] sm:$0xff]
    %v1090 = vld [vmem:[%s3 + $0xa8] sm:$0xff]
    %v1091 = vld [vmem:[%s3 + $0xb0] sm:$0xff]
    %v1092 = vld [vmem:[%s3 + $0xb8] sm:$0xff]
    %v1093 = vld [vmem:[%s3 + $0xc0] sm:$0xff]
    %v1094 = vld [vmem:[%s3 + $0xc8] sm:$0xff]
    %v1095 = vld [vmem:[%s3 + $0xd0] sm:$0xff]
    %v1096 = vld [vmem:[%s3 + $0xd8] sm:$0xff]
    %v1097 = vld [vmem:[%s3 + $0xe0] sm:$0xff]
    %v1098 = vld [vmem:[%s3 + $0xe8] sm:$0xff]
    %v1099 = vld [vmem:[%s3 + $0xf0] sm:$0xff]
    %v1100 = vld [vmem:[%s3 + $0xf8] sm:$0xff]
    %v1101 = vld [vmem:[%s2] sm:$0xff]
    %v1102 = vld [vmem:[%s2 + $0x8] sm:$0xff]
    %v1105 = vlaneseq
    %v1106 = vshrl.u32 %v1105, 7
    %v1107 = vsub.s32 0, %v1106
    %v1108 = vrot.slane %v1101, %v1107
    %v1109 = vlaneseq
    %v1110 = vshrl.u32 %v1109, 7
    %v1111 = vsub.s32 1, %v1110
    %v1112 = vrot.slane %v1101, %v1111
    %v1113 = vlaneseq
    %v1114 = vshrl.u32 %v1113, 7
    %v1115 = vsub.s32 2, %v1114
    %v1116 = vrot.slane %v1101, %v1115
    %v1117 = vlaneseq
    %v1118 = vshrl.u32 %v1117, 7
    %v1119 = vsub.s32 3, %v1118
    %v1120 = vrot.slane %v1101, %v1119
    %v1121 = vlaneseq
    %v1122 = vshrl.u32 %v1121, 7
    %v1123 = vsub.s32 4, %v1122
    %v1124 = vrot.slane %v1101, %v1123
    %v1125 = vlaneseq
    %v1126 = vshrl.u32 %v1125, 7
    %v1127 = vsub.s32 5, %v1126
    %v1128 = vrot.slane %v1101, %v1127
    %v1129 = vlaneseq
    %v1130 = vshrl.u32 %v1129, 7
    %v1131 = vsub.s32 6, %v1130
    %v1132 = vrot.slane %v1101, %v1131
    %v1133 = vlaneseq
    %v1134 = vshrl.u32 %v1133, 7
    %v1135 = vsub.s32 7, %v1134
    %v1136 = vrot.slane %v1101, %v1135
    %v1137 = vlaneseq
    %v1138 = vshrl.u32 %v1137, 7
    %v1139 = vsub.s32 0, %v1138
    %v1140 = vrot.slane %v1102, %v1139
    %v1141 = vlaneseq
    %v1142 = vshrl.u32 %v1141, 7
    %v1143 = vsub.s32 1, %v1142
    %v1144 = vrot.slane %v1102, %v1143
    %v1145 = vlaneseq
    %v1146 = vshrl.u32 %v1145, 7
    %v1147 = vsub.s32 2, %v1146
    %v1148 = vrot.slane %v1102, %v1147
    %v1149 = vlaneseq
    %v1150 = vshrl.u32 %v1149, 7
    %v1151 = vsub.s32 3, %v1150
    %v1152 = vrot.slane %v1102, %v1151
    %v1153 = vlaneseq
    %v1154 = vshrl.u32 %v1153, 7
    %v1155 = vsub.s32 4, %v1154
    %v1156 = vrot.slane %v1102, %v1155
    %v1157 = vlaneseq
    %v1158 = vshrl.u32 %v1157, 7
    %v1159 = vsub.s32 5, %v1158
    %v1160 = vrot.slane %v1102, %v1159
    %v1161 = vlaneseq
    %v1162 = vshrl.u32 %v1161, 7
    %v1163 = vsub.s32 6, %v1162
    %v1164 = vrot.slane %v1102, %v1163
    %v1165 = vlaneseq
    %v1166 = vshrl.u32 %v1165, 7
    %v1167 = vsub.s32 7, %v1166
    %v1168 = vrot.slane %v1102, %v1167
    %v1217 = vunpack.c.l.b16 %v1069
    %v1218 = vunpack.c.h.b16 %v1069
    %v1219 = vunpack.c.l.b16 %v1070
    %v1220 = vunpack.c.h.b16 %v1070
    %v1221 = vunpack.c.l.b16 %v1071
    %v1222 = vunpack.c.h.b16 %v1071
    %v1223 = vunpack.c.l.b16 %v1072
    %v1224 = vunpack.c.h.b16 %v1072
    %v1225 = vunpack.c.l.b16 %v1073
    %v1226 = vunpack.c.h.b16 %v1073
    %v1227 = vunpack.c.l.b16 %v1074
    %v1228 = vunpack.c.h.b16 %v1074
    %v1229 = vunpack.c.l.b16 %v1075
    %v1230 = vunpack.c.h.b16 %v1075
    %v1231 = vunpack.c.l.b16 %v1076
    %v1232 = vunpack.c.h.b16 %v1076
    %v1233 = vunpack.c.l.b16 %v1077
    %v1234 = vunpack.c.h.b16 %v1077
    %v1235 = vunpack.c.l.b16 %v1078
    %v1236 = vunpack.c.h.b16 %v1078
    %v1237 = vunpack.c.l.b16 %v1079
    %v1238 = vunpack.c.h.b16 %v1079
    %v1239 = vunpack.c.l.b16 %v1080
    %v1240 = vunpack.c.h.b16 %v1080
    %v1241 = vunpack.c.l.b16 %v1081
    %v1242 = vunpack.c.h.b16 %v1081
    %v1243 = vunpack.c.l.b16 %v1082
    %v1244 = vunpack.c.h.b16 %v1082
    %v1245 = vunpack.c.l.b16 %v1083
    %v1246 = vunpack.c.h.b16 %v1083
    %v1247 = vunpack.c.l.b16 %v1084
    %v1248 = vunpack.c.h.b16 %v1084
    %v1249 = vunpack.c.l.b16 %v1085
    %v1250 = vunpack.c.h.b16 %v1085
    %v1251 = vunpack.c.l.b16 %v1086
    %v1252 = vunpack.c.h.b16 %v1086
    %v1253 = vunpack.c.l.b16 %v1087
    %v1254 = vunpack.c.h.b16 %v1087
    %v1255 = vunpack.c.l.b16 %v1088
    %v1256 = vunpack.c.h.b16 %v1088
    %v1257 = vunpack.c.l.b16 %v1089
    %v1258 = vunpack.c.h.b16 %v1089
    %v1259 = vunpack.c.l.b16 %v1090
    %v1260 = vunpack.c.h.b16 %v1090
    %v1261 = vunpack.c.l.b16 %v1091
    %v1262 = vunpack.c.h.b16 %v1091
    %v1263 = vunpack.c.l.b16 %v1092
    %v1264 = vunpack.c.h.b16 %v1092
    %v1265 = vunpack.c.l.b16 %v1093
    %v1266 = vunpack.c.h.b16 %v1093
    %v1267 = vunpack.c.l.b16 %v1094
    %v1268 = vunpack.c.h.b16 %v1094
    %v1269 = vunpack.c.l.b16 %v1095
    %v1270 = vunpack.c.h.b16 %v1095
    %v1271 = vunpack.c.l.b16 %v1096
    %v1272 = vunpack.c.h.b16 %v1096
    %v1273 = vunpack.c.l.b16 %v1097
    %v1274 = vunpack.c.h.b16 %v1097
    %v1275 = vunpack.c.l.b16 %v1098
    %v1276 = vunpack.c.h.b16 %v1098
    %v1277 = vunpack.c.l.b16 %v1099
    %v1278 = vunpack.c.h.b16 %v1099
    %v1279 = vunpack.c.l.b16 %v1100
    %v1280 = vunpack.c.h.b16 %v1100
    %v1281 = vpack.c.b16 %v1233, %v1217
    %v1282 = vpack.c.b16 %v1234, %v1218
    %v1283 = vpack.c.b16 %v1235, %v1219
    %v1284 = vpack.c.b16 %v1236, %v1220
    %v1285 = vpack.c.b16 %v1237, %v1221
    %v1286 = vpack.c.b16 %v1238, %v1222
    %v1287 = vpack.c.b16 %v1239, %v1223
    %v1288 = vpack.c.b16 %v1240, %v1224
    %v1289 = vpack.c.b16 %v1241, %v1225
    %v1290 = vpack.c.b16 %v1242, %v1226
    %v1291 = vpack.c.b16 %v1243, %v1227
    %v1292 = vpack.c.b16 %v1244, %v1228
    %v1293 = vpack.c.b16 %v1245, %v1229
    %v1294 = vpack.c.b16 %v1246, %v1230
    %v1295 = vpack.c.b16 %v1247, %v1231
    %v1296 = vpack.c.b16 %v1248, %v1232
    %v1297 = vpack.c.b16 %v1265, %v1249
    %v1298 = vpack.c.b16 %v1266, %v1250
    %v1299 = vpack.c.b16 %v1267, %v1251
    %v1300 = vpack.c.b16 %v1268, %v1252
    %v1301 = vpack.c.b16 %v1269, %v1253
    %v1302 = vpack.c.b16 %v1270, %v1254
    %v1303 = vpack.c.b16 %v1271, %v1255
    %v1304 = vpack.c.b16 %v1272, %v1256
    %v1305 = vpack.c.b16 %v1273, %v1257
    %v1306 = vpack.c.b16 %v1274, %v1258
    %v1307 = vpack.c.b16 %v1275, %v1259
    %v1308 = vpack.c.b16 %v1276, %v1260
    %v1309 = vpack.c.b16 %v1277, %v1261
    %v1310 = vpack.c.b16 %v1278, %v1262
    %v1311 = vpack.c.b16 %v1279, %v1263
    %v1312 = vpack.c.b16 %v1280, %v1264
    %v1346 = vsel %vm184, %v1068, 0
    %1348 = vmatprep.subr.bf16.mxu0 %v1282
    %1349 = vmatpush1.bf16.msra.mxu0 %v1281
    %1350 = vmatprep.subr.bf16.mxu0 %v1298
    %1351 = vmatpush1.bf16.msra.mxu0 %v1297
    %1352 = vmatprep.subr.bf16.mxu0 0
    %1353 = vmatpush1.bf16.msra.mxu0 0
    %1354 = vmatprep.subr.bf16.mxu0 0
    %1355 = vmatpush1.bf16.msra.mxu0 0
    %1356 = vmatprep.subr.bf16.mxu0 0
    %1357 = vmatpush1.bf16.msra.mxu0 0
    %1358 = vmatprep.subr.bf16.mxu0 0
    %1359 = vmatpush1.bf16.msra.mxu0 0
    %1360 = vmatprep.subr.bf16.mxu0 0
    %1361 = vmatpush1.bf16.msra.mxu0 0
    %1362 = vmatprep.subr.bf16.mxu0 0
    %1363 = vmatpush1.bf16.msra.mxu0 0
    %1364 = vmatprep.subr.bf16.mxu0 0
    %1365 = vmatpush1.bf16.msra.mxu0 0
    %1366 = vmatprep.subr.bf16.mxu0 0
    %1367 = vmatpush1.bf16.msra.mxu0 0
    %1368 = vmatprep.subr.bf16.mxu0 0
    %1369 = vmatpush1.bf16.msra.mxu0 0
    %1370 = vmatprep.subr.bf16.mxu0 0
    %1371 = vmatpush1.bf16.msra.mxu0 0
    %1372 = vmatprep.subr.bf16.mxu0 0
    %1373 = vmatpush1.bf16.msra.mxu0 0
    %1374 = vmatprep.subr.bf16.mxu0 0
    %1375 = vmatpush1.bf16.msra.mxu0 0
    %1376 = vmatprep.subr.bf16.mxu0 0
    %1377 = vmatpush1.bf16.msra.mxu0 0
    %1378 = vmatprep.subr.bf16.mxu0 0
    %1379 = vmatpush1.bf16.msra.mxu0 0
    %1380 = vmatprep.mubr.bf16.mxu0 0
    %1381 = vmatmul.mubr.bf16.gmra.mrb[0].mxu0 %v1346
    %v1382 = vpop.f32.mrb[0].mxu0
    %v1383 = vadd.f32 %v1108, %v1382
    %v1384 = vpop.f32.mrb[0].mxu0
    %v1385 = vadd.f32 %v1112, %v1384
    %v1386 = vpop.f32.mrb[0].mxu0
    %v1387 = vpop.f32.mrb[0].mxu0
    %1388 = vdwg.mxu0
    %1389 = vmatprep.subr.bf16.mxu0 %v1284
    %1390 = vmatpush1.bf16.msra.mxu0 %v1283
    %1391 = vmatprep.subr.bf16.mxu0 %v1300
    %1392 = vmatpush1.bf16.msra.mxu0 %v1299
    %1393 = vmatprep.subr.bf16.mxu0 0
    %1394 = vmatpush1.bf16.msra.mxu0 0
    %1395 = vmatprep.subr.bf16.mxu0 0
    %1396 = vmatpush1.bf16.msra.mxu0 0
    %1397 = vmatprep.subr.bf16.mxu0 0
    %1398 = vmatpush1.bf16.msra.mxu0 0
    %1399 = vmatprep.subr.bf16.mxu0 0
    %1400 = vmatpush1.bf16.msra.mxu0 0
    %1401 = vmatprep.subr.bf16.mxu0 0
    %1402 = vmatpush1.bf16.msra.mxu0 0
    %1403 = vmatprep.subr.bf16.mxu0 0
    %1404 = vmatpush1.bf16.msra.mxu0 0
    %1405 = vmatprep.subr.bf16.mxu0 0
    %1406 = vmatpush1.bf16.msra.mxu0 0
    %1407 = vmatprep.subr.bf16.mxu0 0
    %1408 = vmatpush1.bf16.msra.mxu0 0
    %1409 = vmatprep.subr.bf16.mxu0 0
    %1410 = vmatpush1.bf16.msra.mxu0 0
    %1411 = vmatprep.subr.bf16.mxu0 0
    %1412 = vmatpush1.bf16.msra.mxu0 0
    %1413 = vmatprep.subr.bf16.mxu0 0
    %1414 = vmatpush1.bf16.msra.mxu0 0
    %1415 = vmatprep.subr.bf16.mxu0 0
    %1416 = vmatpush1.bf16.msra.mxu0 0
    %1417 = vmatprep.subr.bf16.mxu0 0
    %1418 = vmatpush1.bf16.msra.mxu0 0
    %1419 = vmatprep.subr.bf16.mxu0 0
    %1420 = vmatpush1.bf16.msra.mxu0 0
    %1421 = vmatprep.mubr.bf16.mxu0 0
    %1422 = vmatmul.mubr.bf16.gmra.mrb[0].mxu0 %v1346
    %v1423 = vpop.f32.mrb[0].mxu0
    %v1424 = vadd.f32 %v1116, %v1423
    %v1425 = vpop.f32.mrb[0].mxu0
    %v1426 = vadd.f32 %v1120, %v1425
    %v1427 = vpop.f32.mrb[0].mxu0
    %v1428 = vpop.f32.mrb[0].mxu0
    %1429 = vdwg.mxu0
    %1430 = vmatprep.subr.bf16.mxu0 %v1286
    %1431 = vmatpush1.bf16.msra.mxu0 %v1285
    %1432 = vmatprep.subr.bf16.mxu0 %v1302
    %1433 = vmatpush1.bf16.msra.mxu0 %v1301
    %1434 = vmatprep.subr.bf16.mxu0 0
    %1435 = vmatpush1.bf16.msra.mxu0 0
    %1436 = vmatprep.subr.bf16.mxu0 0
    %1437 = vmatpush1.bf16.msra.mxu0 0
    %1438 = vmatprep.subr.bf16.mxu0 0
    %1439 = vmatpush1.bf16.msra.mxu0 0
    %1440 = vmatprep.subr.bf16.mxu0 0
    %1441 = vmatpush1.bf16.msra.mxu0 0
    %1442 = vmatprep.subr.bf16.mxu0 0
    %1443 = vmatpush1.bf16.msra.mxu0 0
    %1444 = vmatprep.subr.bf16.mxu0 0
    %1445 = vmatpush1.bf16.msra.mxu0 0
    %1446 = vmatprep.subr.bf16.mxu0 0
    %1447 = vmatpush1.bf16.msra.mxu0 0
    %1448 = vmatprep.subr.bf16.mxu0 0
    %1449 = vmatpush1.bf16.msra.mxu0 0
    %1450 = vmatprep.subr.bf16.mxu0 0
    %1451 = vmatpush1.bf16.msra.mxu0 0
    %1452 = vmatprep.subr.bf16.mxu0 0
    %1453 = vmatpush1.bf16.msra.mxu0 0
    %1454 = vmatprep.subr.bf16.mxu0 0
    %1455 = vmatpush1.bf16.msra.mxu0 0
    %1456 = vmatprep.subr.bf16.mxu0 0
    %1457 = vmatpush1.bf16.msra.mxu0 0
    %1458 = vmatprep.subr.bf16.mxu0 0
    %1459 = vmatpush1.bf16.msra.mxu0 0
    %1460 = vmatprep.subr.bf16.mxu0 0
    %1461 = vmatpush1.bf16.msra.mxu0 0
    %1462 = vmatprep.mubr.bf16.mxu0 0
    %1463 = vmatmul.mubr.bf16.gmra.mrb[0].mxu0 %v1346
    %v1464 = vpop.f32.mrb[0].mxu0
    %v1465 = vadd.f32 %v1124, %v1464
    %v1466 = vpop.f32.mrb[0].mxu0
    %v1467 = vadd.f32 %v1128, %v1466
    %v1468 = vpop.f32.mrb[0].mxu0
    %v1469 = vpop.f32.mrb[0].mxu0
    %1470 = vdwg.mxu0
    %1471 = vmatprep.subr.bf16.mxu0 %v1288
    %1472 = vmatpush1.bf16.msra.mxu0 %v1287
    %1473 = vmatprep.subr.bf16.mxu0 %v1304
    %1474 = vmatpush1.bf16.msra.mxu0 %v1303
    %1475 = vmatprep.subr.bf16.mxu0 0
    %1476 = vmatpush1.bf16.msra.mxu0 0
    %1477 = vmatprep.subr.bf16.mxu0 0
    %1478 = vmatpush1.bf16.msra.mxu0 0
    %1479 = vmatprep.subr.bf16.mxu0 0
    %1480 = vmatpush1.bf16.msra.mxu0 0
    %1481 = vmatprep.subr.bf16.mxu0 0
    %1482 = vmatpush1.bf16.msra.mxu0 0
    %1483 = vmatprep.subr.bf16.mxu0 0
    %1484 = vmatpush1.bf16.msra.mxu0 0
    %1485 = vmatprep.subr.bf16.mxu0 0
    %1486 = vmatpush1.bf16.msra.mxu0 0
    %1487 = vmatprep.subr.bf16.mxu0 0
    %1488 = vmatpush1.bf16.msra.mxu0 0
    %1489 = vmatprep.subr.bf16.mxu0 0
    %1490 = vmatpush1.bf16.msra.mxu0 0
    %1491 = vmatprep.subr.bf16.mxu0 0
    %1492 = vmatpush1.bf16.msra.mxu0 0
    %1493 = vmatprep.subr.bf16.mxu0 0
    %1494 = vmatpush1.bf16.msra.mxu0 0
    %1495 = vmatprep.subr.bf16.mxu0 0
    %1496 = vmatpush1.bf16.msra.mxu0 0
    %1497 = vmatprep.subr.bf16.mxu0 0
    %1498 = vmatpush1.bf16.msra.mxu0 0
    %1499 = vmatprep.subr.bf16.mxu0 0
    %1500 = vmatpush1.bf16.msra.mxu0 0
    %1501 = vmatprep.subr.bf16.mxu0 0
    %1502 = vmatpush1.bf16.msra.mxu0 0
    %1503 = vmatprep.mubr.bf16.mxu0 0
    %1504 = vmatmul.mubr.bf16.gmra.mrb[0].mxu0 %v1346
    %v1505 = vpop.f32.mrb[0].mxu0
    %v1506 = vadd.f32 %v1132, %v1505
    %v1507 = vpop.f32.mrb[0].mxu0
    %v1508 = vadd.f32 %v1136, %v1507
    %v1509 = vpop.f32.mrb[0].mxu0
    %v1510 = vpop.f32.mrb[0].mxu0
    %1511 = vdwg.mxu0
    %1512 = vmatprep.subr.bf16.mxu0 %v1290
    %1513 = vmatpush1.bf16.msra.mxu0 %v1289
    %1514 = vmatprep.subr.bf16.mxu0 %v1306
    %1515 = vmatpush1.bf16.msra.mxu0 %v1305
    %1516 = vmatprep.subr.bf16.mxu0 0
    %1517 = vmatpush1.bf16.msra.mxu0 0
    %1518 = vmatprep.subr.bf16.mxu0 0
    %1519 = vmatpush1.bf16.msra.mxu0 0
    %1520 = vmatprep.subr.bf16.mxu0 0
    %1521 = vmatpush1.bf16.msra.mxu0 0
    %1522 = vmatprep.subr.bf16.mxu0 0
    %1523 = vmatpush1.bf16.msra.mxu0 0
    %1524 = vmatprep.subr.bf16.mxu0 0
    %1525 = vmatpush1.bf16.msra.mxu0 0
    %1526 = vmatprep.subr.bf16.mxu0 0
    %1527 = vmatpush1.bf16.msra.mxu0 0
    %1528 = vmatprep.subr.bf16.mxu0 0
    %1529 = vmatpush1.bf16.msra.mxu0 0
    %1530 = vmatprep.subr.bf16.mxu0 0
    %1531 = vmatpush1.bf16.msra.mxu0 0
    %1532 = vmatprep.subr.bf16.mxu0 0
    %1533 = vmatpush1.bf16.msra.mxu0 0
    %1534 = vmatprep.subr.bf16.mxu0 0
    %1535 = vmatpush1.bf16.msra.mxu0 0
    %1536 = vmatprep.subr.bf16.mxu0 0
    %1537 = vmatpush1.bf16.msra.mxu0 0
    %1538 = vmatprep.subr.bf16.mxu0 0
    %1539 = vmatpush1.bf16.msra.mxu0 0
    %1540 = vmatprep.subr.bf16.mxu0 0
    %1541 = vmatpush1.bf16.msra.mxu0 0
    %1542 = vmatprep.subr.bf16.mxu0 0
    %1543 = vmatpush1.bf16.msra.mxu0 0
    %1544 = vmatprep.mubr.bf16.mxu0 0
    %1545 = vmatmul.mubr.bf16.gmra.mrb[0].mxu0 %v1346
    %v1546 = vpop.f32.mrb[0].mxu0
    %v1547 = vadd.f32 %v1140, %v1546
    %v1548 = vpop.f32.mrb[0].mxu0
    %v1549 = vadd.f32 %v1144, %v1548
    %v1550 = vpop.f32.mrb[0].mxu0
    %v1551 = vpop.f32.mrb[0].mxu0
    %1552 = vdwg.mxu0
    %1553 = vmatprep.subr.bf16.mxu0 %v1292
    %1554 = vmatpush1.bf16.msra.mxu0 %v1291
    %1555 = vmatprep.subr.bf16.mxu0 %v1308
    %1556 = vmatpush1.bf16.msra.mxu0 %v1307
    %1557 = vmatprep.subr.bf16.mxu0 0
    %1558 = vmatpush1.bf16.msra.mxu0 0
    %1559 = vmatprep.subr.bf16.mxu0 0
    %1560 = vmatpush1.bf16.msra.mxu0 0
    %1561 = vmatprep.subr.bf16.mxu0 0
    %1562 = vmatpush1.bf16.msra.mxu0 0
    %1563 = vmatprep.subr.bf16.mxu0 0
    %1564 = vmatpush1.bf16.msra.mxu0 0
    %1565 = vmatprep.subr.bf16.mxu0 0
    %1566 = vmatpush1.bf16.msra.mxu0 0
    %1567 = vmatprep.subr.bf16.mxu0 0
    %1568 = vmatpush1.bf16.msra.mxu0 0
    %1569 = vmatprep.subr.bf16.mxu0 0
    %1570 = vmatpush1.bf16.msra.mxu0 0
    %1571 = vmatprep.subr.bf16.mxu0 0
    %1572 = vmatpush1.bf16.msra.mxu0 0
    %1573 = vmatprep.subr.bf16.mxu0 0
    %1574 = vmatpush1.bf16.msra.mxu0 0
    %1575 = vmatprep.subr.bf16.mxu0 0
    %1576 = vmatpush1.bf16.msra.mxu0 0
    %1577 = vmatprep.subr.bf16.mxu0 0
    %1578 = vmatpush1.bf16.msra.mxu0 0
    %1579 = vmatprep.subr.bf16.mxu0 0
    %1580 = vmatpush1.bf16.msra.mxu0 0
    %1581 = vmatprep.subr.bf16.mxu0 0
    %1582 = vmatpush1.bf16.msra.mxu0 0
    %1583 = vmatprep.subr.bf16.mxu0 0
    %1584 = vmatpush1.bf16.msra.mxu0 0
    %1585 = vmatprep.mubr.bf16.mxu0 0
    %1586 = vmatmul.mubr.bf16.gmra.mrb[0].mxu0 %v1346
    %v1587 = vpop.f32.mrb[0].mxu0
    %v1588 = vadd.f32 %v1148, %v1587
    %v1589 = vpop.f32.mrb[0].mxu0
    %v1590 = vadd.f32 %v1152, %v1589
    %v1591 = vpop.f32.mrb[0].mxu0
    %v1592 = vpop.f32.mrb[0].mxu0
    %1593 = vdwg.mxu0
    %1594 = vmatprep.subr.bf16.mxu0 %v1294
    %1595 = vmatpush1.bf16.msra.mxu0 %v1293
    %1596 = vmatprep.subr.bf16.mxu0 %v1310
    %1597 = vmatpush1.bf16.msra.mxu0 %v1309
    %1598 = vmatprep.subr.bf16.mxu0 0
    %1599 = vmatpush1.bf16.msra.mxu0 0
    %1600 = vmatprep.subr.bf16.mxu0 0
    %1601 = vmatpush1.bf16.msra.mxu0 0
    %1602 = vmatprep.subr.bf16.mxu0 0
    %1603 = vmatpush1.bf16.msra.mxu0 0
    %1604 = vmatprep.subr.bf16.mxu0 0
    %1605 = vmatpush1.bf16.msra.mxu0 0
    %1606 = vmatprep.subr.bf16.mxu0 0
    %1607 = vmatpush1.bf16.msra.mxu0 0
    %1608 = vmatprep.subr.bf16.mxu0 0
    %1609 = vmatpush1.bf16.msra.mxu0 0
    %1610 = vmatprep.subr.bf16.mxu0 0
    %1611 = vmatpush1.bf16.msra.mxu0 0
    %1612 = vmatprep.subr.bf16.mxu0 0
    %1613 = vmatpush1.bf16.msra.mxu0 0
    %1614 = vmatprep.subr.bf16.mxu0 0
    %1615 = vmatpush1.bf16.msra.mxu0 0
    %1616 = vmatprep.subr.bf16.mxu0 0
    %1617 = vmatpush1.bf16.msra.mxu0 0
    %1618 = vmatprep.subr.bf16.mxu0 0
    %1619 = vmatpush1.bf16.msra.mxu0 0
    %1620 = vmatprep.subr.bf16.mxu0 0
    %1621 = vmatpush1.bf16.msra.mxu0 0
    %1622 = vmatprep.subr.bf16.mxu0 0
    %1623 = vmatpush1.bf16.msra.mxu0 0
    %1624 = vmatprep.subr.bf16.mxu0 0
    %1625 = vmatpush1.bf16.msra.mxu0 0
    %1626 = vmatprep.mubr.bf16.mxu0 0
    %1627 = vmatmul.mubr.bf16.gmra.mrb[0].mxu0 %v1346
    %v1628 = vpop.f32.mrb[0].mxu0
    %v1629 = vadd.f32 %v1156, %v1628
    %v1630 = vpop.f32.mrb[0].mxu0
    %v1631 = vadd.f32 %v1160, %v1630
    %v1632 = vpop.f32.mrb[0].mxu0
    %v1633 = vpop.f32.mrb[0].mxu0
    %1634 = vdwg.mxu0
    %1635 = vmatprep.subr.bf16.mxu0 %v1296
    %1636 = vmatpush1.bf16.msra.mxu0 %v1295
    %1637 = vmatprep.subr.bf16.mxu0 %v1312
    %1638 = vmatpush1.bf16.msra.mxu0 %v1311
    %1639 = vmatprep.subr.bf16.mxu0 0
    %1640 = vmatpush1.bf16.msra.mxu0 0
    %1641 = vmatprep.subr.bf16.mxu0 0
    %1642 = vmatpush1.bf16.msra.mxu0 0
    %1643 = vmatprep.subr.bf16.mxu0 0
    %1644 = vmatpush1.bf16.msra.mxu0 0
    %1645 = vmatprep.subr.bf16.mxu0 0
    %1646 = vmatpush1.bf16.msra.mxu0 0
    %1647 = vmatprep.subr.bf16.mxu0 0
    %1648 = vmatpush1.bf16.msra.mxu0 0
    %1649 = vmatprep.subr.bf16.mxu0 0
    %1650 = vmatpush1.bf16.msra.mxu0 0
    %1651 = vmatprep.subr.bf16.mxu0 0
    %1652 = vmatpush1.bf16.msra.mxu0 0
    %1653 = vmatprep.subr.bf16.mxu0 0
    %1654 = vmatpush1.bf16.msra.mxu0 0
    %1655 = vmatprep.subr.bf16.mxu0 0
    %1656 = vmatpush1.bf16.msra.mxu0 0
    %1657 = vmatprep.subr.bf16.mxu0 0
    %1658 = vmatpush1.bf16.msra.mxu0 0
    %1659 = vmatprep.subr.bf16.mxu0 0
    %1660 = vmatpush1.bf16.msra.mxu0 0
    %1661 = vmatprep.subr.bf16.mxu0 0
    %1662 = vmatpush1.bf16.msra.mxu0 0
    %1663 = vmatprep.subr.bf16.mxu0 0
    %1664 = vmatpush1.bf16.msra.mxu0 0
    %1665 = vmatprep.subr.bf16.mxu0 0
    %1666 = vmatpush1.bf16.msra.mxu0 0
    %1667 = vmatprep.mubr.bf16.mxu0 0
    %1668 = vmatmul.mubr.bf16.gmra.mrb[0].mxu0 %v1346
    %v1669 = vpop.f32.mrb[0].mxu0
    %v1670 = vadd.f32 %v1164, %v1669
    %v1671 = vpop.f32.mrb[0].mxu0
    %v1672 = vadd.f32 %v1168, %v1671
    %v1673 = vpop.f32.mrb[0].mxu0
    %v1674 = vpop.f32.mrb[0].mxu0
    %1675 = vdwg.mxu0
    %v1676 = vmax.f32 %v1383, 0.0
    %v1677 = vmax.f32 %v1385, 0.0
    %v1678 = vmax.f32 %v1424, 0.0
    %v1679 = vmax.f32 %v1426, 0.0
    %v1680 = vmax.f32 %v1465, 0.0
    %v1681 = vmax.f32 %v1467, 0.0
    %v1682 = vmax.f32 %v1506, 0.0
    %v1683 = vmax.f32 %v1508, 0.0
    %v1684 = vmax.f32 %v1547, 0.0
    %v1685 = vmax.f32 %v1549, 0.0
    %v1686 = vmax.f32 %v1588, 0.0
    %v1687 = vmax.f32 %v1590, 0.0
    %v1688 = vmax.f32 %v1629, 0.0
    %v1689 = vmax.f32 %v1631, 0.0
    %v1690 = vmax.f32 %v1670, 0.0
    %v1691 = vmax.f32 %v1672, 0.0
    %v1692 = vpack.c.bf16 %v1676, %v1676
    %v1693 = vpack.c.bf16 %v1677, %v1677
    %v1694 = vpack.c.bf16 %v1678, %v1678
    %v1695 = vpack.c.bf16 %v1679, %v1679
    %v1696 = vpack.c.bf16 %v1680, %v1680
    %v1697 = vpack.c.bf16 %v1681, %v1681
    %v1698 = vpack.c.bf16 %v1682, %v1682
    %v1699 = vpack.c.bf16 %v1683, %v1683
    %v1700 = vpack.c.bf16 %v1684, %v1684
    %v1701 = vpack.c.bf16 %v1685, %v1685
    %v1702 = vpack.c.bf16 %v1686, %v1686
    %v1703 = vpack.c.bf16 %v1687, %v1687
    %v1704 = vpack.c.bf16 %v1688, %v1688
    %v1705 = vpack.c.bf16 %v1689, %v1689
    %v1706 = vpack.c.bf16 %v1690, %v1690
    %v1707 = vpack.c.bf16 %v1691, %v1691
    %v1708 = vld [vmem:[%s4] sm:$0xf]
    %v1709 = vld [vmem:[%s4 + $0x4] sm:$0xf]
    %v1710 = vld [vmem:[%s4 + $0x8] sm:$0xf]
    %v1711 = vld [vmem:[%s4 + $0xc] sm:$0xf]
    %v1712 = vld [vmem:[%s4 + $0x10] sm:$0xf]
    %v1713 = vld [vmem:[%s4 + $0x14] sm:$0xf]
    %v1714 = vld [vmem:[%s4 + $0x18] sm:$0xf]
    %v1715 = vld [vmem:[%s4 + $0x1c] sm:$0xf]
    %v1716 = vld [vmem:[%s4 + $0x20] sm:$0xf]
    %v1717 = vld [vmem:[%s4 + $0x24] sm:$0xf]
    %v1718 = vld [vmem:[%s4 + $0x28] sm:$0xf]
    %v1719 = vld [vmem:[%s4 + $0x2c] sm:$0xf]
    %v1720 = vld [vmem:[%s4 + $0x30] sm:$0xf]
    %v1721 = vld [vmem:[%s4 + $0x34] sm:$0xf]
    %v1722 = vld [vmem:[%s4 + $0x38] sm:$0xf]
    %v1723 = vld [vmem:[%s4 + $0x3c] sm:$0xf]
    %v1724 = vld [vmem:[%s4 + $0x40] sm:$0xf]
    %v1725 = vld [vmem:[%s4 + $0x44] sm:$0xf]
    %v1726 = vld [vmem:[%s4 + $0x48] sm:$0xf]
    %v1727 = vld [vmem:[%s4 + $0x4c] sm:$0xf]
    %v1728 = vld [vmem:[%s4 + $0x50] sm:$0xf]
    %v1729 = vld [vmem:[%s4 + $0x54] sm:$0xf]
    %v1730 = vld [vmem:[%s4 + $0x58] sm:$0xf]
    %v1731 = vld [vmem:[%s4 + $0x5c] sm:$0xf]
    %v1732 = vld [vmem:[%s4 + $0x60] sm:$0xf]
    %v1733 = vld [vmem:[%s4 + $0x64] sm:$0xf]
    %v1734 = vld [vmem:[%s4 + $0x68] sm:$0xf]
    %v1735 = vld [vmem:[%s4 + $0x6c] sm:$0xf]
    %v1736 = vld [vmem:[%s4 + $0x70] sm:$0xf]
    %v1737 = vld [vmem:[%s4 + $0x74] sm:$0xf]
    %v1738 = vld [vmem:[%s4 + $0x78] sm:$0xf]
    %v1739 = vld [vmem:[%s4 + $0x7c] sm:$0xf]
    %v1740 = vld [vmem:[%s4 + $0x80] sm:$0xf]
    %v1741 = vld [vmem:[%s4 + $0x84] sm:$0xf]
    %v1742 = vld [vmem:[%s4 + $0x88] sm:$0xf]
    %v1743 = vld [vmem:[%s4 + $0x8c] sm:$0xf]
    %v1744 = vld [vmem:[%s4 + $0x90] sm:$0xf]
    %v1745 = vld [vmem:[%s4 + $0x94] sm:$0xf]
    %v1746 = vld [vmem:[%s4 + $0x98] sm:$0xf]
    %v1747 = vld [vmem:[%s4 + $0x9c] sm:$0xf]
    %v1748 = vld [vmem:[%s4 + $0xa0] sm:$0xf]
    %v1749 = vld [vmem:[%s4 + $0xa4] sm:$0xf]
    %v1750 = vld [vmem:[%s4 + $0xa8] sm:$0xf]
    %v1751 = vld [vmem:[%s4 + $0xac] sm:$0xf]
    %v1752 = vld [vmem:[%s4 + $0xb0] sm:$0xf]
    %v1753 = vld [vmem:[%s4 + $0xb4] sm:$0xf]
    %v1754 = vld [vmem:[%s4 + $0xb8] sm:$0xf]
    %v1755 = vld [vmem:[%s4 + $0xbc] sm:$0xf]
    %v1756 = vld [vmem:[%s4 + $0xc0] sm:$0xf]
    %v1757 = vld [vmem:[%s4 + $0xc4] sm:$0xf]
    %v1758 = vld [vmem:[%s4 + $0xc8] sm:$0xf]
    %v1759 = vld [vmem:[%s4 + $0xcc] sm:$0xf]
    %v1760 = vld [vmem:[%s4 + $0xd0] sm:$0xf]
    %v1761 = vld [vmem:[%s4 + $0xd4] sm:$0xf]
    %v1762 = vld [vmem:[%s4 + $0xd8] sm:$0xf]
    %v1763 = vld [vmem:[%s4 + $0xdc] sm:$0xf]
    %v1764 = vld [vmem:[%s4 + $0xe0] sm:$0xf]
    %v1765 = vld [vmem:[%s4 + $0xe4] sm:$0xf]
    %v1766 = vld [vmem:[%s4 + $0xe8] sm:$0xf]
    %v1767 = vld [vmem:[%s4 + $0xec] sm:$0xf]
    %v1768 = vld [vmem:[%s4 + $0xf0] sm:$0xf]
    %v1769 = vld [vmem:[%s4 + $0xf4] sm:$0xf]
    %v1770 = vld [vmem:[%s4 + $0xf8] sm:$0xf]
    %v1771 = vld [vmem:[%s4 + $0xfc] sm:$0xf]
    %v1772 = vld [vmem:[%s4 + $0x100] sm:$0xf]
    %v1773 = vld [vmem:[%s4 + $0x104] sm:$0xf]
    %v1774 = vld [vmem:[%s4 + $0x108] sm:$0xf]
    %v1775 = vld [vmem:[%s4 + $0x10c] sm:$0xf]
    %v1776 = vld [vmem:[%s4 + $0x110] sm:$0xf]
    %v1777 = vld [vmem:[%s4 + $0x114] sm:$0xf]
    %v1778 = vld [vmem:[%s4 + $0x118] sm:$0xf]
    %v1779 = vld [vmem:[%s4 + $0x11c] sm:$0xf]
    %v1780 = vld [vmem:[%s4 + $0x120] sm:$0xf]
    %v1781 = vld [vmem:[%s4 + $0x124] sm:$0xf]
    %v1782 = vld [vmem:[%s4 + $0x128] sm:$0xf]
    %v1783 = vld [vmem:[%s4 + $0x12c] sm:$0xf]
    %v1784 = vld [vmem:[%s4 + $0x130] sm:$0xf]
    %v1785 = vld [vmem:[%s4 + $0x134] sm:$0xf]
    %v1786 = vld [vmem:[%s4 + $0x138] sm:$0xf]
    %v1787 = vld [vmem:[%s4 + $0x13c] sm:$0xf]
    %v1788 = vld [vmem:[%s4 + $0x140] sm:$0xf]
    %v1789 = vld [vmem:[%s4 + $0x144] sm:$0xf]
    %v1790 = vld [vmem:[%s4 + $0x148] sm:$0xf]
    %v1791 = vld [vmem:[%s4 + $0x14c] sm:$0xf]
    %v1792 = vld [vmem:[%s4 + $0x150] sm:$0xf]
    %v1793 = vld [vmem:[%s4 + $0x154] sm:$0xf]
    %v1794 = vld [vmem:[%s4 + $0x158] sm:$0xf]
    %v1795 = vld [vmem:[%s4 + $0x15c] sm:$0xf]
    %v1796 = vld [vmem:[%s4 + $0x160] sm:$0xf]
    %v1797 = vld [vmem:[%s4 + $0x164] sm:$0xf]
    %v1798 = vld [vmem:[%s4 + $0x168] sm:$0xf]
    %v1799 = vld [vmem:[%s4 + $0x16c] sm:$0xf]
    %v1800 = vld [vmem:[%s4 + $0x170] sm:$0xf]
    %v1801 = vld [vmem:[%s4 + $0x174] sm:$0xf]
    %v1802 = vld [vmem:[%s4 + $0x178] sm:$0xf]
    %v1803 = vld [vmem:[%s4 + $0x17c] sm:$0xf]
    %v1804 = vld [vmem:[%s4 + $0x180] sm:$0xf]
    %v1805 = vld [vmem:[%s4 + $0x184] sm:$0xf]
    %v1806 = vld [vmem:[%s4 + $0x188] sm:$0xf]
    %v1807 = vld [vmem:[%s4 + $0x18c] sm:$0xf]
    %v1808 = vld [vmem:[%s4 + $0x190] sm:$0xf]
    %v1809 = vld [vmem:[%s4 + $0x194] sm:$0xf]
    %v1810 = vld [vmem:[%s4 + $0x198] sm:$0xf]
    %v1811 = vld [vmem:[%s4 + $0x19c] sm:$0xf]
    %v1812 = vld [vmem:[%s4 + $0x1a0] sm:$0xf]
    %v1813 = vld [vmem:[%s4 + $0x1a4] sm:$0xf]
    %v1814 = vld [vmem:[%s4 + $0x1a8] sm:$0xf]
    %v1815 = vld [vmem:[%s4 + $0x1ac] sm:$0xf]
    %v1816 = vld [vmem:[%s4 + $0x1b0] sm:$0xf]
    %v1817 = vld [vmem:[%s4 + $0x1b4] sm:$0xf]
    %v1818 = vld [vmem:[%s4 + $0x1b8] sm:$0xf]
    %v1819 = vld [vmem:[%s4 + $0x1bc] sm:$0xf]
    %v1820 = vld [vmem:[%s4 + $0x1c0] sm:$0xf]
    %v1821 = vld [vmem:[%s4 + $0x1c4] sm:$0xf]
    %v1822 = vld [vmem:[%s4 + $0x1c8] sm:$0xf]
    %v1823 = vld [vmem:[%s4 + $0x1cc] sm:$0xf]
    %v1824 = vld [vmem:[%s4 + $0x1d0] sm:$0xf]
    %v1825 = vld [vmem:[%s4 + $0x1d4] sm:$0xf]
    %v1826 = vld [vmem:[%s4 + $0x1d8] sm:$0xf]
    %v1827 = vld [vmem:[%s4 + $0x1dc] sm:$0xf]
    %v1828 = vld [vmem:[%s4 + $0x1e0] sm:$0xf]
    %v1829 = vld [vmem:[%s4 + $0x1e4] sm:$0xf]
    %v1830 = vld [vmem:[%s4 + $0x1e8] sm:$0xf]
    %v1831 = vld [vmem:[%s4 + $0x1ec] sm:$0xf]
    %v1832 = vld [vmem:[%s4 + $0x1f0] sm:$0xf]
    %v1833 = vld [vmem:[%s4 + $0x1f4] sm:$0xf]
    %v1834 = vld [vmem:[%s4 + $0x1f8] sm:$0xf]
    %v1835 = vld [vmem:[%s4 + $0x1fc] sm:$0xf]
    %v1836 = vld [vmem:[%s4 + $0x200] sm:$0xf]
    %v1837 = vld [vmem:[%s4 + $0x204] sm:$0xf]
    %v1838 = vld [vmem:[%s4 + $0x208] sm:$0xf]
    %v1839 = vld [vmem:[%s4 + $0x20c] sm:$0xf]
    %v1840 = vld [vmem:[%s4 + $0x210] sm:$0xf]
    %v1841 = vld [vmem:[%s4 + $0x214] sm:$0xf]
    %v1842 = vld [vmem:[%s4 + $0x218] sm:$0xf]
    %v1843 = vld [vmem:[%s4 + $0x21c] sm:$0xf]
    %v1844 = vld [vmem:[%s4 + $0x220] sm:$0xf]
    %v1845 = vld [vmem:[%s4 + $0x224] sm:$0xf]
    %v1846 = vld [vmem:[%s4 + $0x228] sm:$0xf]
    %v1847 = vld [vmem:[%s4 + $0x22c] sm:$0xf]
    %v1848 = vld [vmem:[%s4 + $0x230] sm:$0xf]
    %v1849 = vld [vmem:[%s4 + $0x234] sm:$0xf]
    %v1850 = vld [vmem:[%s4 + $0x238] sm:$0xf]
    %v1851 = vld [vmem:[%s4 + $0x23c] sm:$0xf]
    %v1852 = vld [vmem:[%s4 + $0x240] sm:$0xf]
    %v1853 = vld [vmem:[%s4 + $0x244] sm:$0xf]
    %v1854 = vld [vmem:[%s4 + $0x248] sm:$0xf]
    %v1855 = vld [vmem:[%s4 + $0x24c] sm:$0xf]
    %v1856 = vld [vmem:[%s4 + $0x250] sm:$0xf]
    %v1857 = vld [vmem:[%s4 + $0x254] sm:$0xf]
    %v1858 = vld [vmem:[%s4 + $0x258] sm:$0xf]
    %v1859 = vld [vmem:[%s4 + $0x25c] sm:$0xf]
    %v1860 = vld [vmem:[%s4 + $0x260] sm:$0xf]
    %v1861 = vld [vmem:[%s4 + $0x264] sm:$0xf]
    %v1862 = vld [vmem:[%s4 + $0x268] sm:$0xf]
    %v1863 = vld [vmem:[%s4 + $0x26c] sm:$0xf]
    %v1864 = vld [vmem:[%s4 + $0x270] sm:$0xf]
    %v1865 = vld [vmem:[%s4 + $0x274] sm:$0xf]
    %v1866 = vld [vmem:[%s4 + $0x278] sm:$0xf]
    %v1867 = vld [vmem:[%s4 + $0x27c] sm:$0xf]
    %v1868 = vld [vmem:[%s4 + $0x280] sm:$0xf]
    %v1869 = vld [vmem:[%s4 + $0x284] sm:$0xf]
    %v1870 = vld [vmem:[%s4 + $0x288] sm:$0xf]
    %v1871 = vld [vmem:[%s4 + $0x28c] sm:$0xf]
    %v1872 = vld [vmem:[%s4 + $0x290] sm:$0xf]
    %v1873 = vld [vmem:[%s4 + $0x294] sm:$0xf]
    %v1874 = vld [vmem:[%s4 + $0x298] sm:$0xf]
    %v1875 = vld [vmem:[%s4 + $0x29c] sm:$0xf]
    %v1876 = vld [vmem:[%s4 + $0x2a0] sm:$0xf]
    %v1877 = vld [vmem:[%s4 + $0x2a4] sm:$0xf]
    %v1878 = vld [vmem:[%s4 + $0x2a8] sm:$0xf]
    %v1879 = vld [vmem:[%s4 + $0x2ac] sm:$0xf]
    %v1880 = vld [vmem:[%s4 + $0x2b0] sm:$0xf]
    %v1881 = vld [vmem:[%s4 + $0x2b4] sm:$0xf]
    %v1882 = vld [vmem:[%s4 + $0x2b8] sm:$0xf]
    %v1883 = vld [vmem:[%s4 + $0x2bc] sm:$0xf]
    %v1884 = vld [vmem:[%s4 + $0x2c0] sm:$0xf]
    %v1885 = vld [vmem:[%s4 + $0x2c4] sm:$0xf]
    %v1886 = vld [vmem:[%s4 + $0x2c8] sm:$0xf]
    %v1887 = vld [vmem:[%s4 + $0x2cc] sm:$0xf]
    %v1888 = vld [vmem:[%s4 + $0x2d0] sm:$0xf]
    %v1889 = vld [vmem:[%s4 + $0x2d4] sm:$0xf]
    %v1890 = vld [vmem:[%s4 + $0x2d8] sm:$0xf]
    %v1891 = vld [vmem:[%s4 + $0x2dc] sm:$0xf]
    %v1892 = vld [vmem:[%s4 + $0x2e0] sm:$0xf]
    %v1893 = vld [vmem:[%s4 + $0x2e4] sm:$0xf]
    %v1894 = vld [vmem:[%s4 + $0x2e8] sm:$0xf]
    %v1895 = vld [vmem:[%s4 + $0x2ec] sm:$0xf]
    %v1896 = vld [vmem:[%s4 + $0x2f0] sm:$0xf]
    %v1897 = vld [vmem:[%s4 + $0x2f4] sm:$0xf]
    %v1898 = vld [vmem:[%s4 + $0x2f8] sm:$0xf]
    %v1899 = vld [vmem:[%s4 + $0x2fc] sm:$0xf]
    %v1900 = vld [vmem:[%s4 + $0x300] sm:$0xf]
    %v1901 = vld [vmem:[%s4 + $0x304] sm:$0xf]
    %v1902 = vld [vmem:[%s4 + $0x308] sm:$0xf]
    %v1903 = vld [vmem:[%s4 + $0x30c] sm:$0xf]
    %v1904 = vld [vmem:[%s4 + $0x310] sm:$0xf]
    %v1905 = vld [vmem:[%s4 + $0x314] sm:$0xf]
    %v1906 = vld [vmem:[%s4 + $0x318] sm:$0xf]
    %v1907 = vld [vmem:[%s4 + $0x31c] sm:$0xf]
    %v1908 = vld [vmem:[%s4 + $0x320] sm:$0xf]
    %v1909 = vld [vmem:[%s4 + $0x324] sm:$0xf]
    %v1910 = vld [vmem:[%s4 + $0x328] sm:$0xf]
    %v1911 = vld [vmem:[%s4 + $0x32c] sm:$0xf]
    %v1912 = vld [vmem:[%s4 + $0x330] sm:$0xf]
    %v1913 = vld [vmem:[%s4 + $0x334] sm:$0xf]
    %v1914 = vld [vmem:[%s4 + $0x338] sm:$0xf]
    %v1915 = vld [vmem:[%s4 + $0x33c] sm:$0xf]
    %v1916 = vld [vmem:[%s4 + $0x340] sm:$0xf]
    %v1917 = vld [vmem:[%s4 + $0x344] sm:$0xf]
    %v1918 = vld [vmem:[%s4 + $0x348] sm:$0xf]
    %v1919 = vld [vmem:[%s4 + $0x34c] sm:$0xf]
    %v1920 = vld [vmem:[%s4 + $0x350] sm:$0xf]
    %v1921 = vld [vmem:[%s4 + $0x354] sm:$0xf]
    %v1922 = vld [vmem:[%s4 + $0x358] sm:$0xf]
    %v1923 = vld [vmem:[%s4 + $0x35c] sm:$0xf]
    %v1924 = vld [vmem:[%s4 + $0x360] sm:$0xf]
    %v1925 = vld [vmem:[%s4 + $0x364] sm:$0xf]
    %v1926 = vld [vmem:[%s4 + $0x368] sm:$0xf]
    %v1927 = vld [vmem:[%s4 + $0x36c] sm:$0xf]
    %v1928 = vld [vmem:[%s4 + $0x370] sm:$0xf]
    %v1929 = vld [vmem:[%s4 + $0x374] sm:$0xf]
    %v1930 = vld [vmem:[%s4 + $0x378] sm:$0xf]
    %v1931 = vld [vmem:[%s4 + $0x37c] sm:$0xf]
    %v1932 = vld [vmem:[%s4 + $0x380] sm:$0xf]
    %v1933 = vld [vmem:[%s4 + $0x384] sm:$0xf]
    %v1934 = vld [vmem:[%s4 + $0x388] sm:$0xf]
    %v1935 = vld [vmem:[%s4 + $0x38c] sm:$0xf]
    %v1936 = vld [vmem:[%s4 + $0x390] sm:$0xf]
    %v1937 = vld [vmem:[%s4 + $0x394] sm:$0xf]
    %v1938 = vld [vmem:[%s4 + $0x398] sm:$0xf]
    %v1939 = vld [vmem:[%s4 + $0x39c] sm:$0xf]
    %v1940 = vld [vmem:[%s4 + $0x3a0] sm:$0xf]
    %v1941 = vld [vmem:[%s4 + $0x3a4] sm:$0xf]
    %v1942 = vld [vmem:[%s4 + $0x3a8] sm:$0xf]
    %v1943 = vld [vmem:[%s4 + $0x3ac] sm:$0xf]
    %v1944 = vld [vmem:[%s4 + $0x3b0] sm:$0xf]
    %v1945 = vld [vmem:[%s4 + $0x3b4] sm:$0xf]
    %v1946 = vld [vmem:[%s4 + $0x3b8] sm:$0xf]
    %v1947 = vld [vmem:[%s4 + $0x3bc] sm:$0xf]
    %v1948 = vld [vmem:[%s4 + $0x3c0] sm:$0xf]
    %v1949 = vld [vmem:[%s4 + $0x3c4] sm:$0xf]
    %v1950 = vld [vmem:[%s4 + $0x3c8] sm:$0xf]
    %v1951 = vld [vmem:[%s4 + $0x3cc] sm:$0xf]
    %v1952 = vld [vmem:[%s4 + $0x3d0] sm:$0xf]
    %v1953 = vld [vmem:[%s4 + $0x3d4] sm:$0xf]
    %v1954 = vld [vmem:[%s4 + $0x3d8] sm:$0xf]
    %v1955 = vld [vmem:[%s4 + $0x3dc] sm:$0xf]
    %v1956 = vld [vmem:[%s4 + $0x3e0] sm:$0xf]
    %v1957 = vld [vmem:[%s4 + $0x3e4] sm:$0xf]
    %v1958 = vld [vmem:[%s4 + $0x3e8] sm:$0xf]
    %v1959 = vld [vmem:[%s4 + $0x3ec] sm:$0xf]
    %v1960 = vld [vmem:[%s4 + $0x3f0] sm:$0xf]
    %v1961 = vld [vmem:[%s4 + $0x3f4] sm:$0xf]
    %v1962 = vld [vmem:[%s4 + $0x3f8] sm:$0xf]
    %v1963 = vld [vmem:[%s4 + $0x3fc] sm:$0xf]
    %v1964 = vld [vmem:[%s1 + $0xa0] sm:$0x1]
    %v1965 = vlaneseq
    %v1966 = vshrl.u32 %v1965, 7
    %v1967 = vsub.s32 0, %v1966
    %v1968 = vrot.slane %v1964, %v1967
    %v2225 = vunpack.c.l.b16 %v1708
    %v2226 = vunpack.c.l.b16 %v1709
    %v2227 = vunpack.c.l.b16 %v1710
    %v2228 = vunpack.c.l.b16 %v1711
    %v2229 = vunpack.c.l.b16 %v1712
    %v2230 = vunpack.c.l.b16 %v1713
    %v2231 = vunpack.c.l.b16 %v1714
    %v2232 = vunpack.c.l.b16 %v1715
    %v2233 = vunpack.c.l.b16 %v1716
    %v2234 = vunpack.c.l.b16 %v1717
    %v2235 = vunpack.c.l.b16 %v1718
    %v2236 = vunpack.c.l.b16 %v1719
    %v2237 = vunpack.c.l.b16 %v1720
    %v2238 = vunpack.c.l.b16 %v1721
    %v2239 = vunpack.c.l.b16 %v1722
    %v2240 = vunpack.c.l.b16 %v1723
    %v2241 = vunpack.c.l.b16 %v1724
    %v2242 = vunpack.c.l.b16 %v1725
    %v2243 = vunpack.c.l.b16 %v1726
    %v2244 = vunpack.c.l.b16 %v1727
    %v2245 = vunpack.c.l.b16 %v1728
    %v2246 = vunpack.c.l.b16 %v1729
    %v2247 = vunpack.c.l.b16 %v1730
    %v2248 = vunpack.c.l.b16 %v1731
    %v2249 = vunpack.c.l.b16 %v1732
    %v2250 = vunpack.c.l.b16 %v1733
    %v2251 = vunpack.c.l.b16 %v1734
    %v2252 = vunpack.c.l.b16 %v1735
    %v2253 = vunpack.c.l.b16 %v1736
    %v2254 = vunpack.c.l.b16 %v1737
    %v2255 = vunpack.c.l.b16 %v1738
    %v2256 = vunpack.c.l.b16 %v1739
    %v2257 = vunpack.c.l.b16 %v1740
    %v2258 = vunpack.c.l.b16 %v1741
    %v2259 = vunpack.c.l.b16 %v1742
    %v2260 = vunpack.c.l.b16 %v1743
    %v2261 = vunpack.c.l.b16 %v1744
    %v2262 = vunpack.c.l.b16 %v1745
    %v2263 = vunpack.c.l.b16 %v1746
    %v2264 = vunpack.c.l.b16 %v1747
    %v2265 = vunpack.c.l.b16 %v1748
    %v2266 = vunpack.c.l.b16 %v1749
    %v2267 = vunpack.c.l.b16 %v1750
    %v2268 = vunpack.c.l.b16 %v1751
    %v2269 = vunpack.c.l.b16 %v1752
    %v2270 = vunpack.c.l.b16 %v1753
    %v2271 = vunpack.c.l.b16 %v1754
    %v2272 = vunpack.c.l.b16 %v1755
    %v2273 = vunpack.c.l.b16 %v1756
    %v2274 = vunpack.c.l.b16 %v1757
    %v2275 = vunpack.c.l.b16 %v1758
    %v2276 = vunpack.c.l.b16 %v1759
    %v2277 = vunpack.c.l.b16 %v1760
    %v2278 = vunpack.c.l.b16 %v1761
    %v2279 = vunpack.c.l.b16 %v1762
    %v2280 = vunpack.c.l.b16 %v1763
    %v2281 = vunpack.c.l.b16 %v1764
    %v2282 = vunpack.c.l.b16 %v1765
    %v2283 = vunpack.c.l.b16 %v1766
    %v2284 = vunpack.c.l.b16 %v1767
    %v2285 = vunpack.c.l.b16 %v1768
    %v2286 = vunpack.c.l.b16 %v1769
    %v2287 = vunpack.c.l.b16 %v1770
    %v2288 = vunpack.c.l.b16 %v1771
    %v2289 = vunpack.c.l.b16 %v1772
    %v2290 = vunpack.c.l.b16 %v1773
    %v2291 = vunpack.c.l.b16 %v1774
    %v2292 = vunpack.c.l.b16 %v1775
    %v2293 = vunpack.c.l.b16 %v1776
    %v2294 = vunpack.c.l.b16 %v1777
    %v2295 = vunpack.c.l.b16 %v1778
    %v2296 = vunpack.c.l.b16 %v1779
    %v2297 = vunpack.c.l.b16 %v1780
    %v2298 = vunpack.c.l.b16 %v1781
    %v2299 = vunpack.c.l.b16 %v1782
    %v2300 = vunpack.c.l.b16 %v1783
    %v2301 = vunpack.c.l.b16 %v1784
    %v2302 = vunpack.c.l.b16 %v1785
    %v2303 = vunpack.c.l.b16 %v1786
    %v2304 = vunpack.c.l.b16 %v1787
    %v2305 = vunpack.c.l.b16 %v1788
    %v2306 = vunpack.c.l.b16 %v1789
    %v2307 = vunpack.c.l.b16 %v1790
    %v2308 = vunpack.c.l.b16 %v1791
    %v2309 = vunpack.c.l.b16 %v1792
    %v2310 = vunpack.c.l.b16 %v1793
    %v2311 = vunpack.c.l.b16 %v1794
    %v2312 = vunpack.c.l.b16 %v1795
    %v2313 = vunpack.c.l.b16 %v1796
    %v2314 = vunpack.c.l.b16 %v1797
    %v2315 = vunpack.c.l.b16 %v1798
    %v2316 = vunpack.c.l.b16 %v1799
    %v2317 = vunpack.c.l.b16 %v1800
    %v2318 = vunpack.c.l.b16 %v1801
    %v2319 = vunpack.c.l.b16 %v1802
    %v2320 = vunpack.c.l.b16 %v1803
    %v2321 = vunpack.c.l.b16 %v1804
    %v2322 = vunpack.c.l.b16 %v1805
    %v2323 = vunpack.c.l.b16 %v1806
    %v2324 = vunpack.c.l.b16 %v1807
    %v2325 = vunpack.c.l.b16 %v1808
    %v2326 = vunpack.c.l.b16 %v1809
    %v2327 = vunpack.c.l.b16 %v1810
    %v2328 = vunpack.c.l.b16 %v1811
    %v2329 = vunpack.c.l.b16 %v1812
    %v2330 = vunpack.c.l.b16 %v1813
    %v2331 = vunpack.c.l.b16 %v1814
    %v2332 = vunpack.c.l.b16 %v1815
    %v2333 = vunpack.c.l.b16 %v1816
    %v2334 = vunpack.c.l.b16 %v1817
    %v2335 = vunpack.c.l.b16 %v1818
    %v2336 = vunpack.c.l.b16 %v1819
    %v2337 = vunpack.c.l.b16 %v1820
    %v2338 = vunpack.c.l.b16 %v1821
    %v2339 = vunpack.c.l.b16 %v1822
    %v2340 = vunpack.c.l.b16 %v1823
    %v2341 = vunpack.c.l.b16 %v1824
    %v2342 = vunpack.c.l.b16 %v1825
    %v2343 = vunpack.c.l.b16 %v1826
    %v2344 = vunpack.c.l.b16 %v1827
    %v2345 = vunpack.c.l.b16 %v1828
    %v2346 = vunpack.c.l.b16 %v1829
    %v2347 = vunpack.c.l.b16 %v1830
    %v2348 = vunpack.c.l.b16 %v1831
    %v2349 = vunpack.c.l.b16 %v1832
    %v2350 = vunpack.c.l.b16 %v1833
    %v2351 = vunpack.c.l.b16 %v1834
    %v2352 = vunpack.c.l.b16 %v1835
    %v2353 = vunpack.c.l.b16 %v1836
    %v2354 = vunpack.c.l.b16 %v1837
    %v2355 = vunpack.c.l.b16 %v1838
    %v2356 = vunpack.c.l.b16 %v1839
    %v2357 = vunpack.c.l.b16 %v1840
    %v2358 = vunpack.c.l.b16 %v1841
    %v2359 = vunpack.c.l.b16 %v1842
    %v2360 = vunpack.c.l.b16 %v1843
    %v2361 = vunpack.c.l.b16 %v1844
    %v2362 = vunpack.c.l.b16 %v1845
    %v2363 = vunpack.c.l.b16 %v1846
    %v2364 = vunpack.c.l.b16 %v1847
    %v2365 = vunpack.c.l.b16 %v1848
    %v2366 = vunpack.c.l.b16 %v1849
    %v2367 = vunpack.c.l.b16 %v1850
    %v2368 = vunpack.c.l.b16 %v1851
    %v2369 = vunpack.c.l.b16 %v1852
    %v2370 = vunpack.c.l.b16 %v1853
    %v2371 = vunpack.c.l.b16 %v1854
    %v2372 = vunpack.c.l.b16 %v1855
    %v2373 = vunpack.c.l.b16 %v1856
    %v2374 = vunpack.c.l.b16 %v1857
    %v2375 = vunpack.c.l.b16 %v1858
    %v2376 = vunpack.c.l.b16 %v1859
    %v2377 = vunpack.c.l.b16 %v1860
    %v2378 = vunpack.c.l.b16 %v1861
    %v2379 = vunpack.c.l.b16 %v1862
    %v2380 = vunpack.c.l.b16 %v1863
    %v2381 = vunpack.c.l.b16 %v1864
    %v2382 = vunpack.c.l.b16 %v1865
    %v2383 = vunpack.c.l.b16 %v1866
    %v2384 = vunpack.c.l.b16 %v1867
    %v2385 = vunpack.c.l.b16 %v1868
    %v2386 = vunpack.c.l.b16 %v1869
    %v2387 = vunpack.c.l.b16 %v1870
    %v2388 = vunpack.c.l.b16 %v1871
    %v2389 = vunpack.c.l.b16 %v1872
    %v2390 = vunpack.c.l.b16 %v1873
    %v2391 = vunpack.c.l.b16 %v1874
    %v2392 = vunpack.c.l.b16 %v1875
    %v2393 = vunpack.c.l.b16 %v1876
    %v2394 = vunpack.c.l.b16 %v1877
    %v2395 = vunpack.c.l.b16 %v1878
    %v2396 = vunpack.c.l.b16 %v1879
    %v2397 = vunpack.c.l.b16 %v1880
    %v2398 = vunpack.c.l.b16 %v1881
    %v2399 = vunpack.c.l.b16 %v1882
    %v2400 = vunpack.c.l.b16 %v1883
    %v2401 = vunpack.c.l.b16 %v1884
    %v2402 = vunpack.c.l.b16 %v1885
    %v2403 = vunpack.c.l.b16 %v1886
    %v2404 = vunpack.c.l.b16 %v1887
    %v2405 = vunpack.c.l.b16 %v1888
    %v2406 = vunpack.c.l.b16 %v1889
    %v2407 = vunpack.c.l.b16 %v1890
    %v2408 = vunpack.c.l.b16 %v1891
    %v2409 = vunpack.c.l.b16 %v1892
    %v2410 = vunpack.c.l.b16 %v1893
    %v2411 = vunpack.c.l.b16 %v1894
    %v2412 = vunpack.c.l.b16 %v1895
    %v2413 = vunpack.c.l.b16 %v1896
    %v2414 = vunpack.c.l.b16 %v1897
    %v2415 = vunpack.c.l.b16 %v1898
    %v2416 = vunpack.c.l.b16 %v1899
    %v2417 = vunpack.c.l.b16 %v1900
    %v2418 = vunpack.c.l.b16 %v1901
    %v2419 = vunpack.c.l.b16 %v1902
    %v2420 = vunpack.c.l.b16 %v1903
    %v2421 = vunpack.c.l.b16 %v1904
    %v2422 = vunpack.c.l.b16 %v1905
    %v2423 = vunpack.c.l.b16 %v1906
    %v2424 = vunpack.c.l.b16 %v1907
    %v2425 = vunpack.c.l.b16 %v1908
    %v2426 = vunpack.c.l.b16 %v1909
    %v2427 = vunpack.c.l.b16 %v1910
    %v2428 = vunpack.c.l.b16 %v1911
    %v2429 = vunpack.c.l.b16 %v1912
    %v2430 = vunpack.c.l.b16 %v1913
    %v2431 = vunpack.c.l.b16 %v1914
    %v2432 = vunpack.c.l.b16 %v1915
    %v2433 = vunpack.c.l.b16 %v1916
    %v2434 = vunpack.c.l.b16 %v1917
    %v2435 = vunpack.c.l.b16 %v1918
    %v2436 = vunpack.c.l.b16 %v1919
    %v2437 = vunpack.c.l.b16 %v1920
    %v2438 = vunpack.c.l.b16 %v1921
    %v2439 = vunpack.c.l.b16 %v1922
    %v2440 = vunpack.c.l.b16 %v1923
    %v2441 = vunpack.c.l.b16 %v1924
    %v2442 = vunpack.c.l.b16 %v1925
    %v2443 = vunpack.c.l.b16 %v1926
    %v2444 = vunpack.c.l.b16 %v1927
    %v2445 = vunpack.c.l.b16 %v1928
    %v2446 = vunpack.c.l.b16 %v1929
    %v2447 = vunpack.c.l.b16 %v1930
    %v2448 = vunpack.c.l.b16 %v1931
    %v2449 = vunpack.c.l.b16 %v1932
    %v2450 = vunpack.c.l.b16 %v1933
    %v2451 = vunpack.c.l.b16 %v1934
    %v2452 = vunpack.c.l.b16 %v1935
    %v2453 = vunpack.c.l.b16 %v1936
    %v2454 = vunpack.c.l.b16 %v1937
    %v2455 = vunpack.c.l.b16 %v1938
    %v2456 = vunpack.c.l.b16 %v1939
    %v2457 = vunpack.c.l.b16 %v1940
    %v2458 = vunpack.c.l.b16 %v1941
    %v2459 = vunpack.c.l.b16 %v1942
    %v2460 = vunpack.c.l.b16 %v1943
    %v2461 = vunpack.c.l.b16 %v1944
    %v2462 = vunpack.c.l.b16 %v1945
    %v2463 = vunpack.c.l.b16 %v1946
    %v2464 = vunpack.c.l.b16 %v1947
    %v2465 = vunpack.c.l.b16 %v1948
    %v2466 = vunpack.c.l.b16 %v1949
    %v2467 = vunpack.c.l.b16 %v1950
    %v2468 = vunpack.c.l.b16 %v1951
    %v2469 = vunpack.c.l.b16 %v1952
    %v2470 = vunpack.c.l.b16 %v1953
    %v2471 = vunpack.c.l.b16 %v1954
    %v2472 = vunpack.c.l.b16 %v1955
    %v2473 = vunpack.c.l.b16 %v1956
    %v2474 = vunpack.c.l.b16 %v1957
    %v2475 = vunpack.c.l.b16 %v1958
    %v2476 = vunpack.c.l.b16 %v1959
    %v2477 = vunpack.c.l.b16 %v1960
    %v2478 = vunpack.c.l.b16 %v1961
    %v2479 = vunpack.c.l.b16 %v1962
    %v2480 = vunpack.c.l.b16 %v1963
    %v2481 = vpack.c.b16 %v2226, %v2225
    %v2482 = vpack.c.b16 %v2228, %v2227
    %v2483 = vpack.c.b16 %v2230, %v2229
    %v2484 = vpack.c.b16 %v2232, %v2231
    %v2485 = vpack.c.b16 %v2234, %v2233
    %v2486 = vpack.c.b16 %v2236, %v2235
    %v2487 = vpack.c.b16 %v2238, %v2237
    %v2488 = vpack.c.b16 %v2240, %v2239
    %v2489 = vpack.c.b16 %v2242, %v2241
    %v2490 = vpack.c.b16 %v2244, %v2243
    %v2491 = vpack.c.b16 %v2246, %v2245
    %v2492 = vpack.c.b16 %v2248, %v2247
    %v2493 = vpack.c.b16 %v2250, %v2249
    %v2494 = vpack.c.b16 %v2252, %v2251
    %v2495 = vpack.c.b16 %v2254, %v2253
    %v2496 = vpack.c.b16 %v2256, %v2255
    %v2497 = vpack.c.b16 %v2258, %v2257
    %v2498 = vpack.c.b16 %v2260, %v2259
    %v2499 = vpack.c.b16 %v2262, %v2261
    %v2500 = vpack.c.b16 %v2264, %v2263
    %v2501 = vpack.c.b16 %v2266, %v2265
    %v2502 = vpack.c.b16 %v2268, %v2267
    %v2503 = vpack.c.b16 %v2270, %v2269
    %v2504 = vpack.c.b16 %v2272, %v2271
    %v2505 = vpack.c.b16 %v2274, %v2273
    %v2506 = vpack.c.b16 %v2276, %v2275
    %v2507 = vpack.c.b16 %v2278, %v2277
    %v2508 = vpack.c.b16 %v2280, %v2279
    %v2509 = vpack.c.b16 %v2282, %v2281
    %v2510 = vpack.c.b16 %v2284, %v2283
    %v2511 = vpack.c.b16 %v2286, %v2285
    %v2512 = vpack.c.b16 %v2288, %v2287
    %v2513 = vpack.c.b16 %v2290, %v2289
    %v2514 = vpack.c.b16 %v2292, %v2291
    %v2515 = vpack.c.b16 %v2294, %v2293
    %v2516 = vpack.c.b16 %v2296, %v2295
    %v2517 = vpack.c.b16 %v2298, %v2297
    %v2518 = vpack.c.b16 %v2300, %v2299
    %v2519 = vpack.c.b16 %v2302, %v2301
    %v2520 = vpack.c.b16 %v2304, %v2303
    %v2521 = vpack.c.b16 %v2306, %v2305
    %v2522 = vpack.c.b16 %v2308, %v2307
    %v2523 = vpack.c.b16 %v2310, %v2309
    %v2524 = vpack.c.b16 %v2312, %v2311
    %v2525 = vpack.c.b16 %v2314, %v2313
    %v2526 = vpack.c.b16 %v2316, %v2315
    %v2527 = vpack.c.b16 %v2318, %v2317
    %v2528 = vpack.c.b16 %v2320, %v2319
    %v2529 = vpack.c.b16 %v2322, %v2321
    %v2530 = vpack.c.b16 %v2324, %v2323
    %v2531 = vpack.c.b16 %v2326, %v2325
    %v2532 = vpack.c.b16 %v2328, %v2327
    %v2533 = vpack.c.b16 %v2330, %v2329
    %v2534 = vpack.c.b16 %v2332, %v2331
    %v2535 = vpack.c.b16 %v2334, %v2333
    %v2536 = vpack.c.b16 %v2336, %v2335
    %v2537 = vpack.c.b16 %v2338, %v2337
    %v2538 = vpack.c.b16 %v2340, %v2339
    %v2539 = vpack.c.b16 %v2342, %v2341
    %v2540 = vpack.c.b16 %v2344, %v2343
    %v2541 = vpack.c.b16 %v2346, %v2345
    %v2542 = vpack.c.b16 %v2348, %v2347
    %v2543 = vpack.c.b16 %v2350, %v2349
    %v2544 = vpack.c.b16 %v2352, %v2351
    %v2545 = vpack.c.b16 %v2354, %v2353
    %v2546 = vpack.c.b16 %v2356, %v2355
    %v2547 = vpack.c.b16 %v2358, %v2357
    %v2548 = vpack.c.b16 %v2360, %v2359
    %v2549 = vpack.c.b16 %v2362, %v2361
    %v2550 = vpack.c.b16 %v2364, %v2363
    %v2551 = vpack.c.b16 %v2366, %v2365
    %v2552 = vpack.c.b16 %v2368, %v2367
    %v2553 = vpack.c.b16 %v2370, %v2369
    %v2554 = vpack.c.b16 %v2372, %v2371
    %v2555 = vpack.c.b16 %v2374, %v2373
    %v2556 = vpack.c.b16 %v2376, %v2375
    %v2557 = vpack.c.b16 %v2378, %v2377
    %v2558 = vpack.c.b16 %v2380, %v2379
    %v2559 = vpack.c.b16 %v2382, %v2381
    %v2560 = vpack.c.b16 %v2384, %v2383
    %v2561 = vpack.c.b16 %v2386, %v2385
    %v2562 = vpack.c.b16 %v2388, %v2387
    %v2563 = vpack.c.b16 %v2390, %v2389
    %v2564 = vpack.c.b16 %v2392, %v2391
    %v2565 = vpack.c.b16 %v2394, %v2393
    %v2566 = vpack.c.b16 %v2396, %v2395
    %v2567 = vpack.c.b16 %v2398, %v2397
    %v2568 = vpack.c.b16 %v2400, %v2399
    %v2569 = vpack.c.b16 %v2402, %v2401
    %v2570 = vpack.c.b16 %v2404, %v2403
    %v2571 = vpack.c.b16 %v2406, %v2405
    %v2572 = vpack.c.b16 %v2408, %v2407
    %v2573 = vpack.c.b16 %v2410, %v2409
    %v2574 = vpack.c.b16 %v2412, %v2411
    %v2575 = vpack.c.b16 %v2414, %v2413
    %v2576 = vpack.c.b16 %v2416, %v2415
    %v2577 = vpack.c.b16 %v2418, %v2417
    %v2578 = vpack.c.b16 %v2420, %v2419
    %v2579 = vpack.c.b16 %v2422, %v2421
    %v2580 = vpack.c.b16 %v2424, %v2423
    %v2581 = vpack.c.b16 %v2426, %v2425
    %v2582 = vpack.c.b16 %v2428, %v2427
    %v2583 = vpack.c.b16 %v2430, %v2429
    %v2584 = vpack.c.b16 %v2432, %v2431
    %v2585 = vpack.c.b16 %v2434, %v2433
    %v2586 = vpack.c.b16 %v2436, %v2435
    %v2587 = vpack.c.b16 %v2438, %v2437
    %v2588 = vpack.c.b16 %v2440, %v2439
    %v2589 = vpack.c.b16 %v2442, %v2441
    %v2590 = vpack.c.b16 %v2444, %v2443
    %v2591 = vpack.c.b16 %v2446, %v2445
    %v2592 = vpack.c.b16 %v2448, %v2447
    %v2593 = vpack.c.b16 %v2450, %v2449
    %v2594 = vpack.c.b16 %v2452, %v2451
    %v2595 = vpack.c.b16 %v2454, %v2453
    %v2596 = vpack.c.b16 %v2456, %v2455
    %v2597 = vpack.c.b16 %v2458, %v2457
    %v2598 = vpack.c.b16 %v2460, %v2459
    %v2599 = vpack.c.b16 %v2462, %v2461
    %v2600 = vpack.c.b16 %v2464, %v2463
    %v2601 = vpack.c.b16 %v2466, %v2465
    %v2602 = vpack.c.b16 %v2468, %v2467
    %v2603 = vpack.c.b16 %v2470, %v2469
    %v2604 = vpack.c.b16 %v2472, %v2471
    %v2605 = vpack.c.b16 %v2474, %v2473
    %v2606 = vpack.c.b16 %v2476, %v2475
    %v2607 = vpack.c.b16 %v2478, %v2477
    %v2608 = vpack.c.b16 %v2480, %v2479
    %2737 = vmatprep.subr.bf16.mxu0 0
    %2738 = vmatpush1.bf16.msra.mxu0 %v2481
    %2739 = vmatprep.subr.bf16.mxu0 0
    %2740 = vmatpush1.bf16.msra.mxu0 %v2482
    %2741 = vmatprep.subr.bf16.mxu0 0
    %2742 = vmatpush1.bf16.msra.mxu0 %v2483
    %2743 = vmatprep.subr.bf16.mxu0 0
    %2744 = vmatpush1.bf16.msra.mxu0 %v2484
    %2745 = vmatprep.subr.bf16.mxu0 0
    %2746 = vmatpush1.bf16.msra.mxu0 %v2485
    %2747 = vmatprep.subr.bf16.mxu0 0
    %2748 = vmatpush1.bf16.msra.mxu0 %v2486
    %2749 = vmatprep.subr.bf16.mxu0 0
    %2750 = vmatpush1.bf16.msra.mxu0 %v2487
    %2751 = vmatprep.subr.bf16.mxu0 0
    %2752 = vmatpush1.bf16.msra.mxu0 %v2488
    %2753 = vmatprep.subr.bf16.mxu0 0
    %2754 = vmatpush1.bf16.msra.mxu0 %v2489
    %2755 = vmatprep.subr.bf16.mxu0 0
    %2756 = vmatpush1.bf16.msra.mxu0 %v2490
    %2757 = vmatprep.subr.bf16.mxu0 0
    %2758 = vmatpush1.bf16.msra.mxu0 %v2491
    %2759 = vmatprep.subr.bf16.mxu0 0
    %2760 = vmatpush1.bf16.msra.mxu0 %v2492
    %2761 = vmatprep.subr.bf16.mxu0 0
    %2762 = vmatpush1.bf16.msra.mxu0 %v2493
    %2763 = vmatprep.subr.bf16.mxu0 0
    %2764 = vmatpush1.bf16.msra.mxu0 %v2494
    %2765 = vmatprep.subr.bf16.mxu0 0
    %2766 = vmatpush1.bf16.msra.mxu0 %v2495
    %2767 = vmatprep.subr.bf16.mxu0 0
    %2768 = vmatpush1.bf16.msra.mxu0 %v2496
    %2769 = vmatprep.mubr.bf16.mxu0 %v1693
    %2770 = vmatmul.mubr.bf16.gmra.mrb[0].mxu0 %v1692
    %v2771 = vpop.f32.mrb[0].mxu0
    %v2772 = vadd.f32 %v1968, %v2771
    %v2773 = vpop.f32.mrb[0].mxu0
    %v2774 = vpop.f32.mrb[0].mxu0
    %v2775 = vpop.f32.mrb[0].mxu0
    %2776 = vdwg.mxu0
    %2777 = vmatprep.subr.bf16.mxu0 0
    %2778 = vmatpush1.bf16.msra.mxu0 %v2497
    %2779 = vmatprep.subr.bf16.mxu0 0
    %2780 = vmatpush1.bf16.msra.mxu0 %v2498
    %2781 = vmatprep.subr.bf16.mxu0 0
    %2782 = vmatpush1.bf16.msra.mxu0 %v2499
    %2783 = vmatprep.subr.bf16.mxu0 0
    %2784 = vmatpush1.bf16.msra.mxu0 %v2500
    %2785 = vmatprep.subr.bf16.mxu0 0
    %2786 = vmatpush1.bf16.msra.mxu0 %v2501
    %2787 = vmatprep.subr.bf16.mxu0 0
    %2788 = vmatpush1.bf16.msra.mxu0 %v2502
    %2789 = vmatprep.subr.bf16.mxu0 0
    %2790 = vmatpush1.bf16.msra.mxu0 %v2503
    %2791 = vmatprep.subr.bf16.mxu0 0
    %2792 = vmatpush1.bf16.msra.mxu0 %v2504
    %2793 = vmatprep.subr.bf16.mxu0 0
    %2794 = vmatpush1.bf16.msra.mxu0 %v2505
    %2795 = vmatprep.subr.bf16.mxu0 0
    %2796 = vmatpush1.bf16.msra.mxu0 %v2506
    %2797 = vmatprep.subr.bf16.mxu0 0
    %2798 = vmatpush1.bf16.msra.mxu0 %v2507
    %2799 = vmatprep.subr.bf16.mxu0 0
    %2800 = vmatpush1.bf16.msra.mxu0 %v2508
    %2801 = vmatprep.subr.bf16.mxu0 0
    %2802 = vmatpush1.bf16.msra.mxu0 %v2509
    %2803 = vmatprep.subr.bf16.mxu0 0
    %2804 = vmatpush1.bf16.msra.mxu0 %v2510
    %2805 = vmatprep.subr.bf16.mxu0 0
    %2806 = vmatpush1.bf16.msra.mxu0 %v2511
    %2807 = vmatprep.subr.bf16.mxu0 0
    %2808 = vmatpush1.bf16.msra.mxu0 %v2512
    %2809 = vmatprep.mubr.bf16.mxu0 %v1695
    %2810 = vmatmul.mubr.bf16.gmra.mrb[0].mxu0 %v1694
    %v2811 = vpop.f32.mrb[0].mxu0
    %v2812 = vadd.f32 %v2772, %v2811
    %v2813 = vpop.f32.mrb[0].mxu0
    %v2814 = vpop.f32.mrb[0].mxu0
    %v2815 = vpop.f32.mrb[0].mxu0
    %2816 = vdwg.mxu0
    %2817 = vmatprep.subr.bf16.mxu0 0
    %2818 = vmatpush1.bf16.msra.mxu0 %v2513
    %2819 = vmatprep.subr.bf16.mxu0 0
    %2820 = vmatpush1.bf16.msra.mxu0 %v2514
    %2821 = vmatprep.subr.bf16.mxu0 0
    %2822 = vmatpush1.bf16.msra.mxu0 %v2515
    %2823 = vmatprep.subr.bf16.mxu0 0
    %2824 = vmatpush1.bf16.msra.mxu0 %v2516
    %2825 = vmatprep.subr.bf16.mxu0 0
    %2826 = vmatpush1.bf16.msra.mxu0 %v2517
    %2827 = vmatprep.subr.bf16.mxu0 0
    %2828 = vmatpush1.bf16.msra.mxu0 %v2518
    %2829 = vmatprep.subr.bf16.mxu0 0
    %2830 = vmatpush1.bf16.msra.mxu0 %v2519
    %2831 = vmatprep.subr.bf16.mxu0 0
    %2832 = vmatpush1.bf16.msra.mxu0 %v2520
    %2833 = vmatprep.subr.bf16.mxu0 0
    %2834 = vmatpush1.bf16.msra.mxu0 %v2521
    %2835 = vmatprep.subr.bf16.mxu0 0
    %2836 = vmatpush1.bf16.msra.mxu0 %v2522
    %2837 = vmatprep.subr.bf16.mxu0 0
    %2838 = vmatpush1.bf16.msra.mxu0 %v2523
    %2839 = vmatprep.subr.bf16.mxu0 0
    %2840 = vmatpush1.bf16.msra.mxu0 %v2524
    %2841 = vmatprep.subr.bf16.mxu0 0
    %2842 = vmatpush1.bf16.msra.mxu0 %v2525
    %2843 = vmatprep.subr.bf16.mxu0 0
    %2844 = vmatpush1.bf16.msra.mxu0 %v2526
    %2845 = vmatprep.subr.bf16.mxu0 0
    %2846 = vmatpush1.bf16.msra.mxu0 %v2527
    %2847 = vmatprep.subr.bf16.mxu0 0
    %2848 = vmatpush1.bf16.msra.mxu0 %v2528
    %2849 = vmatprep.mubr.bf16.mxu0 %v1697
    %2850 = vmatmul.mubr.bf16.gmra.mrb[0].mxu0 %v1696
    %v2851 = vpop.f32.mrb[0].mxu0
    %v2852 = vadd.f32 %v2812, %v2851
    %v2853 = vpop.f32.mrb[0].mxu0
    %v2854 = vpop.f32.mrb[0].mxu0
    %v2855 = vpop.f32.mrb[0].mxu0
    %2856 = vdwg.mxu0
    %2857 = vmatprep.subr.bf16.mxu0 0
    %2858 = vmatpush1.bf16.msra.mxu0 %v2529
    %2859 = vmatprep.subr.bf16.mxu0 0
    %2860 = vmatpush1.bf16.msra.mxu0 %v2530
    %2861 = vmatprep.subr.bf16.mxu0 0
    %2862 = vmatpush1.bf16.msra.mxu0 %v2531
    %2863 = vmatprep.subr.bf16.mxu0 0
    %2864 = vmatpush1.bf16.msra.mxu0 %v2532
    %2865 = vmatprep.subr.bf16.mxu0 0
    %2866 = vmatpush1.bf16.msra.mxu0 %v2533
    %2867 = vmatprep.subr.bf16.mxu0 0
    %2868 = vmatpush1.bf16.msra.mxu0 %v2534
    %2869 = vmatprep.subr.bf16.mxu0 0
    %2870 = vmatpush1.bf16.msra.mxu0 %v2535
    %2871 = vmatprep.subr.bf16.mxu0 0
    %2872 = vmatpush1.bf16.msra.mxu0 %v2536
    %2873 = vmatprep.subr.bf16.mxu0 0
    %2874 = vmatpush1.bf16.msra.mxu0 %v2537
    %2875 = vmatprep.subr.bf16.mxu0 0
    %2876 = vmatpush1.bf16.msra.mxu0 %v2538
    %2877 = vmatprep.subr.bf16.mxu0 0
    %2878 = vmatpush1.bf16.msra.mxu0 %v2539
    %2879 = vmatprep.subr.bf16.mxu0 0
    %2880 = vmatpush1.bf16.msra.mxu0 %v2540
    %2881 = vmatprep.subr.bf16.mxu0 0
    %2882 = vmatpush1.bf16.msra.mxu0 %v2541
    %2883 = vmatprep.subr.bf16.mxu0 0
    %2884 = vmatpush1.bf16.msra.mxu0 %v2542
    %2885 = vmatprep.subr.bf16.mxu0 0
    %2886 = vmatpush1.bf16.msra.mxu0 %v2543
    %2887 = vmatprep.subr.bf16.mxu0 0
    %2888 = vmatpush1.bf16.msra.mxu0 %v2544
    %2889 = vmatprep.mubr.bf16.mxu0 %v1699
    %2890 = vmatmul.mubr.bf16.gmra.mrb[0].mxu0 %v1698
    %v2891 = vpop.f32.mrb[0].mxu0
    %v2892 = vadd.f32 %v2852, %v2891
    %v2893 = vpop.f32.mrb[0].mxu0
    %v2894 = vpop.f32.mrb[0].mxu0
    %v2895 = vpop.f32.mrb[0].mxu0
    %2896 = vdwg.mxu0
    %2897 = vmatprep.subr.bf16.mxu0 0
    %2898 = vmatpush1.bf16.msra.mxu0 %v2545
    %2899 = vmatprep.subr.bf16.mxu0 0
    %2900 = vmatpush1.bf16.msra.mxu0 %v2546
    %2901 = vmatprep.subr.bf16.mxu0 0
    %2902 = vmatpush1.bf16.msra.mxu0 %v2547
    %2903 = vmatprep.subr.bf16.mxu0 0
    %2904 = vmatpush1.bf16.msra.mxu0 %v2548
    %2905 = vmatprep.subr.bf16.mxu0 0
    %2906 = vmatpush1.bf16.msra.mxu0 %v2549
    %2907 = vmatprep.subr.bf16.mxu0 0
    %2908 = vmatpush1.bf16.msra.mxu0 %v2550
    %2909 = vmatprep.subr.bf16.mxu0 0
    %2910 = vmatpush1.bf16.msra.mxu0 %v2551
    %2911 = vmatprep.subr.bf16.mxu0 0
    %2912 = vmatpush1.bf16.msra.mxu0 %v2552
    %2913 = vmatprep.subr.bf16.mxu0 0
    %2914 = vmatpush1.bf16.msra.mxu0 %v2553
    %2915 = vmatprep.subr.bf16.mxu0 0
    %2916 = vmatpush1.bf16.msra.mxu0 %v2554
    %2917 = vmatprep.subr.bf16.mxu0 0
    %2918 = vmatpush1.bf16.msra.mxu0 %v2555
    %2919 = vmatprep.subr.bf16.mxu0 0
    %2920 = vmatpush1.bf16.msra.mxu0 %v2556
    %2921 = vmatprep.subr.bf16.mxu0 0
    %2922 = vmatpush1.bf16.msra.mxu0 %v2557
    %2923 = vmatprep.subr.bf16.mxu0 0
    %2924 = vmatpush1.bf16.msra.mxu0 %v2558
    %2925 = vmatprep.subr.bf16.mxu0 0
    %2926 = vmatpush1.bf16.msra.mxu0 %v2559
    %2927 = vmatprep.subr.bf16.mxu0 0
    %2928 = vmatpush1.bf16.msra.mxu0 %v2560
    %2929 = vmatprep.mubr.bf16.mxu0 %v1701
    %2930 = vmatmul.mubr.bf16.gmra.mrb[0].mxu0 %v1700
    %v2931 = vpop.f32.mrb[0].mxu0
    %v2932 = vadd.f32 %v2892, %v2931
    %v2933 = vpop.f32.mrb[0].mxu0
    %v2934 = vpop.f32.mrb[0].mxu0
    %v2935 = vpop.f32.mrb[0].mxu0
    %2936 = vdwg.mxu0
    %2937 = vmatprep.subr.bf16.mxu0 0
    %2938 = vmatpush1.bf16.msra.mxu0 %v2561
    %2939 = vmatprep.subr.bf16.mxu0 0
    %2940 = vmatpush1.bf16.msra.mxu0 %v2562
    %2941 = vmatprep.subr.bf16.mxu0 0
    %2942 = vmatpush1.bf16.msra.mxu0 %v2563
    %2943 = vmatprep.subr.bf16.mxu0 0
    %2944 = vmatpush1.bf16.msra.mxu0 %v2564
    %2945 = vmatprep.subr.bf16.mxu0 0
    %2946 = vmatpush1.bf16.msra.mxu0 %v2565
    %2947 = vmatprep.subr.bf16.mxu0 0
    %2948 = vmatpush1.bf16.msra.mxu0 %v2566
    %2949 = vmatprep.subr.bf16.mxu0 0
    %2950 = vmatpush1.bf16.msra.mxu0 %v2567
    %2951 = vmatprep.subr.bf16.mxu0 0
    %2952 = vmatpush1.bf16.msra.mxu0 %v2568
    %2953 = vmatprep.subr.bf16.mxu0 0
    %2954 = vmatpush1.bf16.msra.mxu0 %v2569
    %2955 = vmatprep.subr.bf16.mxu0 0
    %2956 = vmatpush1.bf16.msra.mxu0 %v2570
    %2957 = vmatprep.subr.bf16.mxu0 0
    %2958 = vmatpush1.bf16.msra.mxu0 %v2571
    %2959 = vmatprep.subr.bf16.mxu0 0
    %2960 = vmatpush1.bf16.msra.mxu0 %v2572
    %2961 = vmatprep.subr.bf16.mxu0 0
    %2962 = vmatpush1.bf16.msra.mxu0 %v2573
    %2963 = vmatprep.subr.bf16.mxu0 0
    %2964 = vmatpush1.bf16.msra.mxu0 %v2574
    %2965 = vmatprep.subr.bf16.mxu0 0
    %2966 = vmatpush1.bf16.msra.mxu0 %v2575
    %2967 = vmatprep.subr.bf16.mxu0 0
    %2968 = vmatpush1.bf16.msra.mxu0 %v2576
    %2969 = vmatprep.mubr.bf16.mxu0 %v1703
    %2970 = vmatmul.mubr.bf16.gmra.mrb[0].mxu0 %v1702
    %v2971 = vpop.f32.mrb[0].mxu0
    %v2972 = vadd.f32 %v2932, %v2971
    %v2973 = vpop.f32.mrb[0].mxu0
    %v2974 = vpop.f32.mrb[0].mxu0
    %v2975 = vpop.f32.mrb[0].mxu0
    %2976 = vdwg.mxu0
    %2977 = vmatprep.subr.bf16.mxu0 0
    %2978 = vmatpush1.bf16.msra.mxu0 %v2577
    %2979 = vmatprep.subr.bf16.mxu0 0
    %2980 = vmatpush1.bf16.msra.mxu0 %v2578
    %2981 = vmatprep.subr.bf16.mxu0 0
    %2982 = vmatpush1.bf16.msra.mxu0 %v2579
    %2983 = vmatprep.subr.bf16.mxu0 0
    %2984 = vmatpush1.bf16.msra.mxu0 %v2580
    %2985 = vmatprep.subr.bf16.mxu0 0
    %2986 = vmatpush1.bf16.msra.mxu0 %v2581
    %2987 = vmatprep.subr.bf16.mxu0 0
    %2988 = vmatpush1.bf16.msra.mxu0 %v2582
    %2989 = vmatprep.subr.bf16.mxu0 0
    %2990 = vmatpush1.bf16.msra.mxu0 %v2583
    %2991 = vmatprep.subr.bf16.mxu0 0
    %2992 = vmatpush1.bf16.msra.mxu0 %v2584
    %2993 = vmatprep.subr.bf16.mxu0 0
    %2994 = vmatpush1.bf16.msra.mxu0 %v2585
    %2995 = vmatprep.subr.bf16.mxu0 0
    %2996 = vmatpush1.bf16.msra.mxu0 %v2586
    %2997 = vmatprep.subr.bf16.mxu0 0
    %2998 = vmatpush1.bf16.msra.mxu0 %v2587
    %2999 = vmatprep.subr.bf16.mxu0 0
    %3000 = vmatpush1.bf16.msra.mxu0 %v2588
    %3001 = vmatprep.subr.bf16.mxu0 0
    %3002 = vmatpush1.bf16.msra.mxu0 %v2589
    %3003 = vmatprep.subr.bf16.mxu0 0
    %3004 = vmatpush1.bf16.msra.mxu0 %v2590
    %3005 = vmatprep.subr.bf16.mxu0 0
    %3006 = vmatpush1.bf16.msra.mxu0 %v2591
    %3007 = vmatprep.subr.bf16.mxu0 0
    %3008 = vmatpush1.bf16.msra.mxu0 %v2592
    %3009 = vmatprep.mubr.bf16.mxu0 %v1705
    %3010 = vmatmul.mubr.bf16.gmra.mrb[0].mxu0 %v1704
    %v3011 = vpop.f32.mrb[0].mxu0
    %v3012 = vadd.f32 %v2972, %v3011
    %v3013 = vpop.f32.mrb[0].mxu0
    %v3014 = vpop.f32.mrb[0].mxu0
    %v3015 = vpop.f32.mrb[0].mxu0
    %3016 = vdwg.mxu0
    %3017 = vmatprep.subr.bf16.mxu0 0
    %3018 = vmatpush1.bf16.msra.mxu0 %v2593
    %3019 = vmatprep.subr.bf16.mxu0 0
    %3020 = vmatpush1.bf16.msra.mxu0 %v2594
    %3021 = vmatprep.subr.bf16.mxu0 0
    %3022 = vmatpush1.bf16.msra.mxu0 %v2595
    %3023 = vmatprep.subr.bf16.mxu0 0
    %3024 = vmatpush1.bf16.msra.mxu0 %v2596
    %3025 = vmatprep.subr.bf16.mxu0 0
    %3026 = vmatpush1.bf16.msra.mxu0 %v2597
    %3027 = vmatprep.subr.bf16.mxu0 0
    %3028 = vmatpush1.bf16.msra.mxu0 %v2598
    %3029 = vmatprep.subr.bf16.mxu0 0
    %3030 = vmatpush1.bf16.msra.mxu0 %v2599
    %3031 = vmatprep.subr.bf16.mxu0 0
    %3032 = vmatpush1.bf16.msra.mxu0 %v2600
    %3033 = vmatprep.subr.bf16.mxu0 0
    %3034 = vmatpush1.bf16.msra.mxu0 %v2601
    %3035 = vmatprep.subr.bf16.mxu0 0
    %3036 = vmatpush1.bf16.msra.mxu0 %v2602
    %3037 = vmatprep.subr.bf16.mxu0 0
    %3038 = vmatpush1.bf16.msra.mxu0 %v2603
    %3039 = vmatprep.subr.bf16.mxu0 0
    %3040 = vmatpush1.bf16.msra.mxu0 %v2604
    %3041 = vmatprep.subr.bf16.mxu0 0
    %3042 = vmatpush1.bf16.msra.mxu0 %v2605
    %3043 = vmatprep.subr.bf16.mxu0 0
    %3044 = vmatpush1.bf16.msra.mxu0 %v2606
    %3045 = vmatprep.subr.bf16.mxu0 0
    %3046 = vmatpush1.bf16.msra.mxu0 %v2607
    %3047 = vmatprep.subr.bf16.mxu0 0
    %3048 = vmatpush1.bf16.msra.mxu0 %v2608
    %3049 = vmatprep.mubr.bf16.mxu0 %v1707
    %3050 = vmatmul.mubr.bf16.gmra.mrb[0].mxu0 %v1706
    %v3051 = vpop.f32.mrb[0].mxu0
    %v3052 = vadd.f32 %v3012, %v3051
    %v3053 = vpop.f32.mrb[0].mxu0
    %v3054 = vpop.f32.mrb[0].mxu0
    %v3055 = vpop.f32.mrb[0].mxu0
    %3056 = vdwg.mxu0
    %v3057 = vadd.f32 %v1067, %v3052
    %v3058 = vld [vmem:[%s1 + $0xa8] sm:$0x1]
    %v3059 = vld [vmem:[%s1 + $0xb0] sm:$0x1]
    %v3060 = vsel %vm184, %v3057, 0.0
    %3061 = vadd.xlane.f32.xlu0 %v3060
    %v3062 = vpop.xlane.xlu0 %3061
    %v3063 = vmul.f32 %v3062, %v1047
    %v3064 = vsub.f32 %v3057, %v3063
    %v3065 = vmul.f32 %v3064, %v3064
    %v3066 = vsel %vm184, %v3065, 0.0
    %3067 = vadd.xlane.f32.xlu0 %v3066
    %v3068 = vpop.xlane.xlu0 %3067
    %v3069 = vmul.f32 %v3068, %v1047
    %v3070 = vadd.f32 %v3069, 1e-05
    %v3071 = vrsqrt.pop %v3070
    %v3072 = vmul.f32 %v3064, %v3071
    %v3073 = vlaneseq
    %v3074 = vshrl.u32 %v3073, 7
    %v3075 = vsub.s32 0, %v3074
    %v3076 = vrot.slane %v3058, %v3075
    %v3077 = vmul.f32 %v3072, %v3076
    %v3078 = vlaneseq
    %v3079 = vshrl.u32 %v3078, 7
    %v3080 = vsub.s32 0, %v3079
    %v3081 = vrot.slane %v3059, %v3080
    %v3082 = vadd.f32 %v3077, %v3081
    %v3083 = vld [vmem:[%s1 + $0xb8] sm:$0xff]
    %v3084 = vadd.f32 %v3082, %v3083
    %v3085 = vld [vmem:[%s1 + $0xc0] sm:$0xff]
    %v3086 = vld [vmem:[%s1 + $0xc8] sm:$0xff]
    %v3087 = vld [vmem:[%s1 + $0xd0] sm:$0xff]
    %v3088 = vld [vmem:[%s1 + $0xd8] sm:$0xff]
    %v3090 = vsel %vm184, %v3084, 0
    %3092 = vmatprep.subr.mxu0 0.0
    %3093 = vmatpush1.msra.mxu0 %v3085
    %3094 = vmatprep.subr.mxu0 0.0
    %3095 = vmatpush1.msra.mxu0 %v3086
    %3096 = vmatprep.subr.mxu0 0.0
    %3097 = vmatpush1.msra.mxu0 %v3087
    %3098 = vmatprep.subr.mxu0 0.0
    %3099 = vmatpush1.msra.mxu0 %v3088
    %3100 = vmatprep.subr.mxu0 0.0
    %3101 = vmatpush1.msra.mxu0 0.0
    %3102 = vmatprep.subr.mxu0 0.0
    %3103 = vmatpush1.msra.mxu0 0.0
    %3104 = vmatprep.subr.mxu0 0.0
    %3105 = vmatpush1.msra.mxu0 0.0
    %3106 = vmatprep.subr.mxu0 0.0
    %3107 = vmatpush1.msra.mxu0 0.0
    %3108 = vmatprep.subr.mxu0 0.0
    %3109 = vmatpush1.msra.mxu0 0.0
    %3110 = vmatprep.subr.mxu0 0.0
    %3111 = vmatpush1.msra.mxu0 0.0
    %3112 = vmatprep.subr.mxu0 0.0
    %3113 = vmatpush1.msra.mxu0 0.0
    %3114 = vmatprep.subr.mxu0 0.0
    %3115 = vmatpush1.msra.mxu0 0.0
    %3116 = vmatprep.subr.mxu0 0.0
    %3117 = vmatpush1.msra.mxu0 0.0
    %3118 = vmatprep.subr.mxu0 0.0
    %3119 = vmatpush1.msra.mxu0 0.0
    %3120 = vmatprep.subr.mxu0 0.0
    %3121 = vmatpush1.msra.mxu0 0.0
    %3122 = vmatprep.subr.mxu0 0.0
    %3123 = vmatpush1.msra.mxu0 0.0
    %3124 = vmatprep.subr.mxu0 0.0
    %3125 = vmatpush1.msra.mxu0 0.0
    %3126 = vmatprep.subr.mxu0 0.0
    %3127 = vmatpush1.msra.mxu0 0.0
    %3128 = vmatprep.subr.mxu0 0.0
    %3129 = vmatpush1.msra.mxu0 0.0
    %3130 = vmatprep.subr.mxu0 0.0
    %3131 = vmatpush1.msra.mxu0 0.0
    %3132 = vmatprep.subr.mxu0 0.0
    %3133 = vmatpush1.msra.mxu0 0.0
    %3134 = vmatprep.subr.mxu0 0.0
    %3135 = vmatpush1.msra.mxu0 0.0
    %3136 = vmatprep.subr.mxu0 0.0
    %3137 = vmatpush1.msra.mxu0 0.0
    %3138 = vmatprep.subr.mxu0 0.0
    %3139 = vmatpush1.msra.mxu0 0.0
    %3140 = vmatprep.subr.mxu0 0.0
    %3141 = vmatpush1.msra.mxu0 0.0
    %3142 = vmatprep.subr.mxu0 0.0
    %3143 = vmatpush1.msra.mxu0 0.0
    %3144 = vmatprep.subr.mxu0 0.0
    %3145 = vmatpush1.msra.mxu0 0.0
    %3146 = vmatprep.subr.mxu0 0.0
    %3147 = vmatpush1.msra.mxu0 0.0
    %3148 = vmatprep.subr.mxu0 0.0
    %3149 = vmatpush1.msra.mxu0 0.0
    %3150 = vmatprep.subr.mxu0 0.0
    %3151 = vmatpush1.msra.mxu0 0.0
    %3152 = vmatprep.subr.mxu0 0.0
    %3153 = vmatpush1.msra.mxu0 0.0
    %3154 = vmatprep.subr.mxu0 0.0
    %3155 = vmatpush1.msra.mxu0 0.0
    %3156 = vmatprep.mubr.f32.mxu0 0.0
    %3157 = vmatmul.mubr.f32.gmra.mrb[0].mxu0 %v3090
    %v3158 = vpop.f32.mrb[0].mxu0
    %v3159 = vadd.f32 0.0, %v3158
    %v3160 = vpop.f32.mrb[0].mxu0
    %3161 = vdwg.mxu0
    %3163 = vrot.lane.b32.xlu0 %v3159, 96
    %v3164 = vpop.permute.xlu0 %3163
    %v3165 = vsel %vm184, %v3159, 0
    %v3167 = vsel %vm184, %v3164, 0
    %3169 = vmatprep.subr.mxu0 0.0
    %3170 = vmatpush1.xpose.msra.mxu0 %v3167
    %3171 = vmatprep.subr.mxu0 0.0
    %3172 = vmatpush1.xpose.msra.mxu0 0.0
    %3173 = vmatprep.subr.mxu0 0.0
    %3174 = vmatpush1.xpose.msra.mxu0 0.0
    %3175 = vmatprep.subr.mxu0 0.0
    %3176 = vmatpush1.xpose.msra.mxu0 0.0
    %3177 = vmatprep.subr.mxu0 0.0
    %3178 = vmatpush1.xpose.msra.mxu0 0.0
    %3179 = vmatprep.subr.mxu0 0.0
    %3180 = vmatpush1.xpose.msra.mxu0 0.0
    %3181 = vmatprep.subr.mxu0 0.0
    %3182 = vmatpush1.xpose.msra.mxu0 0.0
    %3183 = vmatprep.subr.mxu0 0.0
    %3184 = vmatpush1.xpose.msra.mxu0 0.0
    %3185 = vmatprep.subr.mxu0 0.0
    %3186 = vmatpush1.xpose.msra.mxu0 0.0
    %3187 = vmatprep.subr.mxu0 0.0
    %3188 = vmatpush1.xpose.msra.mxu0 0.0
    %3189 = vmatprep.subr.mxu0 0.0
    %3190 = vmatpush1.xpose.msra.mxu0 0.0
    %3191 = vmatprep.subr.mxu0 0.0
    %3192 = vmatpush1.xpose.msra.mxu0 0.0
    %3193 = vmatprep.subr.mxu0 0.0
    %3194 = vmatpush1.xpose.msra.mxu0 0.0
    %3195 = vmatprep.subr.mxu0 0.0
    %3196 = vmatpush1.xpose.msra.mxu0 0.0
    %3197 = vmatprep.subr.mxu0 0.0
    %3198 = vmatpush1.xpose.msra.mxu0 0.0
    %3199 = vmatprep.subr.mxu0 0.0
    %3200 = vmatpush1.xpose.msra.mxu0 0.0
    %3201 = vmatprep.subr.mxu0 0.0
    %3202 = vmatpush1.xpose.msra.mxu0 0.0
    %3203 = vmatprep.subr.mxu0 0.0
    %3204 = vmatpush1.xpose.msra.mxu0 0.0
    %3205 = vmatprep.subr.mxu0 0.0
    %3206 = vmatpush1.xpose.msra.mxu0 0.0
    %3207 = vmatprep.subr.mxu0 0.0
    %3208 = vmatpush1.xpose.msra.mxu0 0.0
    %3209 = vmatprep.subr.mxu0 0.0
    %3210 = vmatpush1.xpose.msra.mxu0 0.0
    %3211 = vmatprep.subr.mxu0 0.0
    %3212 = vmatpush1.xpose.msra.mxu0 0.0
    %3213 = vmatprep.subr.mxu0 0.0
    %3214 = vmatpush1.xpose.msra.mxu0 0.0
    %3215 = vmatprep.subr.mxu0 0.0
    %3216 = vmatpush1.xpose.msra.mxu0 0.0
    %3217 = vmatprep.subr.mxu0 0.0
    %3218 = vmatpush1.xpose.msra.mxu0 0.0
    %3219 = vmatprep.subr.mxu0 0.0
    %3220 = vmatpush1.xpose.msra.mxu0 0.0
    %3221 = vmatprep.subr.mxu0 0.0
    %3222 = vmatpush1.xpose.msra.mxu0 0.0
    %3223 = vmatprep.subr.mxu0 0.0
    %3224 = vmatpush1.xpose.msra.mxu0 0.0
    %3225 = vmatprep.subr.mxu0 0.0
    %3226 = vmatpush1.xpose.msra.mxu0 0.0
    %3227 = vmatprep.subr.mxu0 0.0
    %3228 = vmatpush1.xpose.msra.mxu0 0.0
    %3229 = vmatprep.subr.mxu0 0.0
    %3230 = vmatpush1.xpose.msra.mxu0 0.0
    %3231 = vmatprep.subr.mxu0 0.0
    %3232 = vmatpush1.xpose.msra.mxu0 0.0
    %3233 = vmatprep.mubr.f32.mxu0 0.0
    %3234 = vmatmul.mubr.f32.gmra.mrb[0].mxu0 %v3165
    %v3235 = vpop.f32.mrb[0].mxu0
    %v3236 = vadd.f32 0.0, %v3235
    %v3237 = vpop.f32.mrb[0].mxu0
    %3238 = vdwg.mxu0
    %v3239 = vrcp.pop 5.656854
    %v3240 = vmul.f32 %v3236, %v3239
    %v3241 = vld [vmem:[%s1 + $0xe0] sm:$0xff]
    %vm3242 = vcmp.gt.f32.partialorder %v3241, 0.5
    %v3243 = vsel %vm3242, %v3240, -1e+30
    %vm3244 = vcmask 64512
    %v3245 = vsel %vm3244, %v3243, -inf
    %3246 = vmax.xlane.f32.xlu0 %v3245
    %v3247 = vpop.xlane.xlu0 %3246
    %v3248 = vsub.f32 %v3243, %v3247
    %v3249 = vmul.f32 %v3248, 1.442695
    %v3250 = vpow.pop %v3249
    %v3251 = vsel %vm3244, %v3250, 0.0
    %3252 = vadd.xlane.f32.xlu0 %v3251
    %v3253 = vpop.xlane.xlu0 %3252
    %v3254 = vrcp.pop %v3253
    %v3255 = vmul.f32 %v3250, %v3254
    %v3257 = vsel %vm3244, %v3255, 0
    %3259 = vmatprep.subr.mxu0 0.0
    %3260 = vmatpush1.msra.mxu0 %v3084
    %3261 = vmatprep.subr.mxu0 0.0
    %3262 = vmatpush1.msra.mxu0 0.0
    %3263 = vmatprep.subr.mxu0 0.0
    %3264 = vmatpush1.msra.mxu0 0.0
    %3265 = vmatprep.subr.mxu0 0.0
    %3266 = vmatpush1.msra.mxu0 0.0
    %3267 = vmatprep.subr.mxu0 0.0
    %3268 = vmatpush1.msra.mxu0 0.0
    %3269 = vmatprep.subr.mxu0 0.0
    %3270 = vmatpush1.msra.mxu0 0.0
    %3271 = vmatprep.subr.mxu0 0.0
    %3272 = vmatpush1.msra.mxu0 0.0
    %3273 = vmatprep.subr.mxu0 0.0
    %3274 = vmatpush1.msra.mxu0 0.0
    %3275 = vmatprep.subr.mxu0 0.0
    %3276 = vmatpush1.msra.mxu0 0.0
    %3277 = vmatprep.subr.mxu0 0.0
    %3278 = vmatpush1.msra.mxu0 0.0
    %3279 = vmatprep.subr.mxu0 0.0
    %3280 = vmatpush1.msra.mxu0 0.0
    %3281 = vmatprep.subr.mxu0 0.0
    %3282 = vmatpush1.msra.mxu0 0.0
    %3283 = vmatprep.subr.mxu0 0.0
    %3284 = vmatpush1.msra.mxu0 0.0
    %3285 = vmatprep.subr.mxu0 0.0
    %3286 = vmatpush1.msra.mxu0 0.0
    %3287 = vmatprep.subr.mxu0 0.0
    %3288 = vmatpush1.msra.mxu0 0.0
    %3289 = vmatprep.subr.mxu0 0.0
    %3290 = vmatpush1.msra.mxu0 0.0
    %3291 = vmatprep.subr.mxu0 0.0
    %3292 = vmatpush1.msra.mxu0 0.0
    %3293 = vmatprep.subr.mxu0 0.0
    %3294 = vmatpush1.msra.mxu0 0.0
    %3295 = vmatprep.subr.mxu0 0.0
    %3296 = vmatpush1.msra.mxu0 0.0
    %3297 = vmatprep.subr.mxu0 0.0
    %3298 = vmatpush1.msra.mxu0 0.0
    %3299 = vmatprep.subr.mxu0 0.0
    %3300 = vmatpush1.msra.mxu0 0.0
    %3301 = vmatprep.subr.mxu0 0.0
    %3302 = vmatpush1.msra.mxu0 0.0
    %3303 = vmatprep.subr.mxu0 0.0
    %3304 = vmatpush1.msra.mxu0 0.0
    %3305 = vmatprep.subr.mxu0 0.0
    %3306 = vmatpush1.msra.mxu0 0.0
    %3307 = vmatprep.subr.mxu0 0.0
    %3308 = vmatpush1.msra.mxu0 0.0
    %3309 = vmatprep.subr.mxu0 0.0
    %3310 = vmatpush1.msra.mxu0 0.0
    %3311 = vmatprep.subr.mxu0 0.0
    %3312 = vmatpush1.msra.mxu0 0.0
    %3313 = vmatprep.subr.mxu0 0.0
    %3314 = vmatpush1.msra.mxu0 0.0
    %3315 = vmatprep.subr.mxu0 0.0
    %3316 = vmatpush1.msra.mxu0 0.0
    %3317 = vmatprep.subr.mxu0 0.0
    %3318 = vmatpush1.msra.mxu0 0.0
    %3319 = vmatprep.subr.mxu0 0.0
    %3320 = vmatpush1.msra.mxu0 0.0
    %3321 = vmatprep.subr.mxu0 0.0
    %3322 = vmatpush1.msra.mxu0 0.0
    %3323 = vmatprep.mubr.f32.mxu0 0.0
    %3324 = vmatmul.mubr.f32.gmra.mrb[0].mxu0 %v3257
    %v3325 = vpop.f32.mrb[0].mxu0
    %v3326 = vadd.f32 0.0, %v3325
    %v3327 = vpop.f32.mrb[0].mxu0
    %3328 = vdwg.mxu0
    %v3329 = vld [vmem:[%s1 + $0xe8] sm:$0x3]
    %v3331 = vsel %vm3244, %v3329, 0
    %3333 = vmatprep.subr.mxu0 0.0
    %3334 = vmatpush1.msra.mxu0 %v3326
    %3335 = vmatprep.subr.mxu0 0.0
    %3336 = vmatpush1.msra.mxu0 0.0
    %3337 = vmatprep.subr.mxu0 0.0
    %3338 = vmatpush1.msra.mxu0 0.0
    %3339 = vmatprep.subr.mxu0 0.0
    %3340 = vmatpush1.msra.mxu0 0.0
    %3341 = vmatprep.subr.mxu0 0.0
    %3342 = vmatpush1.msra.mxu0 0.0
    %3343 = vmatprep.subr.mxu0 0.0
    %3344 = vmatpush1.msra.mxu0 0.0
    %3345 = vmatprep.subr.mxu0 0.0
    %3346 = vmatpush1.msra.mxu0 0.0
    %3347 = vmatprep.subr.mxu0 0.0
    %3348 = vmatpush1.msra.mxu0 0.0
    %3349 = vmatprep.subr.mxu0 0.0
    %3350 = vmatpush1.msra.mxu0 0.0
    %3351 = vmatprep.subr.mxu0 0.0
    %3352 = vmatpush1.msra.mxu0 0.0
    %3353 = vmatprep.subr.mxu0 0.0
    %3354 = vmatpush1.msra.mxu0 0.0
    %3355 = vmatprep.subr.mxu0 0.0
    %3356 = vmatpush1.msra.mxu0 0.0
    %3357 = vmatprep.subr.mxu0 0.0
    %3358 = vmatpush1.msra.mxu0 0.0
    %3359 = vmatprep.subr.mxu0 0.0
    %3360 = vmatpush1.msra.mxu0 0.0
    %3361 = vmatprep.subr.mxu0 0.0
    %3362 = vmatpush1.msra.mxu0 0.0
    %3363 = vmatprep.subr.mxu0 0.0
    %3364 = vmatpush1.msra.mxu0 0.0
    %3365 = vmatprep.subr.mxu0 0.0
    %3366 = vmatpush1.msra.mxu0 0.0
    %3367 = vmatprep.subr.mxu0 0.0
    %3368 = vmatpush1.msra.mxu0 0.0
    %3369 = vmatprep.subr.mxu0 0.0
    %3370 = vmatpush1.msra.mxu0 0.0
    %3371 = vmatprep.subr.mxu0 0.0
    %3372 = vmatpush1.msra.mxu0 0.0
    %3373 = vmatprep.subr.mxu0 0.0
    %3374 = vmatpush1.msra.mxu0 0.0
    %3375 = vmatprep.subr.mxu0 0.0
    %3376 = vmatpush1.msra.mxu0 0.0
    %3377 = vmatprep.subr.mxu0 0.0
    %3378 = vmatpush1.msra.mxu0 0.0
    %3379 = vmatprep.subr.mxu0 0.0
    %3380 = vmatpush1.msra.mxu0 0.0
    %3381 = vmatprep.subr.mxu0 0.0
    %3382 = vmatpush1.msra.mxu0 0.0
    %3383 = vmatprep.subr.mxu0 0.0
    %3384 = vmatpush1.msra.mxu0 0.0
    %3385 = vmatprep.subr.mxu0 0.0
    %3386 = vmatpush1.msra.mxu0 0.0
    %3387 = vmatprep.subr.mxu0 0.0
    %3388 = vmatpush1.msra.mxu0 0.0
    %3389 = vmatprep.subr.mxu0 0.0
    %3390 = vmatpush1.msra.mxu0 0.0
    %3391 = vmatprep.subr.mxu0 0.0
    %3392 = vmatpush1.msra.mxu0 0.0
    %3393 = vmatprep.subr.mxu0 0.0
    %3394 = vmatpush1.msra.mxu0 0.0
    %3395 = vmatprep.subr.mxu0 0.0
    %3396 = vmatpush1.msra.mxu0 0.0
    %3397 = vmatprep.mubr.f32.mxu0 0.0
    %3398 = vmatmul.mubr.f32.gmra.mrb[0].mxu0 %v3331
    %v3399 = vpop.f32.mrb[0].mxu0
    %v3400 = vadd.f32 0.0, %v3399
    %v3401 = vpop.f32.mrb[0].mxu0
    %3402 = vdwg.mxu0
    %v3403 = vld [vmem:[%s1 + $0xf0] sm:$0x1]
    %v3404 = vld [vmem:[%s1 + $0xf8] sm:$0x1]
    %vm3405 = vcmask 254976
    %v3406 = vsel %vm3405, %v3400, 0.0
    %3407 = vadd.xlane.f32.xlu0 %v3406
    %v3408 = vpop.xlane.xlu0 %3407
    %v3409 = vmul.f32 %v3408, %v1047
    %v3410 = vsub.f32 %v3400, %v3409
    %v3411 = vmul.f32 %v3410, %v3410
    %v3412 = vsel %vm3405, %v3411, 0.0
    %3413 = vadd.xlane.f32.xlu0 %v3412
    %v3414 = vpop.xlane.xlu0 %3413
    %v3415 = vmul.f32 %v3414, %v1047
    %v3416 = vadd.f32 %v3415, 1e-05
    %v3417 = vrsqrt.pop %v3416
    %v3418 = vmul.f32 %v3410, %v3417
    %v3419 = vlaneseq
    %v3420 = vshrl.u32 %v3419, 7
    %v3421 = vsub.s32 0, %v3420
    %v3422 = vrot.slane %v3403, %v3421
    %v3423 = vmul.f32 %v3418, %v3422
    %v3424 = vlaneseq
    %v3425 = vshrl.u32 %v3424, 7
    %v3426 = vsub.s32 0, %v3425
    %v3427 = vrot.slane %v3404, %v3426
    %v3428 = vadd.f32 %v3423, %v3427
    %v3429 = vld [vmem:[%s1 + $0x100] sm:$0xff]
    %v3430 = vld [vmem:[%s1 + $0x108] sm:$0xff]
    %v3431 = vld [vmem:[%s1 + $0x110] sm:$0xff]
    %v3432 = vld [vmem:[%s1 + $0x118] sm:$0xff]
    %v3433 = vld [vmem:[%s1 + $0x120] sm:$0x1]
    %v3434 = vlaneseq
    %v3435 = vshrl.u32 %v3434, 7
    %v3436 = vsub.s32 0, %v3435
    %v3437 = vrot.slane %v3433, %v3436
    %v3439 = vsel %vm184, %v3428, 0
    %3441 = vmatprep.subr.mxu0 0.0
    %3442 = vmatpush1.msra.mxu0 %v3429
    %3443 = vmatprep.subr.mxu0 0.0
    %3444 = vmatpush1.msra.mxu0 %v3430
    %3445 = vmatprep.subr.mxu0 0.0
    %3446 = vmatpush1.msra.mxu0 %v3431
    %3447 = vmatprep.subr.mxu0 0.0
    %3448 = vmatpush1.msra.mxu0 %v3432
    %3449 = vmatprep.subr.mxu0 0.0
    %3450 = vmatpush1.msra.mxu0 0.0
    %3451 = vmatprep.subr.mxu0 0.0
    %3452 = vmatpush1.msra.mxu0 0.0
    %3453 = vmatprep.subr.mxu0 0.0
    %3454 = vmatpush1.msra.mxu0 0.0
    %3455 = vmatprep.subr.mxu0 0.0
    %3456 = vmatpush1.msra.mxu0 0.0
    %3457 = vmatprep.subr.mxu0 0.0
    %3458 = vmatpush1.msra.mxu0 0.0
    %3459 = vmatprep.subr.mxu0 0.0
    %3460 = vmatpush1.msra.mxu0 0.0
    %3461 = vmatprep.subr.mxu0 0.0
    %3462 = vmatpush1.msra.mxu0 0.0
    %3463 = vmatprep.subr.mxu0 0.0
    %3464 = vmatpush1.msra.mxu0 0.0
    %3465 = vmatprep.subr.mxu0 0.0
    %3466 = vmatpush1.msra.mxu0 0.0
    %3467 = vmatprep.subr.mxu0 0.0
    %3468 = vmatpush1.msra.mxu0 0.0
    %3469 = vmatprep.subr.mxu0 0.0
    %3470 = vmatpush1.msra.mxu0 0.0
    %3471 = vmatprep.subr.mxu0 0.0
    %3472 = vmatpush1.msra.mxu0 0.0
    %3473 = vmatprep.subr.mxu0 0.0
    %3474 = vmatpush1.msra.mxu0 0.0
    %3475 = vmatprep.subr.mxu0 0.0
    %3476 = vmatpush1.msra.mxu0 0.0
    %3477 = vmatprep.subr.mxu0 0.0
    %3478 = vmatpush1.msra.mxu0 0.0
    %3479 = vmatprep.subr.mxu0 0.0
    %3480 = vmatpush1.msra.mxu0 0.0
    %3481 = vmatprep.subr.mxu0 0.0
    %3482 = vmatpush1.msra.mxu0 0.0
    %3483 = vmatprep.subr.mxu0 0.0
    %3484 = vmatpush1.msra.mxu0 0.0
    %3485 = vmatprep.subr.mxu0 0.0
    %3486 = vmatpush1.msra.mxu0 0.0
    %3487 = vmatprep.subr.mxu0 0.0
    %3488 = vmatpush1.msra.mxu0 0.0
    %3489 = vmatprep.subr.mxu0 0.0
    %3490 = vmatpush1.msra.mxu0 0.0
    %3491 = vmatprep.subr.mxu0 0.0
    %3492 = vmatpush1.msra.mxu0 0.0
    %3493 = vmatprep.subr.mxu0 0.0
    %3494 = vmatpush1.msra.mxu0 0.0
    %3495 = vmatprep.subr.mxu0 0.0
    %3496 = vmatpush1.msra.mxu0 0.0
    %3497 = vmatprep.subr.mxu0 0.0
    %3498 = vmatpush1.msra.mxu0 0.0
    %3499 = vmatprep.subr.mxu0 0.0
    %3500 = vmatpush1.msra.mxu0 0.0
    %3501 = vmatprep.subr.mxu0 0.0
    %3502 = vmatpush1.msra.mxu0 0.0
    %3503 = vmatprep.subr.mxu0 0.0
    %3504 = vmatpush1.msra.mxu0 0.0
    %3505 = vmatprep.mubr.f32.mxu0 0.0
    %3506 = vmatmul.mubr.f32.gmra.mrb[0].mxu0 %v3439
    %v3507 = vpop.f32.mrb[0].mxu0
    %v3508 = vadd.f32 %v3437, %v3507
    %v3509 = vpop.f32.mrb[0].mxu0
    %3510 = vdwg.mxu0
    %3511 = vst [vmem:[#allocation2] sm:$0x3] %v3508
    // Predicated region
    $region22: #{_forward.1} parent=1 // pred_check
      _
    $region23: #{_forward.1} parent=1 // pred_check_branch
      %3513 = sbr.rel (0) target = $region25
    $region24: #{_forward.1} parent=1 // pred_region
      %s3515 = ssub.s32 32, 32
      %3516 = vsyncadd [#allocation3], %s3515
      %s3518 = sshll.u32 [#allocation2], 4
      %s3519 = int_to_ptr.vmem [resolvable:$true] %s3518
      %3521 = dma.vmem_to_hbm [thread:$0]  %s3519, 32, %s5, [#allocation3]
    $region25: #{_forward.1} parent=1 // pred_fallthru
      _
    // Predicated region
    $region26: #{_forward.1} parent=1 // pred_check
      _
    $region27: #{_forward.1} parent=1 // pred_check_branch
      %3523 = sbr.rel (0) target = $region29
    $region28: #{_forward.1} parent=1 // pred_region
      %3524 = dma.done [#allocation3], 32
    $region29: #{_forward.1} parent=1 // pred_fallthru
      _
    %3525 = vsyncpa [#allocation3], 1

</llo_original>
